<compile_context>
chip_gen: v5e
topology: v5e:2x2
jax: 0.10.0
libtpu: 0.0.40
codegen_flags: <defaults>
</compile_context>

<pallas_src>
import functools

import jax
import jax.numpy as jnp
from jax import lax
from jax.experimental import pallas as pl
from jax.experimental.pallas import tpu as pltpu


def _vmem_limit_bytes():
    # v5e/v6e: 128 MiB physical VMEM -> allow ~96 MiB; v7x: 64 MiB -> ~48 MiB.
    try:
        cap = pltpu.get_tpu_info().vmem_capacity_bytes
    except Exception:
        cap = 128 * 1024 * 1024
    return int(min(96 * 1024 * 1024, cap * 3 // 4))


_VMEM_LIMIT = _vmem_limit_bytes()


def _tile(dim, target, gran):
    """Largest tile <= target that divides dim and is a multiple of gran (else full dim).

    NOTE: falls back to the full dim at awkward shapes; pad inputs for production sizes.
    """
    if dim <= target:
        return dim
    t = (target // gran) * gran
    while t >= gran:
        if dim % t == 0:
            return t
        t -= gran
    return dim


def _cparams(dims):
    return pltpu.CompilerParams(dimension_semantics=dims, vmem_limit_bytes=_VMEM_LIMIT)


# ----------------------------------------------------------------------------
# Generic tiled matmul (FFN): bf16 MXU operands, f32 accumulation, fused bias/ReLU
# ----------------------------------------------------------------------------


def _mm_kernel(a_ref, b_ref, bias_ref, o_ref, acc_ref, *, act):
    @pl.when(pl.program_id(2) == 0)
    def _():
        acc_ref[...] = jnp.zeros_like(acc_ref)

    acc_ref[...] += jnp.dot(a_ref[...], b_ref[...], preferred_element_type=jnp.float32)

    @pl.when(pl.program_id(2) == pl.num_programs(2) - 1)
    def _():
        out = acc_ref[...] + bias_ref[...]
        if act == "relu":
            out = jnp.maximum(out, 0.0)
        o_ref[...] = out.astype(o_ref.dtype)


def matmul(a, b, bias=None, act=None, out_dtype=jnp.float32, *, bm=256, bn=512, bk=512):
    """Tiled (M,N,K) matmul; f32 VMEM accumulator, output emitted in out_dtype."""
    M, K = a.shape
    N = b.shape[1]
    if bias is None:
        bias = jnp.zeros((N,), jnp.float32)
    bm = _tile(M, bm, 16)     # 16-row granule: bf16 packs 16 sublanes per vreg
    bn = _tile(N, bn, 256)    # 256-wide granule feeds the 2x256x256 MXU (v6e/v7x)
    bk = _tile(K, bk, 256)
    kern = functools.partial(_mm_kernel, act=act)
    return pl.pallas_call(
        kern,
        out_shape=jax.ShapeDtypeStruct((M, N), out_dtype),
        grid=(M // bm, N // bn, K // bk),
        in_specs=[
            pl.BlockSpec((bm, bk), lambda i, j, k: (i, k)),
            pl.BlockSpec((bk, bn), lambda i, j, k: (k, j)),
            pl.BlockSpec((1, bn), lambda i, j, k: (0, j)),
        ],
        out_specs=pl.BlockSpec((bm, bn), lambda i, j, k: (i, j)),
        scratch_shapes=[pltpu.VMEM((bm, bn), jnp.float32)],
        compiler_params=_cparams(("parallel", "parallel", "arbitrary")),
    )(a.astype(jnp.bfloat16), b.astype(jnp.bfloat16),
      bias.reshape(1, N).astype(jnp.float32))


# ----------------------------------------------------------------------------
# Fused residual add + LayerNorm (bf16 or f32 x, f32 residual, f32 stats/output)
# ----------------------------------------------------------------------------


def _add_ln_kernel(x_ref, r_ref, g_ref, b_ref, o_ref, *, eps):
    h = x_ref[...].astype(jnp.float32) + r_ref[...]
    mu = jnp.mean(h, axis=-1, keepdims=True)
    var = jnp.mean((h - mu) * (h - mu), axis=-1, keepdims=True)
    o_ref[...] = (h - mu) * lax.rsqrt(var + eps) * g_ref[...] + b_ref[...]


def add_layernorm(x, residual, gamma, beta, eps=1e-5):
    B, T, D = x.shape
    M = B * T
    bm = _tile(M, 256, 16)
    kern = functools.partial(_add_ln_kernel, eps=eps)
    out = pl.pallas_call(
        kern,
        out_shape=jax.ShapeDtypeStruct((M, D), jnp.float32),
        grid=(M // bm,),
        in_specs=[
            pl.BlockSpec((bm, D), lambda i: (i, 0)),
            pl.BlockSpec((bm, D), lambda i: (i, 0)),
            pl.BlockSpec((1, D), lambda i: (0, 0)),
            pl.BlockSpec((1, D), lambda i: (0, 0)),
        ],
        out_specs=pl.BlockSpec((bm, D), lambda i: (i, 0)),
        compiler_params=_cparams(("parallel",)),
    )(x.reshape(M, D), residual.reshape(M, D).astype(jnp.float32),
      gamma.reshape(1, D).astype(jnp.float32), beta.reshape(1, D).astype(jnp.float32))
    return out.reshape(B, T, D)


# ----------------------------------------------------------------------------
# Head-major projection kernels (no wrapper transposes of activations)
# ----------------------------------------------------------------------------


def _qkv_proj_kernel(x_ref, w_ref, o_ref):
    o_ref[0, 0, 0] = jnp.dot(x_ref[0], w_ref[0, 0],
                             preferred_element_type=jnp.float32).astype(o_ref.dtype)


def qkv_proj(cat, w_qkv):
    """cat: [B,klen,D] bf16; w_qkv: [3,H,D,dh] bf16 -> head-major [3,H,B,klen,dh] bf16."""
    B, klen, D = cat.shape
    _, H, _, dh = w_qkv.shape
    return pl.pallas_call(
        _qkv_proj_kernel,
        out_shape=jax.ShapeDtypeStruct((3, H, B, klen, dh), jnp.bfloat16),
        grid=(B, 3, H),  # b outermost so the cat block is fetched once per batch
        in_specs=[
            pl.BlockSpec((1, klen, D), lambda b, s, h: (b, 0, 0)),
            pl.BlockSpec((1, 1, D, dh), lambda b, s, h: (s, h, 0, 0)),
        ],
        out_specs=pl.BlockSpec((1, 1, 1, klen, dh), lambda b, s, h: (s, h, b, 0, 0)),
        compiler_params=_cparams(("parallel", "parallel", "parallel")),
    )(cat, w_qkv)


def _rproj_kernel(p_ref, w_ref, o_ref):
    o_ref[0] = jnp.dot(p_ref[...], w_ref[0],
                       preferred_element_type=jnp.float32).astype(o_ref.dtype)


def r_proj(p, w_r):
    """p: [klen,D] bf16; w_r: [H,D,dh] bf16 -> [H,klen,dh] bf16."""
    klen, D = p.shape
    H, _, dh = w_r.shape
    return pl.pallas_call(
        _rproj_kernel,
        out_shape=jax.ShapeDtypeStruct((H, klen, dh), jnp.bfloat16),
        grid=(H,),
        in_specs=[
            pl.BlockSpec((klen, D), lambda h: (0, 0)),
            pl.BlockSpec((1, D, dh), lambda h: (h, 0, 0)),
        ],
        out_specs=pl.BlockSpec((1, klen, dh), lambda h: (h, 0, 0)),
        compiler_params=_cparams(("parallel",)),
    )(p, w_r)


# ----------------------------------------------------------------------------
# Fused XL relative attention: biases + AC + BD + rel_shift + mask + softmax + PV
# ----------------------------------------------------------------------------


def _rel_shift_rows(raw, qlen, klen):
    """Transformer-XL rel_shift on registers: out[i, j] = raw[i, j + qlen - 1 - i].

    The circular wrap only lands in causally-masked positions, so it is harmless.
    TODO(synk): at production qlen, replace the statically-unrolled per-row shift with
                pltpu.roll(raw, shift=mlen+1, axis=1, stride=1, stride_axis=0).
    """
    doubled = jnp.concatenate([raw, raw], axis=1)            # [qlen, 2*klen]
    rows = [doubled[i:i + 1, qlen - 1 - i: qlen - 1 - i + klen] for i in range(qlen)]
    return jnp.concatenate(rows, axis=0)                     # [qlen, klen]


def _attn_kernel(q_ref, k_ref, v_ref, r_ref, rwb_ref, rrb_ref, o_ref, *,
                 scale, qlen, mlen):
    klen = qlen + mlen
    q = q_ref[0, 0, 0].astype(jnp.float32)[mlen:, :]         # [qlen, dh]
    k = k_ref[0, 0, 0]                                       # [klen, dh] bf16
    v = v_ref[0, 0, 0]                                       # [klen, dh] bf16
    r = r_ref[0]                                             # [klen, dh] bf16
    rw_q = (q + rwb_ref[0]).astype(jnp.bfloat16)             # + r_w_bias
    rr_q = (q + rrb_ref[0]).astype(jnp.bfloat16)             # + r_r_bias

    # AC and (pre-shift) BD terms on the MXU, f32 accumulation; bd stays in VMEM/registers.
    ac = lax.dot_general(rw_q, k, (((1,), (1,)), ((), ())),
                         preferred_element_type=jnp.float32)               # [qlen, klen]
    bd = _rel_shift_rows(
        lax.dot_general(rr_q, r, (((1,), (1,)), ((), ())),
                        preferred_element_type=jnp.float32), qlen, klen)   # [qlen, klen]

    s = (ac + bd) * scale
    row = lax.broadcasted_iota(jnp.int32, (qlen, klen), 0)
    col = lax.broadcasted_iota(jnp.int32, (qlen, klen), 1)
    s = jnp.where(col > row + mlen, -1e30, s)                # causal mask, built in-kernel

    m = jnp.max(s, axis=-1, keepdims=True)
    e = jnp.exp(s - m)
    inv_l = pl.reciprocal(jnp.sum(e, axis=-1, keepdims=True), approx=True)  # EUP slot
    p = (e * inv_l).astype(jnp.bfloat16)                     # [qlen, klen]
    # Single contiguous [qlen, dh] block store (no per-head masked stores).
    o_ref[0, 0] = jnp.dot(p, v, preferred_element_type=jnp.float32).astype(o_ref.dtype)


def fused_attention(qkv_hm, r_hm, r_w_bias, r_r_bias, *, qlen, scale):
    """qkv_hm: [3,H,B,klen,dh] bf16; r_hm: [H,klen,dh] bf16 -> [B,H,qlen,dh] bf16."""
    _, H, B, klen, dh = qkv_hm.shape
    mlen = klen - qlen
    kern = functools.partial(_attn_kernel, scale=scale, qlen=qlen, mlen=mlen)

    def qkv_spec(s):
        return pl.BlockSpec((1, 1, 1, klen, dh), lambda b, h, s=s: (s, h, b, 0, 0))

    # TODO(synk): for production klen, add a kv-block 'arbitrary' grid axis with online
    #             softmax (m/l/acc scratch) and pl.when-skip of fully masked blocks so the
    #             working set stays within v7x's 64 MiB VMEM.
    return pl.pallas_call(
        kern,
        out_shape=jax.ShapeDtypeStruct((B, H, qlen, dh), jnp.bfloat16),
        grid=(B, H),
        in_specs=[
            qkv_spec(0), qkv_spec(1), qkv_spec(2),
            pl.BlockSpec((1, klen, dh), lambda b, h: (h, 0, 0)),
            pl.BlockSpec((1, 1, dh), lambda b, h: (h, 0, 0)),
            pl.BlockSpec((1, 1, dh), lambda b, h: (h, 0, 0)),
        ],
        out_specs=pl.BlockSpec((1, 1, qlen, dh), lambda b, h: (b, h, 0, 0)),
        compiler_params=_cparams(("parallel", "parallel")),
    )(qkv_hm, qkv_hm, qkv_hm, r_hm, r_w_bias, r_r_bias)


def _oproj_kernel(a_ref, w_ref, o_ref):
    @pl.when(pl.program_id(1) == 0)
    def _():
        o_ref[...] = jnp.zeros_like(o_ref)
    # Output block index ignores h -> resident across the head reduction; accumulate
    # directly into it (no extra f32 scratch).
    o_ref[0] += jnp.dot(a_ref[0, 0], w_ref[0], preferred_element_type=jnp.float32)


def out_proj(attn, w_o):
    """attn: [B,H,qlen,dh] bf16; w_o: [H,dh,D] bf16 -> [B,qlen,D] f32 (sum over heads)."""
    B, H, qlen, dh = attn.shape
    D = w_o.shape[-1]
    return pl.pallas_call(
        _oproj_kernel,
        out_shape=jax.ShapeDtypeStruct((B, qlen, D), jnp.float32),
        grid=(B, H),
        in_specs=[
            pl.BlockSpec((1, 1, qlen, dh), lambda b, h: (b, h, 0, 0)),
            pl.BlockSpec((1, dh, D), lambda b, h: (h, 0, 0)),
        ],
        out_specs=pl.BlockSpec((1, qlen, D), lambda b, h: (b, 0, 0)),
        compiler_params=_cparams(("parallel", "arbitrary")),
    )(attn, w_o)


# ----------------------------------------------------------------------------
# Causal FNet mixing: two concatenated-constant MXU calls per batch
# ----------------------------------------------------------------------------


def _fnet_kernel(x_ref, c1_ref, c2_ref, o_ref, *, d_model):
    x = x_ref[0]                                                         # [klen, D] bf16
    # Stage 1: [xr | xi] = x @ [cos_d | -sin_d]
    z = jnp.dot(x, c1_ref[...], preferred_element_type=jnp.float32)     # [klen, 2D]
    stacked = jnp.concatenate([z[:, :d_model], z[:, d_model:]],
                              axis=0).astype(jnp.bfloat16)               # [2*klen, D]
    # Stage 2: real part of causally-masked sequence DFT, last qlen rows only.
    o_ref[0] = jnp.dot(c2_ref[...], stacked,
                       preferred_element_type=jnp.float32).astype(o_ref.dtype)


def fnet_mix(cat, c_hidden, c_seq):
    """cat: [B,klen,D] bf16; c_hidden: [D,2D]; c_seq: [qlen,2*klen] -> [B,qlen,D] bf16."""
    B, klen, D = cat.shape
    qlen = c_seq.shape[0]
    kern = functools.partial(_fnet_kernel, d_model=D)
    # TODO(synk): for production D/klen, tile over (qlen, klen) with an f32 accumulator so
    #             the DFT constants and the [klen, 2D] intermediate fit v7x's 64 MiB VMEM.
    return pl.pallas_call(
        kern,
        out_shape=jax.ShapeDtypeStruct((B, qlen, D), jnp.bfloat16),
        grid=(B,),
        in_specs=[
            pl.BlockSpec((1, klen, D), lambda b: (b, 0, 0)),
            pl.BlockSpec((D, 2 * D), lambda b: (0, 0)),
            pl.BlockSpec((qlen, 2 * klen), lambda b: (0, 0)),
        ],
        out_specs=pl.BlockSpec((1, qlen, D), lambda b: (b, 0, 0)),
        compiler_params=_cparams(("parallel",)),
    )(cat, c_hidden, c_seq)


# ----------------------------------------------------------------------------
# Model glue (plain JAX: concat/reshape/slice, parameter plumbing)
# ----------------------------------------------------------------------------


def wave_grid(klen, d_model):
    pos_seq = jnp.arange(klen - 1, -1, -1.0, dtype=jnp.float32)
    inv_freq = 1.0 / (10000.0 ** (jnp.arange(0.0, d_model, 2.0) / d_model))
    sinusoid = pos_seq[:, None] * inv_freq[None, :]
    return jnp.concatenate([jnp.sin(sinusoid), jnp.cos(sinusoid)], axis=-1)  # [klen, D]


def dft_mats(n):
    j = jnp.arange(n, dtype=jnp.float32)
    ang = 2.0 * jnp.pi * (j[:, None] * j[None, :]) / n
    return jnp.cos(ang), jnp.sin(ang)


def xl_layer(x, mem, p_bf16, pos_params, lp, n_head, d_head):
    B, qlen, D = x.shape
    scale = 1.0 / (d_head ** 0.5)
    cat = jnp.concatenate([mem, x], axis=1).astype(jnp.bfloat16)         # [B, klen, D]

    qkv_hm = qkv_proj(cat, lp["Wqkv"])                                   # [3,H,B,klen,dh]
    r_hm = r_proj(p_bf16, pos_params["Wr"])                              # [H,klen,dh]

    attn = fused_attention(
        qkv_hm, r_hm,
        pos_params["r_w_bias"].reshape(n_head, 1, d_head),
        pos_params["r_r_bias"].reshape(n_head, 1, d_head),
        qlen=qlen, scale=scale)                                          # [B,H,q,dh] bf16
    attn_out = out_proj(attn, lp["Wo"])                                  # [B,q,D] f32

    h = add_layernorm(attn_out, x, lp["ln1_g"], lp["ln1_b"])
    return pos_ff(h, lp)


def pos_ff(h, lp):
    B, T, D = h.shape
    h2 = h.reshape(B * T, D)
    a = matmul(h2, lp["W1"], lp["b1"], act="relu", out_dtype=jnp.bfloat16)
    o = matmul(a, lp["W2"], lp["b2"]).reshape(B, T, D)                   # f32
    return add_layernorm(o, h, lp["ln2_g"], lp["ln2_b"])


def fnetar_layer(x, mem, p, add_position, lp, fourier):
    c_hidden, c_seq = fourier
    cat = jnp.concatenate([mem, x], axis=1)
    if add_position:
        cat = cat + p[None, :, :]
    mixed = fnet_mix(cat.astype(jnp.bfloat16), c_hidden, c_seq)          # [B,q,D] bf16
    h = add_layernorm(mixed, x, lp["ln1_g"], lp["ln1_b"])
    return pos_ff(h, lp)


@functools.partial(jax.jit, static_argnames=("n_head", "d_head", "mem_len", "kinds"))
def _forward(x, memory, params, *, n_head, d_head, mem_len, kinds):
    n_layer = len(kinds)
    B, qlen, D = x.shape
    mlen = memory[0].shape[1]
    klen = mlen + qlen

    p = wave_grid(klen, D)                                               # dropout = identity
    p_bf16 = p.astype(jnp.bfloat16)

    # FNet-AR DFT constants, pre-concatenated so the mixing kernel needs only two matmuls.
    cos_d, sin_d = dft_mats(D)
    cos_t, sin_t = dft_mats(klen)
    causal = jnp.tril(jnp.ones((klen, klen), jnp.float32))
    c_hidden = jnp.concatenate([cos_d, -sin_d], axis=1).astype(jnp.bfloat16)    # [D, 2D]
    c_seq = jnp.concatenate(
        [(cos_t * causal)[-qlen:], (sin_t * causal)[-qlen:]],
        axis=1).astype(jnp.bfloat16)                                            # [q, 2k]
    fourier = (c_hidden, c_seq)

    hids = [x]
    first_fourier = True
    for i in range(n_layer):
        lp = params["layers"][i]
        if kinds[i] == "xl":
            x = xl_layer(x, memory[i], p_bf16, params["position"], lp, n_head, d_head)
        else:
            add_pos = first_fourier
            first_fourier = False
            x = fnetar_layer(x, memory[i], p, add_pos, lp, fourier)
        hids.append(x)

    new_memory = [
        jnp.concatenate([memory[i], hids[i]], axis=1)[:, -mem_len:, :]
        for i in range(n_layer)
    ]
    return x, new_memory


def fnetar_forward(x, memory, params, cfg):
    return _forward(x, tuple(memory), params,
                    n_head=cfg["n_head"], d_head=cfg["d_head"],
                    mem_len=cfg["mem_len"], kinds=tuple(cfg["kinds"]))


# ----------------------------------------------------------------------------
# Deterministic parameter init (projection weights stored head-major, bf16)
# ----------------------------------------------------------------------------


def init_params(key, n_layer, d_model, n_head, d_head, d_inner):
    def nrm(k, shape, std=0.02, dtype=jnp.float32):
        return (std * jax.random.normal(k, shape, jnp.float32)).astype(dtype)

    keys = jax.random.split(key, 4 + n_layer)
    params = {
        "position": {
            "Wr": nrm(keys[0], (n_head, d_model, d_head), dtype=jnp.bfloat16),
            "r_w_bias": nrm(keys[1], (n_head, d_head)),
            "r_r_bias": nrm(keys[2], (n_head, d_head)),
        },
        "layers": [],
    }
    kinds = []
    for i in range(n_layer):
        lk = jax.random.split(keys[4 + i], 8)
        lp = {
            "ln1_g": jnp.ones((d_model,), jnp.float32),
            "ln1_b": jnp.zeros((d_model,), jnp.float32),
            "W1": nrm(lk[0], (d_model, d_inner), dtype=jnp.bfloat16),
            "b1": jnp.zeros((d_inner,), jnp.float32),
            "W2": nrm(lk[1], (d_inner, d_model), dtype=jnp.bfloat16),
            "b2": jnp.zeros((d_model,), jnp.float32),
            "ln2_g": jnp.ones((d_model,), jnp.float32),
            "ln2_b": jnp.zeros((d_model,), jnp.float32),
        }
        if i < n_layer // 2:
            kinds.append("xl")
            lp["Wqkv"] = nrm(lk[2], (3, n_head, d_model, d_head), dtype=jnp.bfloat16)
            lp["Wo"] = nrm(lk[3], (n_head, d_head, d_model), dtype=jnp.bfloat16)
        else:
            kinds.append("fnetar")
        params["layers"].append(lp)
    return params, tuple(kinds)


# ----------------------------------------------------------------------------
# Demo
# ----------------------------------------------------------------------------

if __name__ == "__main__":
    cfg = dict(n_layer=4, d_model=32, n_head=2, d_head=16, d_inner=64,
               tgt_len=8, mem_len=8, same_length=False, clamp_len=-1)
    B, qlen, mlen = 2, 8, 8

    key = jax.random.PRNGKey(0)
    kx, kmem, kparam = jax.random.split(key, 3)

    x = jax.random.normal(kx, (B, qlen, cfg["d_model"]), jnp.float32)
    mem_keys = jax.random.split(kmem, cfg["n_layer"])
    memory = [jax.random.normal(mem_keys[i], (B, mlen, cfg["d_model"]), jnp.float32)
              for i in range(cfg["n_layer"])]

    params, kinds = init_params(kparam, cfg["n_layer"], cfg["d_model"],
                                cfg["n_head"], cfg["d_head"], cfg["d_inner"])
    cfg["kinds"] = kinds

    out, new_memory = fnetar_forward(x, memory, params, cfg)
    jax.block_until_ready(out)
    for m in new_memory:
        jax.block_until_ready(m)

    assert out.shape == (B, qlen, cfg["d_model"])
    assert all(m.shape == (B, cfg["mem_len"], cfg["d_model"]) for m in new_memory)
    assert bool(jnp.all(jnp.isfinite(out)))
    print("KERNEL_OK")
</pallas_src>

<mosaic_0001>
module attributes {stable_mosaic.version = 11 : i64} {
  func.func @_rproj_kernel(%arg0: i32, %arg1: memref<16x32xbf16, #tpu.memory_space<vmem>>, %arg2: memref<1x32x16xbf16, #tpu.memory_space<vmem>>, %arg3: memref<1x16x16xbf16, #tpu.memory_space<vmem>>) attributes {dimension_semantics = [#tpu.dimension_semantics<parallel>], iteration_bounds = array<i64: 2>, scalar_prefetch = 0 : i64, scratch_operands = 0 : i64, tpu.core_type = #tpu.core_type<tc>, window_params = [{pipeline_mode = #tpu.pipeline_mode<synchronous>, transform_indices = @transform_0, window_bounds = array<i64: 16, 32>}, {transform_indices = @transform_1, window_bounds = array<i64: 1, 32, 16>}, {transform_indices = @transform_2, window_bounds = array<i64: 1, 16, 16>}]} {
    %c0 = arith.constant 0 : index
    %c0_0 = arith.constant 0 : index
    %0 = vector.load %arg1[%c0, %c0_0] : memref<16x32xbf16, #tpu.memory_space<vmem>>, vector<16x32xbf16>
    %c0_1 = arith.constant 0 : index
    %c0_2 = arith.constant 0 : index
    %c0_3 = arith.constant 0 : index
    %1 = vector.load %arg2[%c0_1, %c0_2, %c0_3] : memref<1x32x16xbf16, #tpu.memory_space<vmem>>, vector<1x32x16xbf16>
    %2 = vector.shape_cast %1 : vector<1x32x16xbf16> to vector<32x16xbf16>
    %cst = arith.constant dense<0.000000e+00> : vector<16x16xf32>
    %3 = tpu.matmul %0, %2, %cst {dimension_numbers = #tpu.dot_dimension_numbers<[1], [0], [0], [1], [0, 0, 1, 1], [], []>} : vector<16x32xbf16>, vector<32x16xbf16>, vector<16x16xf32> -> vector<16x16xf32>
    %4 = arith.truncf %3 : vector<16x16xf32> to vector<16x16xbf16>
    %c0_4 = arith.constant 0 : index
    %c0_5 = arith.constant 0 : index
    %c0_6 = arith.constant 0 : index
    %5 = vector.load %arg3[%c0_4, %c0_5, %c0_6] : memref<1x16x16xbf16, #tpu.memory_space<vmem>>, vector<1x16x16xbf16>
    %6 = vector.shape_cast %5 : vector<1x16x16xbf16> to vector<16x16xbf16>
    %7 = vector.shape_cast %4 : vector<16x16xbf16> to vector<1x16x16xbf16>
    tpu.vector_store %arg3[%c0_4, %c0_5, %c0_6], %7 {strides = array<i32>} : memref<1x16x16xbf16, #tpu.memory_space<vmem>>, vector<1x16x16xbf16>,
    return
  }
  func.func @transform_0(%arg0: i32) -> (i32, i32) {
    %c0_i32 = arith.constant 0 : i32
    %c0_i32_0 = arith.constant 0 : i32
    %c0_i32_1 = arith.constant 0 : i32
    return %c0_i32, %c0_i32_0 : i32, i32
  }
  func.func @transform_1(%arg0: i32) -> (i32, i32, i32) {
    %c0_i32 = arith.constant 0 : i32
    %c0_i32_0 = arith.constant 0 : i32
    %c0_i32_1 = arith.constant 0 : i32
    return %arg0, %c0_i32, %c0_i32_0 : i32, i32, i32
  }
  func.func @transform_2(%arg0: i32) -> (i32, i32, i32) {
    %c0_i32 = arith.constant 0 : i32
    %c0_i32_0 = arith.constant 0 : i32
    %c0_i32_1 = arith.constant 0 : i32
    return %arg0, %c0_i32, %c0_i32_0 : i32, i32, i32
  }
}

module attributes {stable_mosaic.version = 11 : i64} {
  func.func @_qkv_proj_kernel(%arg0: i32, %arg1: i32, %arg2: i32, %arg3: memref<1x16x32xbf16, #tpu.memory_space<vmem>>, %arg4: memref<1x1x32x16xbf16, #tpu.memory_space<vmem>>, %arg5: memref<1x1x1x16x16xbf16, #tpu.memory_space<vmem>>) attributes {dimension_semantics = [#tpu.dimension_semantics<parallel>, #tpu.dimension_semantics<parallel>, #tpu.dimension_semantics<parallel>], iteration_bounds = array<i64: 2, 3, 2>, scalar_prefetch = 0 : i64, scratch_operands = 0 : i64, tpu.core_type = #tpu.core_type<tc>, window_params = [{transform_indices = @transform_0, window_bounds = array<i64: 1, 16, 32>}, {transform_indices = @transform_1, window_bounds = array<i64: 1, 1, 32, 16>}, {transform_indices = @transform_2, window_bounds = array<i64: 1, 1, 1, 16, 16>}]} {
    %c0 = arith.constant 0 : index
    %c0_0 = arith.constant 0 : index
    %c0_1 = arith.constant 0 : index
    %0 = vector.load %arg3[%c0, %c0_0, %c0_1] : memref<1x16x32xbf16, #tpu.memory_space<vmem>>, vector<1x16x32xbf16>
    %1 = vector.shape_cast %0 : vector<1x16x32xbf16> to vector<16x32xbf16>
    %c0_2 = arith.constant 0 : index
    %c0_3 = arith.constant 0 : index
    %c0_4 = arith.constant 0 : index
    %c0_5 = arith.constant 0 : index
    %2 = vector.load %arg4[%c0_2, %c0_3, %c0_4, %c0_5] : memref<1x1x32x16xbf16, #tpu.memory_space<vmem>>, vector<1x1x32x16xbf16>
    %3 = vector.shape_cast %2 : vector<1x1x32x16xbf16> to vector<32x16xbf16>
    %cst = arith.constant dense<0.000000e+00> : vector<16x16xf32>
    %4 = tpu.matmul %1, %3, %cst {dimension_numbers = #tpu.dot_dimension_numbers<[1], [0], [0], [1], [0, 0, 1, 1], [], []>} : vector<16x32xbf16>, vector<32x16xbf16>, vector<16x16xf32> -> vector<16x16xf32>
    %5 = arith.truncf %4 : vector<16x16xf32> to vector<16x16xbf16>
    %c0_6 = arith.constant 0 : index
    %c0_7 = arith.constant 0 : index
    %c0_8 = arith.constant 0 : index
    %c0_9 = arith.constant 0 : index
    %c0_10 = arith.constant 0 : index
    %6 = vector.load %arg5[%c0_6, %c0_7, %c0_8, %c0_9, %c0_10] : memref<1x1x1x16x16xbf16, #tpu.memory_space<vmem>>, vector<1x1x1x16x16xbf16>
    %7 = vector.shape_cast %6 : vector<1x1x1x16x16xbf16> to vector<16x16xbf16>
    %8 = vector.shape_cast %5 : vector<16x16xbf16> to vector<1x1x1x16x16xbf16>
    tpu.vector_store %arg5[%c0_6, %c0_7, %c0_8, %c0_9, %c0_10], %8 {strides = array<i32>} : memref<1x1x1x16x16xbf16, #tpu.memory_space<vmem>>, vector<1x1x1x16x16xbf16>,
    return
  }
  func.func @transform_0(%arg0: i32, %arg1: i32, %arg2: i32) -> (i32, i32, i32) {
    %c0_i32 = arith.constant 0 : i32
    %c0_i32_0 = arith.constant 0 : i32
    %c0_i32_1 = arith.constant 0 : i32
    return %arg0, %c0_i32, %c0_i32_0 : i32, i32, i32
  }
  func.func @transform_1(%arg0: i32, %arg1: i32, %arg2: i32) -> (i32, i32, i32, i32) {
    %c0_i32 = arith.constant 0 : i32
    %c0_i32_0 = arith.constant 0 : i32
    %c0_i32_1 = arith.constant 0 : i32
    return %arg1, %arg2, %c0_i32, %c0_i32_0 : i32, i32, i32, i32
  }
  func.func @transform_2(%arg0: i32, %arg1: i32, %arg2: i32) -> (i32, i32, i32, i32, i32) {
    %c0_i32 = arith.constant 0 : i32
    %c0_i32_0 = arith.constant 0 : i32
    %c0_i32_1 = arith.constant 0 : i32
    return %arg1, %arg2, %arg0, %c0_i32, %c0_i32_0 : i32, i32, i32, i32, i32
  }
}

module attributes {stable_mosaic.version = 11 : i64} {
  func.func @_oproj_kernel(%arg0: i32, %arg1: i32, %arg2: memref<1x1x8x16xbf16, #tpu.memory_space<vmem>>, %arg3: memref<1x16x32xbf16, #tpu.memory_space<vmem>>, %arg4: memref<1x8x32xf32, #tpu.memory_space<vmem>>) attributes {dimension_semantics = [#tpu.dimension_semantics<parallel>, #tpu.dimension_semantics<arbitrary>], iteration_bounds = array<i64: 2, 2>, scalar_prefetch = 0 : i64, scratch_operands = 0 : i64, tpu.core_type = #tpu.core_type<tc>, window_params = [{transform_indices = @transform_0, window_bounds = array<i64: 1, 1, 8, 16>}, {transform_indices = @transform_1, window_bounds = array<i64: 1, 16, 32>}, {transform_indices = @transform_2, window_bounds = array<i64: 1, 8, 32>}]} {
    %c0_i32 = arith.constant 0 : i32
    %0 = arith.cmpi eq, %arg1, %c0_i32 : i32
    %1 = arith.extui %0 : i1 to i32
    %c0_i32_0 = arith.constant 0 : i32
    %2 = arith.cmpi ne, %1, %c0_i32_0 : i32
    scf.if %2 {
      %cst_13 = arith.constant 0.000000e+00 : f32
      %14 = vector.broadcast %cst_13 : f32 to vector<1x8x32xf32>
      %c0_14 = arith.constant 0 : index
      %c0_15 = arith.constant 0 : index
      %c0_16 = arith.constant 0 : index
      %15 = vector.load %arg4[%c0_14, %c0_15, %c0_16] : memref<1x8x32xf32, #tpu.memory_space<vmem>>, vector<1x8x32xf32>
      tpu.vector_store %arg4[%c0_14, %c0_15, %c0_16], %14 {strides = array<i32>} : memref<1x8x32xf32, #tpu.memory_space<vmem>>, vector<1x8x32xf32>,
    } else {
    }
    %c0 = arith.constant 0 : index
    %c0_1 = arith.constant 0 : index
    %c0_2 = arith.constant 0 : index
    %3 = vector.load %arg4[%c0, %c0_1, %c0_2] : memref<1x8x32xf32, #tpu.memory_space<vmem>>, vector<1x8x32xf32>
    %4 = vector.shape_cast %3 : vector<1x8x32xf32> to vector<8x32xf32>
    %c0_3 = arith.constant 0 : index
    %c0_4 = arith.constant 0 : index
    %c0_5 = arith.constant 0 : index
    %c0_6 = arith.constant 0 : index
    %5 = vector.load %arg2[%c0_3, %c0_4, %c0_5, %c0_6] : memref<1x1x8x16xbf16, #tpu.memory_space<vmem>>, vector<1x1x8x16xbf16>
    %6 = vector.shape_cast %5 : vector<1x1x8x16xbf16> to vector<8x16xbf16>
    %c0_7 = arith.constant 0 : index
    %c0_8 = arith.constant 0 : index
    %c0_9 = arith.constant 0 : index
    %7 = vector.load %arg3[%c0_7, %c0_8, %c0_9] : memref<1x16x32xbf16, #tpu.memory_space<vmem>>, vector<1x16x32xbf16>
    %8 = vector.shape_cast %7 : vector<1x16x32xbf16> to vector<16x32xbf16>
    %cst = arith.constant dense<0.000000e+00> : vector<8x32xf32>
    %9 = tpu.matmul %6, %8, %cst {dimension_numbers = #tpu.dot_dimension_numbers<[1], [0], [0], [1], [0, 0, 1, 1], [], []>} : vector<8x16xbf16>, vector<16x32xbf16>, vector<8x32xf32> -> vector<8x32xf32>
    %10 = arith.addf %4, %9 : vector<8x32xf32>
    %c0_10 = arith.constant 0 : index
    %c0_11 = arith.constant 0 : index
    %c0_12 = arith.constant 0 : index
    %11 = vector.load %arg4[%c0_10, %c0_11, %c0_12] : memref<1x8x32xf32, #tpu.memory_space<vmem>>, vector<1x8x32xf32>
    %12 = vector.shape_cast %11 : vector<1x8x32xf32> to vector<8x32xf32>
    %13 = vector.shape_cast %10 : vector<8x32xf32> to vector<1x8x32xf32>
    tpu.vector_store %arg4[%c0_10, %c0_11, %c0_12], %13 {strides = array<i32>} : memref<1x8x32xf32, #tpu.memory_space<vmem>>, vector<1x8x32xf32>,
    return
  }
  func.func @transform_0(%arg0: i32, %arg1: i32) -> (i32, i32, i32, i32) {
    %c0_i32 = arith.constant 0 : i32
    %c0_i32_0 = arith.constant 0 : i32
    %c0_i32_1 = arith.constant 0 : i32
    return %arg0, %arg1, %c0_i32, %c0_i32_0 : i32, i32, i32, i32
  }
  func.func @transform_1(%arg0: i32, %arg1: i32) -> (i32, i32, i32) {
    %c0_i32 = arith.constant 0 : i32
    %c0_i32_0 = arith.constant 0 : i32
    %c0_i32_1 = arith.constant 0 : i32
    return %arg1, %c0_i32, %c0_i32_0 : i32, i32, i32
  }
  func.func @transform_2(%arg0: i32, %arg1: i32) -> (i32, i32, i32) {
    %c0_i32 = arith.constant 0 : i32
    %c0_i32_0 = arith.constant 0 : i32
    %c0_i32_1 = arith.constant 0 : i32
    return %arg0, %c0_i32, %c0_i32_0 : i32, i32, i32
  }
}

module attributes {stable_mosaic.version = 11 : i64} {
  func.func @_attn_kernel(%arg0: i32, %arg1: i32, %arg2: memref<1x1x1x16x16xbf16, #tpu.memory_space<vmem>>, %arg3: memref<1x1x1x16x16xbf16, #tpu.memory_space<vmem>>, %arg4: memref<1x1x1x16x16xbf16, #tpu.memory_space<vmem>>, %arg5: memref<1x16x16xbf16, #tpu.memory_space<vmem>>, %arg6: memref<1x1x16xf32, #tpu.memory_space<vmem>>, %arg7: memref<1x1x16xf32, #tpu.memory_space<vmem>>, %arg8: memref<1x1x8x16xbf16, #tpu.memory_space<vmem>>) attributes {dimension_semantics = [#tpu.dimension_semantics<parallel>, #tpu.dimension_semantics<parallel>], iteration_bounds = array<i64: 2, 2>, scalar_prefetch = 0 : i64, scratch_operands = 0 : i64, tpu.core_type = #tpu.core_type<tc>, window_params = [{transform_indices = @transform_0, window_bounds = array<i64: 1, 1, 1, 16, 16>}, {transform_indices = @transform_1, window_bounds = array<i64: 1, 1, 1, 16, 16>}, {transform_indices = @transform_2, window_bounds = array<i64: 1, 1, 1, 16, 16>}, {transform_indices = @transform_3, window_bounds = array<i64: 1, 16, 16>}, {transform_indices = @transform_4, window_bounds = array<i64: 1, 1, 16>}, {transform_indices = @transform_5, window_bounds = array<i64: 1, 1, 16>}, {transform_indices = @transform_6, window_bounds = array<i64: 1, 1, 8, 16>}]} {
    %c0 = arith.constant 0 : index
    %c0_0 = arith.constant 0 : index
    %c0_1 = arith.constant 0 : index
    %c0_2 = arith.constant 0 : index
    %c0_3 = arith.constant 0 : index
    %0 = vector.load %arg2[%c0, %c0_0, %c0_1, %c0_2, %c0_3] : memref<1x1x1x16x16xbf16, #tpu.memory_space<vmem>>, vector<1x1x1x16x16xbf16>
    %1 = vector.shape_cast %0 : vector<1x1x1x16x16xbf16> to vector<16x16xbf16>
    %2 = arith.extf %1 : vector<16x16xbf16> to vector<16x16xf32>
    %3 = vector.extract_strided_slice %2 {offsets = [8, 0], sizes = [8, 16], strides = [1, 1]} : vector<16x16xf32> to vector<8x16xf32>
    %c0_4 = arith.constant 0 : index
    %c0_5 = arith.constant 0 : index
    %c0_6 = arith.constant 0 : index
    %c0_7 = arith.constant 0 : index
    %c0_8 = arith.constant 0 : index
    %4 = vector.load %arg3[%c0_4, %c0_5, %c0_6, %c0_7, %c0_8] : memref<1x1x1x16x16xbf16, #tpu.memory_space<vmem>>, vector<1x1x1x16x16xbf16>
    %5 = vector.shape_cast %4 : vector<1x1x1x16x16xbf16> to vector<16x16xbf16>
    %c0_9 = arith.constant 0 : index
    %c0_10 = arith.constant 0 : index
    %c0_11 = arith.constant 0 : index
    %c0_12 = arith.constant 0 : index
    %c0_13 = arith.constant 0 : index
    %6 = vector.load %arg4[%c0_9, %c0_10, %c0_11, %c0_12, %c0_13] : memref<1x1x1x16x16xbf16, #tpu.memory_space<vmem>>, vector<1x1x1x16x16xbf16>
    %7 = vector.shape_cast %6 : vector<1x1x1x16x16xbf16> to vector<16x16xbf16>
    %c0_14 = arith.constant 0 : index
    %c0_15 = arith.constant 0 : index
    %c0_16 = arith.constant 0 : index
    %8 = vector.load %arg5[%c0_14, %c0_15, %c0_16] : memref<1x16x16xbf16, #tpu.memory_space<vmem>>, vector<1x16x16xbf16>
    %9 = vector.shape_cast %8 : vector<1x16x16xbf16> to vector<16x16xbf16>
    %c0_17 = arith.constant 0 : index
    %c0_18 = arith.constant 0 : index
    %c0_19 = arith.constant 0 : index
    %10 = vector.load %arg6[%c0_17, %c0_18, %c0_19] : memref<1x1x16xf32, #tpu.memory_space<vmem>>, vector<1x1x16xf32>
    %11 = vector.shape_cast %10 : vector<1x1x16xf32> to vector<1x16xf32>
    %12 = vector.broadcast %11 : vector<1x16xf32> to vector<8x16xf32>
    %13 = arith.addf %3, %12 : vector<8x16xf32>
    %14 = arith.truncf %13 : vector<8x16xf32> to vector<8x16xbf16>
    %c0_20 = arith.constant 0 : index
    %c0_21 = arith.constant 0 : index
    %c0_22 = arith.constant 0 : index
    %15 = vector.load %arg7[%c0_20, %c0_21, %c0_22] : memref<1x1x16xf32, #tpu.memory_space<vmem>>, vector<1x1x16xf32>
    %16 = vector.shape_cast %15 : vector<1x1x16xf32> to vector<1x16xf32>
    %17 = vector.broadcast %16 : vector<1x16xf32> to vector<8x16xf32>
    %18 = arith.addf %3, %17 : vector<8x16xf32>
    %19 = arith.truncf %18 : vector<8x16xf32> to vector<8x16xbf16>
    %cst = arith.constant dense<0.000000e+00> : vector<8x16xf32>
    %20 = tpu.matmul %14, %5, %cst {dimension_numbers = #tpu.dot_dimension_numbers<[1], [1], [0], [0], [0, 0, 1, 0], [], []>} : vector<8x16xbf16>, vector<16x16xbf16>, vector<8x16xf32> -> vector<8x16xf32>
    %cst_23 = arith.constant dense<0.000000e+00> : vector<8x16xf32>
    %21 = tpu.matmul %19, %9, %cst_23 {dimension_numbers = #tpu.dot_dimension_numbers<[1], [1], [0], [0], [0, 0, 1, 0], [], []>} : vector<8x16xbf16>, vector<16x16xbf16>, vector<8x16xf32> -> vector<8x16xf32>
    %22 = tpu.concatenate %21, %21 in 1 : vector<8x16xf32>, vector<8x16xf32> -> vector<8x32xf32>
    %23 = vector.extract_strided_slice %22 {offsets = [0, 7], sizes = [1, 16], strides = [1, 1]} : vector<8x32xf32> to vector<1x16xf32>
    %24 = vector.extract_strided_slice %22 {offsets = [1, 6], sizes = [1, 16], strides = [1, 1]} : vector<8x32xf32> to vector<1x16xf32>
    %25 = vector.extract_strided_slice %22 {offsets = [2, 5], sizes = [1, 16], strides = [1, 1]} : vector<8x32xf32> to vector<1x16xf32>
    %26 = vector.extract_strided_slice %22 {offsets = [3, 4], sizes = [1, 16], strides = [1, 1]} : vector<8x32xf32> to vector<1x16xf32>
    %27 = vector.extract_strided_slice %22 {offsets = [4, 3], sizes = [1, 16], strides = [1, 1]} : vector<8x32xf32> to vector<1x16xf32>
    %28 = vector.extract_strided_slice %22 {offsets = [5, 2], sizes = [1, 16], strides = [1, 1]} : vector<8x32xf32> to vector<1x16xf32>
    %29 = vector.extract_strided_slice %22 {offsets = [6, 1], sizes = [1, 16], strides = [1, 1]} : vector<8x32xf32> to vector<1x16xf32>
    %30 = vector.extract_strided_slice %22 {offsets = [7, 0], sizes = [1, 16], strides = [1, 1]} : vector<8x32xf32> to vector<1x16xf32>
    %31 = tpu.concatenate %23, %24, %25, %26, %27, %28, %29, %30 in 0 : vector<1x16xf32>, vector<1x16xf32>, vector<1x16xf32>, vector<1x16xf32>, vector<1x16xf32>, vector<1x16xf32>, vector<1x16xf32>, vector<1x16xf32> -> vector<8x16xf32>
    %32 = arith.addf %20, %31 : vector<8x16xf32>
    %cst_24 = arith.constant 2.500000e-01 : f32
    %33 = vector.broadcast %cst_24 : f32 to vector<8x16xf32>
    %34 = arith.mulf %32, %33 : vector<8x16xf32>
    %35 = tpu.iota {dimensions = array<i32: 0>} : vector<8x16xi32>
    %36 = tpu.iota {dimensions = array<i32: 1>} : vector<8x16xi32>
    %c8_i32 = arith.constant 8 : i32
    %37 = vector.broadcast %c8_i32 : i32 to vector<8x16xi32>
    %38 = arith.addi %35, %37 : vector<8x16xi32>
    %39 = arith.cmpi sgt, %36, %38 : vector<8x16xi32>
    %cst_25 = arith.constant -1.000000e+30 : f32
    %40 = vector.broadcast %cst_25 : f32 to vector<8x16xf32>
    %41 = arith.select %39, %40, %34 : vector<8x16xi1>, vector<8x16xf32>
    %cst_26 = arith.constant dense<0xFF800000> : vector<8xf32>
    %42 = vector.multi_reduction <maximumf>, %41, %cst_26 [1] : vector<8x16xf32> to vector<8xf32>
    %43 = vector.shape_cast %42 : vector<8xf32> to vector<8x1xf32>
    %44 = vector.broadcast %43 : vector<8x1xf32> to vector<8x16xf32>
    %45 = arith.subf %41, %44 : vector<8x16xf32>
    %46 = math.exp %45 : vector<8x16xf32>
    %cst_27 = arith.constant dense<0.000000e+00> : vector<8xf32>
    %47 = vector.multi_reduction <add>, %46, %cst_27 [1] : vector<8x16xf32> to vector<8xf32>
    %48 = vector.shape_cast %47 : vector<8xf32> to vector<8x1xf32>
    %49 = tpu.reciprocal %48 {approx = true} : vector<8x1xf32> -> vector<8x1xf32>
    %50 = vector.broadcast %49 : vector<8x1xf32> to vector<8x16xf32>
    %51 = arith.mulf %46, %50 : vector<8x16xf32>
    %52 = arith.truncf %51 : vector<8x16xf32> to vector<8x16xbf16>
    %cst_28 = arith.constant dense<0.000000e+00> : vector<8x16xf32>
    %53 = tpu.matmul %52, %7, %cst_28 {dimension_numbers = #tpu.dot_dimension_numbers<[1], [0], [0], [1], [0, 0, 1, 1], [], []>} : vector<8x16xbf16>, vector<16x16xbf16>, vector<8x16xf32> -> vector<8x16xf32>
    %54 = arith.truncf %53 : vector<8x16xf32> to vector<8x16xbf16>
    %c0_29 = arith.constant 0 : index
    %c0_30 = arith.constant 0 : index
    %c0_31 = arith.constant 0 : index
    %c0_32 = arith.constant 0 : index
    %55 = vector.load %arg8[%c0_29, %c0_30, %c0_31, %c0_32] : memref<1x1x8x16xbf16, #tpu.memory_space<vmem>>, vector<1x1x8x16xbf16>
    %56 = vector.shape_cast %55 : vector<1x1x8x16xbf16> to vector<8x16xbf16>
    %57 = vector.shape_cast %54 : vector<8x16xbf16> to vector<1x1x8x16xbf16>
    tpu.vector_store %arg8[%c0_29, %c0_30, %c0_31, %c0_32], %57 {strides = array<i32>} : memref<1x1x8x16xbf16, #tpu.memory_space<vmem>>, vector<1x1x8x16xbf16>,
    return
  }
  func.func @transform_0(%arg0: i32, %arg1: i32) -> (i32, i32, i32, i32, i32) {
    %c0_i32 = arith.constant 0 : i32
    %c0_i32_0 = arith.constant 0 : i32
    %c0_i32_1 = arith.constant 0 : i32
    %c0_i32_2 = arith.constant 0 : i32
    return %c0_i32, %arg1, %arg0, %c0_i32_0, %c0_i32_1 : i32, i32, i32, i32, i32
  }
  func.func @transform_1(%arg0: i32, %arg1: i32) -> (i32, i32, i32, i32, i32) {
    %c1_i32 = arith.constant 1 : i32
    %c0_i32 = arith.constant 0 : i32
    %c0_i32_0 = arith.constant 0 : i32
    %c0_i32_1 = arith.constant 0 : i32
    return %c1_i32, %arg1, %arg0, %c0_i32, %c0_i32_0 : i32, i32, i32, i32, i32
  }
  func.func @transform_2(%arg0: i32, %arg1: i32) -> (i32, i32, i32, i32, i32) {
    %c2_i32 = arith.constant 2 : i32
    %c0_i32 = arith.constant 0 : i32
    %c0_i32_0 = arith.constant 0 : i32
    %c0_i32_1 = arith.constant 0 : i32
    return %c2_i32, %arg1, %arg0, %c0_i32, %c0_i32_0 : i32, i32, i32, i32, i32
  }
  func.func @transform_3(%arg0: i32, %arg1: i32) -> (i32, i32, i32) {
    %c0_i32 = arith.constant 0 : i32
    %c0_i32_0 = arith.constant 0 : i32
    %c0_i32_1 = arith.constant 0 : i32
    return %arg1, %c0_i32, %c0_i32_0 : i32, i32, i32
  }
  func.func @transform_4(%arg0: i32, %arg1: i32) -> (i32, i32, i32) {
    %c0_i32 = arith.constant 0 : i32
    %c0_i32_0 = arith.constant 0 : i32
    %c0_i32_1 = arith.constant 0 : i32
    return %arg1, %c0_i32, %c0_i32_0 : i32, i32, i32
  }
  func.func @transform_5(%arg0: i32, %arg1: i32) -> (i32, i32, i32) {
    %c0_i32 = arith.constant 0 : i32
    %c0_i32_0 = arith.constant 0 : i32
    %c0_i32_1 = arith.constant 0 : i32
    return %arg1, %c0_i32, %c0_i32_0 : i32, i32, i32
  }
  func.func @transform_6(%arg0: i32, %arg1: i32) -> (i32, i32, i32, i32) {
    %c0_i32 = arith.constant 0 : i32
    %c0_i32_0 = arith.constant 0 : i32
    %c0_i32_1 = arith.constant 0 : i32
    return %arg0, %arg1, %c0_i32, %c0_i32_0 : i32, i32, i32, i32
  }
}

module attributes {stable_mosaic.version = 11 : i64} {
  func.func @_add_ln_kernel(%arg0: i32, %arg1: memref<16x32xf32, #tpu.memory_space<vmem>>, %arg2: memref<16x32xf32, #tpu.memory_space<vmem>>, %arg3: memref<1x32xf32, #tpu.memory_space<vmem>>, %arg4: memref<1x32xf32, #tpu.memory_space<vmem>>, %arg5: memref<16x32xf32, #tpu.memory_space<vmem>>) attributes {dimension_semantics = [#tpu.dimension_semantics<parallel>], iteration_bounds = array<i64: 1>, scalar_prefetch = 0 : i64, scratch_operands = 0 : i64, tpu.core_type = #tpu.core_type<tc>, window_params = [{transform_indices = @transform_0, window_bounds = array<i64: 16, 32>}, {transform_indices = @transform_1, window_bounds = array<i64: 16, 32>}, {pipeline_mode = #tpu.pipeline_mode<synchronous>, transform_indices = @transform_2, window_bounds = array<i64: 1, 32>}, {pipeline_mode = #tpu.pipeline_mode<synchronous>, transform_indices = @transform_3, window_bounds = array<i64: 1, 32>}, {transform_indices = @transform_4, window_bounds = array<i64: 16, 32>}]} {
    %c0 = arith.constant 0 : index
    %c0_0 = arith.constant 0 : index
    %0 = vector.load %arg1[%c0, %c0_0] : memref<16x32xf32, #tpu.memory_space<vmem>>, vector<16x32xf32>
    %c0_1 = arith.constant 0 : index
    %c0_2 = arith.constant 0 : index
    %1 = vector.load %arg2[%c0_1, %c0_2] : memref<16x32xf32, #tpu.memory_space<vmem>>, vector<16x32xf32>
    %2 = arith.addf %0, %1 : vector<16x32xf32>
    %cst = arith.constant dense<0.000000e+00> : vector<16xf32>
    %3 = vector.multi_reduction <add>, %2, %cst [1] : vector<16x32xf32> to vector<16xf32>
    %4 = vector.shape_cast %3 : vector<16xf32> to vector<16x1xf32>
    %cst_3 = arith.constant 3.200000e+01 : f32
    %5 = vector.broadcast %cst_3 : f32 to vector<16x1xf32>
    %6 = arith.divf %4, %5 : vector<16x1xf32>
    %7 = vector.broadcast %6 : vector<16x1xf32> to vector<16x32xf32>
    %8 = arith.subf %2, %7 : vector<16x32xf32>
    %9 = vector.broadcast %6 : vector<16x1xf32> to vector<16x32xf32>
    %10 = arith.subf %2, %9 : vector<16x32xf32>
    %11 = arith.mulf %8, %10 : vector<16x32xf32>
    %cst_4 = arith.constant dense<0.000000e+00> : vector<16xf32>
    %12 = vector.multi_reduction <add>, %11, %cst_4 [1] : vector<16x32xf32> to vector<16xf32>
    %13 = vector.shape_cast %12 : vector<16xf32> to vector<16x1xf32>
    %cst_5 = arith.constant 3.200000e+01 : f32
    %14 = vector.broadcast %cst_5 : f32 to vector<16x1xf32>
    %15 = arith.divf %13, %14 : vector<16x1xf32>
    %16 = vector.broadcast %6 : vector<16x1xf32> to vector<16x32xf32>
    %17 = arith.subf %2, %16 : vector<16x32xf32>
    %cst_6 = arith.constant 9.99999974E-6 : f32
    %18 = vector.broadcast %cst_6 : f32 to vector<16x1xf32>
    %19 = arith.addf %15, %18 : vector<16x1xf32>
    %20 = math.rsqrt %19 : vector<16x1xf32>
    %21 = vector.broadcast %20 : vector<16x1xf32> to vector<16x32xf32>
    %22 = arith.mulf %17, %21 : vector<16x32xf32>
    %c0_7 = arith.constant 0 : index
    %c0_8 = arith.constant 0 : index
    %23 = vector.load %arg3[%c0_7, %c0_8] : memref<1x32xf32, #tpu.memory_space<vmem>>, vector<1x32xf32>
    %24 = vector.broadcast %23 : vector<1x32xf32> to vector<16x32xf32>
    %25 = arith.mulf %22, %24 : vector<16x32xf32>
    %c0_9 = arith.constant 0 : index
    %c0_10 = arith.constant 0 : index
    %26 = vector.load %arg4[%c0_9, %c0_10] : memref<1x32xf32, #tpu.memory_space<vmem>>, vector<1x32xf32>
    %27 = vector.broadcast %26 : vector<1x32xf32> to vector<16x32xf32>
    %28 = arith.addf %25, %27 : vector<16x32xf32>
    %c0_11 = arith.constant 0 : index
    %c0_12 = arith.constant 0 : index
    %29 = vector.load %arg5[%c0_11, %c0_12] : memref<16x32xf32, #tpu.memory_space<vmem>>, vector<16x32xf32>
    tpu.vector_store %arg5[%c0_11, %c0_12], %28 {strides = array<i32>} : memref<16x32xf32, #tpu.memory_space<vmem>>, vector<16x32xf32>,
    return
  }
  func.func @transform_0(%arg0: i32) -> (i32, i32) {
    %c0_i32 = arith.constant 0 : i32
    %c0_i32_0 = arith.constant 0 : i32
    return %arg0, %c0_i32 : i32, i32
  }
  func.func @transform_1(%arg0: i32) -> (i32, i32) {
    %c0_i32 = arith.constant 0 : i32
    %c0_i32_0 = arith.constant 0 : i32
    return %arg0, %c0_i32 : i32, i32
  }
  func.func @transform_2(%arg0: i32) -> (i32, i32) {
    %c0_i32 = arith.constant 0 : i32
    %c0_i32_0 = arith.constant 0 : i32
    %c0_i32_1 = arith.constant 0 : i32
    return %c0_i32, %c0_i32_0 : i32, i32
  }
  func.func @transform_3(%arg0: i32) -> (i32, i32) {
    %c0_i32 = arith.constant 0 : i32
    %c0_i32_0 = arith.constant 0 : i32
    %c0_i32_1 = arith.constant 0 : i32
    return %c0_i32, %c0_i32_0 : i32, i32
  }
  func.func @transform_4(%arg0: i32) -> (i32, i32) {
    %c0_i32 = arith.constant 0 : i32
    %c0_i32_0 = arith.constant 0 : i32
    return %arg0, %c0_i32 : i32, i32
  }
}

module attributes {stable_mosaic.version = 11 : i64} {
  func.func @_mm_kernel(%arg0: i32, %arg1: i32, %arg2: i32, %arg3: memref<16x32xbf16, #tpu.memory_space<vmem>>, %arg4: memref<32x64xbf16, #tpu.memory_space<vmem>>, %arg5: memref<1x64xf32, #tpu.memory_space<vmem>>, %arg6: memref<16x64xbf16, #tpu.memory_space<vmem>>, %arg7: memref<16x64xf32, #tpu.memory_space<vmem>>) attributes {dimension_semantics = [#tpu.dimension_semantics<parallel>, #tpu.dimension_semantics<parallel>, #tpu.dimension_semantics<arbitrary>], iteration_bounds = array<i64: 1, 1, 1>, scalar_prefetch = 0 : i64, scratch_operands = 1 : i64, tpu.core_type = #tpu.core_type<tc>, window_params = [{transform_indices = @transform_0, window_bounds = array<i64: 16, 32>}, {transform_indices = @transform_1, window_bounds = array<i64: 32, 64>}, {transform_indices = @transform_2, window_bounds = array<i64: 1, 64>}, {transform_indices = @transform_3, window_bounds = array<i64: 16, 64>}]} {
    %c0_i32 = arith.constant 0 : i32
    %0 = arith.cmpi eq, %arg2, %c0_i32 : i32
    %1 = arith.extui %0 : i1 to i32
    %c0_i32_0 = arith.constant 0 : i32
    %2 = arith.cmpi ne, %1, %c0_i32_0 : i32
    scf.if %2 {
      %cst_10 = arith.constant 0.000000e+00 : f32
      %12 = vector.broadcast %cst_10 : f32 to vector<16x64xf32>
      %c0_11 = arith.constant 0 : index
      %c0_12 = arith.constant 0 : index
      %13 = vector.load %arg7[%c0_11, %c0_12] : memref<16x64xf32, #tpu.memory_space<vmem>>, vector<16x64xf32>
      tpu.vector_store %arg7[%c0_11, %c0_12], %12 {strides = array<i32>} : memref<16x64xf32, #tpu.memory_space<vmem>>, vector<16x64xf32>,
    } else {
    }
    %c0 = arith.constant 0 : index
    %c0_1 = arith.constant 0 : index
    %3 = vector.load %arg7[%c0, %c0_1] : memref<16x64xf32, #tpu.memory_space<vmem>>, vector<16x64xf32>
    %c0_2 = arith.constant 0 : index
    %c0_3 = arith.constant 0 : index
    %4 = vector.load %arg3[%c0_2, %c0_3] : memref<16x32xbf16, #tpu.memory_space<vmem>>, vector<16x32xbf16>
    %c0_4 = arith.constant 0 : index
    %c0_5 = arith.constant 0 : index
    %5 = vector.load %arg4[%c0_4, %c0_5] : memref<32x64xbf16, #tpu.memory_space<vmem>>, vector<32x64xbf16>
    %cst = arith.constant dense<0.000000e+00> : vector<16x64xf32>
    %6 = tpu.matmul %4, %5, %cst {dimension_numbers = #tpu.dot_dimension_numbers<[1], [0], [0], [1], [0, 0, 1, 1], [], []>} : vector<16x32xbf16>, vector<32x64xbf16>, vector<16x64xf32> -> vector<16x64xf32>
    %7 = arith.addf %3, %6 : vector<16x64xf32>
    %c0_6 = arith.constant 0 : index
    %c0_7 = arith.constant 0 : index
    %8 = vector.load %arg7[%c0_6, %c0_7] : memref<16x64xf32, #tpu.memory_space<vmem>>, vector<16x64xf32>
    tpu.vector_store %arg7[%c0_6, %c0_7], %7 {strides = array<i32>} : memref<16x64xf32, #tpu.memory_space<vmem>>, vector<16x64xf32>,
    %c0_i32_8 = arith.constant 0 : i32
    %9 = arith.cmpi eq, %arg2, %c0_i32_8 : i32
    %10 = arith.extui %9 : i1 to i32
    %c0_i32_9 = arith.constant 0 : i32
    %11 = arith.cmpi ne, %10, %c0_i32_9 : i32
    scf.if %11 {
      %c0_10 = arith.constant 0 : index
      %c0_11 = arith.constant 0 : index
      %12 = vector.load %arg7[%c0_10, %c0_11] : memref<16x64xf32, #tpu.memory_space<vmem>>, vector<16x64xf32>
      %c0_12 = arith.constant 0 : index
      %c0_13 = arith.constant 0 : index
      %13 = vector.load %arg5[%c0_12, %c0_13] : memref<1x64xf32, #tpu.memory_space<vmem>>, vector<1x64xf32>
      %14 = vector.broadcast %13 : vector<1x64xf32> to vector<16x64xf32>
      %15 = arith.addf %12, %14 : vector<16x64xf32>
      %cst_14 = arith.constant 0.000000e+00 : f32
      %16 = vector.broadcast %cst_14 : f32 to vector<16x64xf32>
      %17 = arith.maximumf %15, %16 : vector<16x64xf32>
      %18 = arith.truncf %17 : vector<16x64xf32> to vector<16x64xbf16>
      %c0_15 = arith.constant 0 : index
      %c0_16 = arith.constant 0 : index
      %19 = vector.load %arg6[%c0_15, %c0_16] : memref<16x64xbf16, #tpu.memory_space<vmem>>, vector<16x64xbf16>
      tpu.vector_store %arg6[%c0_15, %c0_16], %18 {strides = array<i32>} : memref<16x64xbf16, #tpu.memory_space<vmem>>, vector<16x64xbf16>,
    } else {
    }
    return
  }
  func.func @transform_0(%arg0: i32, %arg1: i32, %arg2: i32) -> (i32, i32) {
    %c0_i32 = arith.constant 0 : i32
    return %arg0, %arg2 : i32, i32
  }
  func.func @transform_1(%arg0: i32, %arg1: i32, %arg2: i32) -> (i32, i32) {
    %c0_i32 = arith.constant 0 : i32
    return %arg2, %arg1 : i32, i32
  }
  func.func @transform_2(%arg0: i32, %arg1: i32, %arg2: i32) -> (i32, i32) {
    %c0_i32 = arith.constant 0 : i32
    %c0_i32_0 = arith.constant 0 : i32
    return %c0_i32, %arg1 : i32, i32
  }
  func.func @transform_3(%arg0: i32, %arg1: i32, %arg2: i32) -> (i32, i32) {
    %c0_i32 = arith.constant 0 : i32
    return %arg0, %arg1 : i32, i32
  }
}

module attributes {stable_mosaic.version = 11 : i64} {
  func.func @_mm_kernel(%arg0: i32, %arg1: i32, %arg2: i32, %arg3: memref<16x64xbf16, #tpu.memory_space<vmem>>, %arg4: memref<64x32xbf16, #tpu.memory_space<vmem>>, %arg5: memref<1x32xf32, #tpu.memory_space<vmem>>, %arg6: memref<16x32xf32, #tpu.memory_space<vmem>>, %arg7: memref<16x32xf32, #tpu.memory_space<vmem>>) attributes {dimension_semantics = [#tpu.dimension_semantics<parallel>, #tpu.dimension_semantics<parallel>, #tpu.dimension_semantics<arbitrary>], iteration_bounds = array<i64: 1, 1, 1>, scalar_prefetch = 0 : i64, scratch_operands = 1 : i64, tpu.core_type = #tpu.core_type<tc>, window_params = [{transform_indices = @transform_0, window_bounds = array<i64: 16, 64>}, {transform_indices = @transform_1, window_bounds = array<i64: 64, 32>}, {transform_indices = @transform_2, window_bounds = array<i64: 1, 32>}, {transform_indices = @transform_3, window_bounds = array<i64: 16, 32>}]} {
    %c0_i32 = arith.constant 0 : i32
    %0 = arith.cmpi eq, %arg2, %c0_i32 : i32
    %1 = arith.extui %0 : i1 to i32
    %c0_i32_0 = arith.constant 0 : i32
    %2 = arith.cmpi ne, %1, %c0_i32_0 : i32
    scf.if %2 {
      %cst_10 = arith.constant 0.000000e+00 : f32
      %12 = vector.broadcast %cst_10 : f32 to vector<16x32xf32>
      %c0_11 = arith.constant 0 : index
      %c0_12 = arith.constant 0 : index
      %13 = vector.load %arg7[%c0_11, %c0_12] : memref<16x32xf32, #tpu.memory_space<vmem>>, vector<16x32xf32>
      tpu.vector_store %arg7[%c0_11, %c0_12], %12 {strides = array<i32>} : memref<16x32xf32, #tpu.memory_space<vmem>>, vector<16x32xf32>,
    } else {
    }
    %c0 = arith.constant 0 : index
    %c0_1 = arith.constant 0 : index
    %3 = vector.load %arg7[%c0, %c0_1] : memref<16x32xf32, #tpu.memory_space<vmem>>, vector<16x32xf32>
    %c0_2 = arith.constant 0 : index
    %c0_3 = arith.constant 0 : index
    %4 = vector.load %arg3[%c0_2, %c0_3] : memref<16x64xbf16, #tpu.memory_space<vmem>>, vector<16x64xbf16>
    %c0_4 = arith.constant 0 : index
    %c0_5 = arith.constant 0 : index
    %5 = vector.load %arg4[%c0_4, %c0_5] : memref<64x32xbf16, #tpu.memory_space<vmem>>, vector<64x32xbf16>
    %cst = arith.constant dense<0.000000e+00> : vector<16x32xf32>
    %6 = tpu.matmul %4, %5, %cst {dimension_numbers = #tpu.dot_dimension_numbers<[1], [0], [0], [1], [0, 0, 1, 1], [], []>} : vector<16x64xbf16>, vector<64x32xbf16>, vector<16x32xf32> -> vector<16x32xf32>
    %7 = arith.addf %3, %6 : vector<16x32xf32>
    %c0_6 = arith.constant 0 : index
    %c0_7 = arith.constant 0 : index
    %8 = vector.load %arg7[%c0_6, %c0_7] : memref<16x32xf32, #tpu.memory_space<vmem>>, vector<16x32xf32>
    tpu.vector_store %arg7[%c0_6, %c0_7], %7 {strides = array<i32>} : memref<16x32xf32, #tpu.memory_space<vmem>>, vector<16x32xf32>,
    %c0_i32_8 = arith.constant 0 : i32
    %9 = arith.cmpi eq, %arg2, %c0_i32_8 : i32
    %10 = arith.extui %9 : i1 to i32
    %c0_i32_9 = arith.constant 0 : i32
    %11 = arith.cmpi ne, %10, %c0_i32_9 : i32
    scf.if %11 {
      %c0_10 = arith.constant 0 : index
      %c0_11 = arith.constant 0 : index
      %12 = vector.load %arg7[%c0_10, %c0_11] : memref<16x32xf32, #tpu.memory_space<vmem>>, vector<16x32xf32>
      %c0_12 = arith.constant 0 : index
      %c0_13 = arith.constant 0 : index
      %13 = vector.load %arg5[%c0_12, %c0_13] : memref<1x32xf32, #tpu.memory_space<vmem>>, vector<1x32xf32>
      %14 = vector.broadcast %13 : vector<1x32xf32> to vector<16x32xf32>
      %15 = arith.addf %12, %14 : vector<16x32xf32>
      %c0_14 = arith.constant 0 : index
      %c0_15 = arith.constant 0 : index
      %16 = vector.load %arg6[%c0_14, %c0_15] : memref<16x32xf32, #tpu.memory_space<vmem>>, vector<16x32xf32>
      tpu.vector_store %arg6[%c0_14, %c0_15], %15 {strides = array<i32>} : memref<16x32xf32, #tpu.memory_space<vmem>>, vector<16x32xf32>,
    } else {
    }
    return
  }
  func.func @transform_0(%arg0: i32, %arg1: i32, %arg2: i32) -> (i32, i32) {
    %c0_i32 = arith.constant 0 : i32
    return %arg0, %arg2 : i32, i32
  }
  func.func @transform_1(%arg0: i32, %arg1: i32, %arg2: i32) -> (i32, i32) {
    %c0_i32 = arith.constant 0 : i32
    return %arg2, %arg1 : i32, i32
  }
  func.func @transform_2(%arg0: i32, %arg1: i32, %arg2: i32) -> (i32, i32) {
    %c0_i32 = arith.constant 0 : i32
    %c0_i32_0 = arith.constant 0 : i32
    return %c0_i32, %arg1 : i32, i32
  }
  func.func @transform_3(%arg0: i32, %arg1: i32, %arg2: i32) -> (i32, i32) {
    %c0_i32 = arith.constant 0 : i32
    return %arg0, %arg1 : i32, i32
  }
}

module attributes {stable_mosaic.version = 11 : i64} {
  func.func @_add_ln_kernel(%arg0: i32, %arg1: memref<16x32xf32, #tpu.memory_space<vmem>>, %arg2: memref<16x32xf32, #tpu.memory_space<vmem>>, %arg3: memref<1x32xf32, #tpu.memory_space<vmem>>, %arg4: memref<1x32xf32, #tpu.memory_space<vmem>>, %arg5: memref<16x32xf32, #tpu.memory_space<vmem>>) attributes {dimension_semantics = [#tpu.dimension_semantics<parallel>], iteration_bounds = array<i64: 1>, scalar_prefetch = 0 : i64, scratch_operands = 0 : i64, tpu.core_type = #tpu.core_type<tc>, window_params = [{transform_indices = @transform_0, window_bounds = array<i64: 16, 32>}, {transform_indices = @transform_1, window_bounds = array<i64: 16, 32>}, {pipeline_mode = #tpu.pipeline_mode<synchronous>, transform_indices = @transform_2, window_bounds = array<i64: 1, 32>}, {pipeline_mode = #tpu.pipeline_mode<synchronous>, transform_indices = @transform_3, window_bounds = array<i64: 1, 32>}, {transform_indices = @transform_4, window_bounds = array<i64: 16, 32>}]} {
    %c0 = arith.constant 0 : index
    %c0_0 = arith.constant 0 : index
    %0 = vector.load %arg1[%c0, %c0_0] : memref<16x32xf32, #tpu.memory_space<vmem>>, vector<16x32xf32>
    %c0_1 = arith.constant 0 : index
    %c0_2 = arith.constant 0 : index
    %1 = vector.load %arg2[%c0_1, %c0_2] : memref<16x32xf32, #tpu.memory_space<vmem>>, vector<16x32xf32>
    %2 = arith.addf %0, %1 : vector<16x32xf32>
    %cst = arith.constant dense<0.000000e+00> : vector<16xf32>
    %3 = vector.multi_reduction <add>, %2, %cst [1] : vector<16x32xf32> to vector<16xf32>
    %4 = vector.shape_cast %3 : vector<16xf32> to vector<16x1xf32>
    %cst_3 = arith.constant 3.200000e+01 : f32
    %5 = vector.broadcast %cst_3 : f32 to vector<16x1xf32>
    %6 = arith.divf %4, %5 : vector<16x1xf32>
    %7 = vector.broadcast %6 : vector<16x1xf32> to vector<16x32xf32>
    %8 = arith.subf %2, %7 : vector<16x32xf32>
    %9 = vector.broadcast %6 : vector<16x1xf32> to vector<16x32xf32>
    %10 = arith.subf %2, %9 : vector<16x32xf32>
    %11 = arith.mulf %8, %10 : vector<16x32xf32>
    %cst_4 = arith.constant dense<0.000000e+00> : vector<16xf32>
    %12 = vector.multi_reduction <add>, %11, %cst_4 [1] : vector<16x32xf32> to vector<16xf32>
    %13 = vector.shape_cast %12 : vector<16xf32> to vector<16x1xf32>
    %cst_5 = arith.constant 3.200000e+01 : f32
    %14 = vector.broadcast %cst_5 : f32 to vector<16x1xf32>
    %15 = arith.divf %13, %14 : vector<16x1xf32>
    %16 = vector.broadcast %6 : vector<16x1xf32> to vector<16x32xf32>
    %17 = arith.subf %2, %16 : vector<16x32xf32>
    %cst_6 = arith.constant 9.99999974E-6 : f32
    %18 = vector.broadcast %cst_6 : f32 to vector<16x1xf32>
    %19 = arith.addf %15, %18 : vector<16x1xf32>
    %20 = math.rsqrt %19 : vector<16x1xf32>
    %21 = vector.broadcast %20 : vector<16x1xf32> to vector<16x32xf32>
    %22 = arith.mulf %17, %21 : vector<16x32xf32>
    %c0_7 = arith.constant 0 : index
    %c0_8 = arith.constant 0 : index
    %23 = vector.load %arg3[%c0_7, %c0_8] : memref<1x32xf32, #tpu.memory_space<vmem>>, vector<1x32xf32>
    %24 = vector.broadcast %23 : vector<1x32xf32> to vector<16x32xf32>
    %25 = arith.mulf %22, %24 : vector<16x32xf32>
    %c0_9 = arith.constant 0 : index
    %c0_10 = arith.constant 0 : index
    %26 = vector.load %arg4[%c0_9, %c0_10] : memref<1x32xf32, #tpu.memory_space<vmem>>, vector<1x32xf32>
    %27 = vector.broadcast %26 : vector<1x32xf32> to vector<16x32xf32>
    %28 = arith.addf %25, %27 : vector<16x32xf32>
    %c0_11 = arith.constant 0 : index
    %c0_12 = arith.constant 0 : index
    %29 = vector.load %arg5[%c0_11, %c0_12] : memref<16x32xf32, #tpu.memory_space<vmem>>, vector<16x32xf32>
    tpu.vector_store %arg5[%c0_11, %c0_12], %28 {strides = array<i32>} : memref<16x32xf32, #tpu.memory_space<vmem>>, vector<16x32xf32>,
    return
  }
  func.func @transform_0(%arg0: i32) -> (i32, i32) {
    %c0_i32 = arith.constant 0 : i32
    %c0_i32_0 = arith.constant 0 : i32
    return %arg0, %c0_i32 : i32, i32
  }
  func.func @transform_1(%arg0: i32) -> (i32, i32) {
    %c0_i32 = arith.constant 0 : i32
    %c0_i32_0 = arith.constant 0 : i32
    return %arg0, %c0_i32 : i32, i32
  }
  func.func @transform_2(%arg0: i32) -> (i32, i32) {
    %c0_i32 = arith.constant 0 : i32
    %c0_i32_0 = arith.constant 0 : i32
    %c0_i32_1 = arith.constant 0 : i32
    return %c0_i32, %c0_i32_0 : i32, i32
  }
  func.func @transform_3(%arg0: i32) -> (i32, i32) {
    %c0_i32 = arith.constant 0 : i32
    %c0_i32_0 = arith.constant 0 : i32
    %c0_i32_1 = arith.constant 0 : i32
    return %c0_i32, %c0_i32_0 : i32, i32
  }
  func.func @transform_4(%arg0: i32) -> (i32, i32) {
    %c0_i32 = arith.constant 0 : i32
    %c0_i32_0 = arith.constant 0 : i32
    return %arg0, %c0_i32 : i32, i32
  }
}

module attributes {stable_mosaic.version = 11 : i64} {
  func.func @_fnet_kernel(%arg0: i32, %arg1: memref<1x16x32xbf16, #tpu.memory_space<vmem>>, %arg2: memref<32x64xbf16, #tpu.memory_space<vmem>>, %arg3: memref<8x32xbf16, #tpu.memory_space<vmem>>, %arg4: memref<1x8x32xbf16, #tpu.memory_space<vmem>>) attributes {dimension_semantics = [#tpu.dimension_semantics<parallel>], iteration_bounds = array<i64: 2>, scalar_prefetch = 0 : i64, scratch_operands = 0 : i64, tpu.core_type = #tpu.core_type<tc>, window_params = [{transform_indices = @transform_0, window_bounds = array<i64: 1, 16, 32>}, {pipeline_mode = #tpu.pipeline_mode<synchronous>, transform_indices = @transform_1, window_bounds = array<i64: 32, 64>}, {pipeline_mode = #tpu.pipeline_mode<synchronous>, transform_indices = @transform_2, window_bounds = array<i64: 8, 32>}, {transform_indices = @transform_3, window_bounds = array<i64: 1, 8, 32>}]} {
    %c0 = arith.constant 0 : index
    %c0_0 = arith.constant 0 : index
    %c0_1 = arith.constant 0 : index
    %0 = vector.load %arg1[%c0, %c0_0, %c0_1] : memref<1x16x32xbf16, #tpu.memory_space<vmem>>, vector<1x16x32xbf16>
    %1 = vector.shape_cast %0 : vector<1x16x32xbf16> to vector<16x32xbf16>
    %c0_2 = arith.constant 0 : index
    %c0_3 = arith.constant 0 : index
    %2 = vector.load %arg2[%c0_2, %c0_3] : memref<32x64xbf16, #tpu.memory_space<vmem>>, vector<32x64xbf16>
    %cst = arith.constant dense<0.000000e+00> : vector<16x64xf32>
    %3 = tpu.matmul %1, %2, %cst {dimension_numbers = #tpu.dot_dimension_numbers<[1], [0], [0], [1], [0, 0, 1, 1], [], []>} : vector<16x32xbf16>, vector<32x64xbf16>, vector<16x64xf32> -> vector<16x64xf32>
    %4 = vector.extract_strided_slice %3 {offsets = [0, 0], sizes = [16, 32], strides = [1, 1]} : vector<16x64xf32> to vector<16x32xf32>
    %5 = vector.extract_strided_slice %3 {offsets = [0, 32], sizes = [16, 32], strides = [1, 1]} : vector<16x64xf32> to vector<16x32xf32>
    %6 = tpu.concatenate %4, %5 in 0 : vector<16x32xf32>, vector<16x32xf32> -> vector<32x32xf32>
    %7 = arith.truncf %6 : vector<32x32xf32> to vector<32x32xbf16>
    %c0_4 = arith.constant 0 : index
    %c0_5 = arith.constant 0 : index
    %8 = vector.load %arg3[%c0_4, %c0_5] : memref<8x32xbf16, #tpu.memory_space<vmem>>, vector<8x32xbf16>
    %cst_6 = arith.constant dense<0.000000e+00> : vector<8x32xf32>
    %9 = tpu.matmul %8, %7, %cst_6 {dimension_numbers = #tpu.dot_dimension_numbers<[1], [0], [0], [1], [0, 0, 1, 1], [], []>} : vector<8x32xbf16>, vector<32x32xbf16>, vector<8x32xf32> -> vector<8x32xf32>
    %10 = arith.truncf %9 : vector<8x32xf32> to vector<8x32xbf16>
    %c0_7 = arith.constant 0 : index
    %c0_8 = arith.constant 0 : index
    %c0_9 = arith.constant 0 : index
    %11 = vector.load %arg4[%c0_7, %c0_8, %c0_9] : memref<1x8x32xbf16, #tpu.memory_space<vmem>>, vector<1x8x32xbf16>
    %12 = vector.shape_cast %11 : vector<1x8x32xbf16> to vector<8x32xbf16>
    %13 = vector.shape_cast %10 : vector<8x32xbf16> to vector<1x8x32xbf16>
    tpu.vector_store %arg4[%c0_7, %c0_8, %c0_9], %13 {strides = array<i32>} : memref<1x8x32xbf16, #tpu.memory_space<vmem>>, vector<1x8x32xbf16>,
    return
  }
  func.func @transform_0(%arg0: i32) -> (i32, i32, i32) {
    %c0_i32 = arith.constant 0 : i32
    %c0_i32_0 = arith.constant 0 : i32
    %c0_i32_1 = arith.constant 0 : i32
    return %arg0, %c0_i32, %c0_i32_0 : i32, i32, i32
  }
  func.func @transform_1(%arg0: i32) -> (i32, i32) {
    %c0_i32 = arith.constant 0 : i32
    %c0_i32_0 = arith.constant 0 : i32
    %c0_i32_1 = arith.constant 0 : i32
    return %c0_i32, %c0_i32_0 : i32, i32
  }
  func.func @transform_2(%arg0: i32) -> (i32, i32) {
    %c0_i32 = arith.constant 0 : i32
    %c0_i32_0 = arith.constant 0 : i32
    %c0_i32_1 = arith.constant 0 : i32
    return %c0_i32, %c0_i32_0 : i32, i32
  }
  func.func @transform_3(%arg0: i32) -> (i32, i32, i32) {
    %c0_i32 = arith.constant 0 : i32
    %c0_i32_0 = arith.constant 0 : i32
    %c0_i32_1 = arith.constant 0 : i32
    return %arg0, %c0_i32, %c0_i32_0 : i32, i32, i32
  }
}

module attributes {stable_mosaic.version = 11 : i64} {
  func.func @_add_ln_kernel(%arg0: i32, %arg1: memref<16x32xbf16, #tpu.memory_space<vmem>>, %arg2: memref<16x32xf32, #tpu.memory_space<vmem>>, %arg3: memref<1x32xf32, #tpu.memory_space<vmem>>, %arg4: memref<1x32xf32, #tpu.memory_space<vmem>>, %arg5: memref<16x32xf32, #tpu.memory_space<vmem>>) attributes {dimension_semantics = [#tpu.dimension_semantics<parallel>], iteration_bounds = array<i64: 1>, scalar_prefetch = 0 : i64, scratch_operands = 0 : i64, tpu.core_type = #tpu.core_type<tc>, window_params = [{transform_indices = @transform_0, window_bounds = array<i64: 16, 32>}, {transform_indices = @transform_1, window_bounds = array<i64: 16, 32>}, {pipeline_mode = #tpu.pipeline_mode<synchronous>, transform_indices = @transform_2, window_bounds = array<i64: 1, 32>}, {pipeline_mode = #tpu.pipeline_mode<synchronous>, transform_indices = @transform_3, window_bounds = array<i64: 1, 32>}, {transform_indices = @transform_4, window_bounds = array<i64: 16, 32>}]} {
    %c0 = arith.constant 0 : index
    %c0_0 = arith.constant 0 : index
    %0 = vector.load %arg1[%c0, %c0_0] : memref<16x32xbf16, #tpu.memory_space<vmem>>, vector<16x32xbf16>
    %1 = arith.extf %0 : vector<16x32xbf16> to vector<16x32xf32>
    %c0_1 = arith.constant 0 : index
    %c0_2 = arith.constant 0 : index
    %2 = vector.load %arg2[%c0_1, %c0_2] : memref<16x32xf32, #tpu.memory_space<vmem>>, vector<16x32xf32>
    %3 = arith.addf %1, %2 : vector<16x32xf32>
    %cst = arith.constant dense<0.000000e+00> : vector<16xf32>
    %4 = vector.multi_reduction <add>, %3, %cst [1] : vector<16x32xf32> to vector<16xf32>
    %5 = vector.shape_cast %4 : vector<16xf32> to vector<16x1xf32>
    %cst_3 = arith.constant 3.200000e+01 : f32
    %6 = vector.broadcast %cst_3 : f32 to vector<16x1xf32>
    %7 = arith.divf %5, %6 : vector<16x1xf32>
    %8 = vector.broadcast %7 : vector<16x1xf32> to vector<16x32xf32>
    %9 = arith.subf %3, %8 : vector<16x32xf32>
    %10 = vector.broadcast %7 : vector<16x1xf32> to vector<16x32xf32>
    %11 = arith.subf %3, %10 : vector<16x32xf32>
    %12 = arith.mulf %9, %11 : vector<16x32xf32>
    %cst_4 = arith.constant dense<0.000000e+00> : vector<16xf32>
    %13 = vector.multi_reduction <add>, %12, %cst_4 [1] : vector<16x32xf32> to vector<16xf32>
    %14 = vector.shape_cast %13 : vector<16xf32> to vector<16x1xf32>
    %cst_5 = arith.constant 3.200000e+01 : f32
    %15 = vector.broadcast %cst_5 : f32 to vector<16x1xf32>
    %16 = arith.divf %14, %15 : vector<16x1xf32>
    %17 = vector.broadcast %7 : vector<16x1xf32> to vector<16x32xf32>
    %18 = arith.subf %3, %17 : vector<16x32xf32>
    %cst_6 = arith.constant 9.99999974E-6 : f32
    %19 = vector.broadcast %cst_6 : f32 to vector<16x1xf32>
    %20 = arith.addf %16, %19 : vector<16x1xf32>
    %21 = math.rsqrt %20 : vector<16x1xf32>
    %22 = vector.broadcast %21 : vector<16x1xf32> to vector<16x32xf32>
    %23 = arith.mulf %18, %22 : vector<16x32xf32>
    %c0_7 = arith.constant 0 : index
    %c0_8 = arith.constant 0 : index
    %24 = vector.load %arg3[%c0_7, %c0_8] : memref<1x32xf32, #tpu.memory_space<vmem>>, vector<1x32xf32>
    %25 = vector.broadcast %24 : vector<1x32xf32> to vector<16x32xf32>
    %26 = arith.mulf %23, %25 : vector<16x32xf32>
    %c0_9 = arith.constant 0 : index
    %c0_10 = arith.constant 0 : index
    %27 = vector.load %arg4[%c0_9, %c0_10] : memref<1x32xf32, #tpu.memory_space<vmem>>, vector<1x32xf32>
    %28 = vector.broadcast %27 : vector<1x32xf32> to vector<16x32xf32>
    %29 = arith.addf %26, %28 : vector<16x32xf32>
    %c0_11 = arith.constant 0 : index
    %c0_12 = arith.constant 0 : index
    %30 = vector.load %arg5[%c0_11, %c0_12] : memref<16x32xf32, #tpu.memory_space<vmem>>, vector<16x32xf32>
    tpu.vector_store %arg5[%c0_11, %c0_12], %29 {strides = array<i32>} : memref<16x32xf32, #tpu.memory_space<vmem>>, vector<16x32xf32>,
    return
  }
  func.func @transform_0(%arg0: i32) -> (i32, i32) {
    %c0_i32 = arith.constant 0 : i32
    %c0_i32_0 = arith.constant 0 : i32
    return %arg0, %c0_i32 : i32, i32
  }
  func.func @transform_1(%arg0: i32) -> (i32, i32) {
    %c0_i32 = arith.constant 0 : i32
    %c0_i32_0 = arith.constant 0 : i32
    return %arg0, %c0_i32 : i32, i32
  }
  func.func @transform_2(%arg0: i32) -> (i32, i32) {
    %c0_i32 = arith.constant 0 : i32
    %c0_i32_0 = arith.constant 0 : i32
    %c0_i32_1 = arith.constant 0 : i32
    return %c0_i32, %c0_i32_0 : i32, i32
  }
  func.func @transform_3(%arg0: i32) -> (i32, i32) {
    %c0_i32 = arith.constant 0 : i32
    %c0_i32_0 = arith.constant 0 : i32
    %c0_i32_1 = arith.constant 0 : i32
    return %c0_i32, %c0_i32_0 : i32, i32
  }
  func.func @transform_4(%arg0: i32) -> (i32, i32) {
    %c0_i32 = arith.constant 0 : i32
    %c0_i32_0 = arith.constant 0 : i32
    return %arg0, %c0_i32 : i32, i32
  }
}

</mosaic_0001>

<llo_original>
// kernel: _forward.29
$region0: #{_forward.29}
  #allocation0 [shape = 'u32[]', space=smem, size = 0x4, offset = 0x4, fixed_abs, tag = 'smem constant byte address 0x4 - core index']
  #allocation1 [shape = 'u32[72,128]{1,0:T(1,128)}', space=vmem, size = 0x9000, scoped, tag = 'internal scratch']
  %s0 = inlined_call_operand.vmem [shape: bf16[2,2,8,16], index: 0, kind: input, shape index: {}]
  %s1 = inlined_call_operand.vmem [shape: bf16[2,16,32], index: 1, kind: input, shape index: {}]
  %s2 = inlined_call_operand.vmem [shape: f32[2,8,32], index: 2, kind: output, shape index: {}]
  %s3 = sld [smem:[#allocation0]]
  $region45: #{_forward.29} parent=0
    _
  %s5 = ssub.s32 1, %s3
  %s6 = scalar_select 0, %s5, %s3
  loop: start=0, step=1, limit=6
  $region2: #{_forward.29} parent=0 // loop_pre_header
    _
  $region3: #{_forward.29} parent=0 // loop_header
    %s8 = sphi 0, %s12
    %p9 = scmp.ge.s32.totalorder %s8, 6
    %s15 = sphi 0, %s27
    %s16 = sphi 0, %s23
    %s17 = sphi 0, %s15
    %s18 = sphi 0, %s16
    %s19 = sphi 0, %s17
    %s20 = sphi 0, %s18
    %s32 = sphi 0, %s34
    %s35 = sphi 0, %s32
    %s36 = sphi 0, %s35
    %s52 = sphi 0, %s36
    %s58 = sphi 0, %s60
    %s61 = sphi 0, %s58
    %s62 = sphi 0, %s61
    %s78 = sphi 0, %s62
    %s84 = sphi 0, %s86
    %s87 = sphi 0, %s84
    %s88 = sphi 0, %s87
    %s104 = sphi 0, %s88
  $region4: #{_forward.29} parent=0 // loop_header_branch
    %11 = sbr.rel (%p9) target = $region8
  $region5: #{_forward.29} parent=0 // loop_body
    %s13 = ssub.s32 %s8, 1
    %s14 = ssub.s32 %s8, 2
    %s21 = sadd.s32 1, %s16
    %p22 = scmp.ge.s32.totalorder %s21, 2
    %s23 = scalar_select %p22, 0, %s21
    %s24 = sadd.s32 1, %s15
    %s25 = scalar_select %p22, %s24, %s15
    %p26 = scmp.ge.s32.totalorder %s25, 2
    %s27 = scalar_select %p26, 0, %s25
    %s28 = ssub.s32 %s15, %s27
    %s29 = ssub.s32 %s16, %s23
    %s30 = sor.u32 %s28, %s29
    %p31 = scmp.eq.s32.totalorder %s30, 0
    %s33 = sadd.s32 %s32, 1
    %s34 = scalar_select %p31, %s32, %s33
    %p37 = pneg %p31
    %p38 = scmp.eq.s32.totalorder %s8, 3
    %p39 = por %p37, %p38
    %p40 = scmp.ne.s32.totalorder %s32, %s35
    %p41 = scmp.eq.s32.totalorder %s8, 0
    %p42 = por %p40, %p41
    %p43 = scmp.ne.s32.totalorder %s32, %s35
    %p44 = scmp.eq.s32.totalorder %s13, 3
    %p45 = por %p43, %p44
    %p46 = scmp.ne.s32.totalorder %s35, %s36
    %p47 = scmp.eq.s32.totalorder %s13, 0
    %p48 = por %p46, %p47
    %p49 = scmp.ne.s32.totalorder %s35, %s36
    %p50 = scmp.eq.s32.totalorder %s14, 3
    %p51 = por %p49, %p50
    %p53 = scmp.ne.s32.totalorder %s36, %s52
    %p54 = scmp.eq.s32.totalorder %s14, 0
    %p55 = por %p53, %p54
    %s56 = ssub.s32 %s16, %s23
    %p57 = scmp.eq.s32.totalorder %s56, 0
    %s59 = sadd.s32 %s58, 1
    %s60 = scalar_select %p57, %s58, %s59
    %p63 = pneg %p57
    %p64 = scmp.eq.s32.totalorder %s8, 3
    %p65 = por %p63, %p64
    %p66 = scmp.ne.s32.totalorder %s58, %s61
    %p67 = scmp.eq.s32.totalorder %s8, 0
    %p68 = por %p66, %p67
    %p69 = scmp.ne.s32.totalorder %s58, %s61
    %p70 = scmp.eq.s32.totalorder %s13, 3
    %p71 = por %p69, %p70
    %p72 = scmp.ne.s32.totalorder %s61, %s62
    %p73 = scmp.eq.s32.totalorder %s13, 0
    %p74 = por %p72, %p73
    %p75 = scmp.ne.s32.totalorder %s61, %s62
    %p76 = scmp.eq.s32.totalorder %s14, 3
    %p77 = por %p75, %p76
    %p79 = scmp.ne.s32.totalorder %s62, %s78
    %p80 = scmp.eq.s32.totalorder %s14, 0
    %p81 = por %p79, %p80
    %s82 = ssub.s32 %s15, %s27
    %p83 = scmp.eq.s32.totalorder %s82, 0
    %s85 = sadd.s32 %s84, 1
    %s86 = scalar_select %p83, %s84, %s85
    %p89 = pneg %p83
    %p90 = scmp.eq.s32.totalorder %s8, 3
    %p91 = por %p89, %p90
    %p92 = scmp.ne.s32.totalorder %s84, %s87
    %p93 = scmp.eq.s32.totalorder %s8, 0
    %p94 = por %p92, %p93
    %p95 = scmp.ne.s32.totalorder %s84, %s87
    %p96 = scmp.eq.s32.totalorder %s13, 3
    %p97 = por %p95, %p96
    %p98 = scmp.ne.s32.totalorder %s87, %s88
    %p99 = scmp.eq.s32.totalorder %s13, 0
    %p100 = por %p98, %p99
    %p101 = scmp.ne.s32.totalorder %s87, %s88
    %p102 = scmp.eq.s32.totalorder %s14, 3
    %p103 = por %p101, %p102
    %p105 = scmp.ne.s32.totalorder %s88, %s104
    %p106 = scmp.eq.s32.totalorder %s14, 0
    %p107 = por %p105, %p106
    %p108 = scmp.le.s32.totalorder 1, %s8
    %p109 = scmp.lt.s32.totalorder %s8, 5
    %p110 = pnand %p108, %p109
    %p111 = pneg %p110
    // Predicated region
    $region9: #{_forward.29} parent=5 // pred_check
      _
    $region10: #{_forward.29} parent=5 // pred_check_branch
      %113 = sbr.rel (%p110) target = $region12
    $region11: #{_forward.29} parent=5 // pred_region
      %s114 = ssub.s32 %s8, 1
    $region12: #{_forward.29} parent=5 // pred_fallthru
      _
    %p115 = scmp.lt.s32.totalorder %s8, 4
    // Predicated region
    $region13: #{_forward.29} parent=5 // pred_check
      %p116 = pneg %p115
    $region14: #{_forward.29} parent=5 // pred_check_branch
      %118 = sbr.rel (%p116) target = $region16
    $region15: #{_forward.29} parent=5 // pred_region
      // Predicated region
      $region17: #{_forward.29} parent=15 // pred_check
        %p119 = pneg %p42
      $region18: #{_forward.29} parent=15 // pred_check_branch
        %121 = sbr.rel (%p119) target = $region20
      $region19: #{_forward.29} parent=15 // pred_region
        %p122 = scmp.lt.s32.totalorder %s15, 1
        %s123 = scalar_select %p122, %s15, 1
        %p124 = scmp.lt.s32.totalorder %s16, 1
        %s125 = scalar_select %p124, %s16, 1
        %s126 = smul.addr %s123, 2
        %s127 = sadd.s32 %s125, %s126
        %s128 = smul.addr %s127, 4
        %s129 = scalar_lea.vmem %s0, %s128
      $region20: #{_forward.29} parent=15 // pred_fallthru
        _
      // Predicated region
      $region21: #{_forward.29} parent=15 // pred_check
        %p130 = pneg %p68
      $region22: #{_forward.29} parent=15 // pred_check_branch
        %132 = sbr.rel (%p130) target = $region24
      $region23: #{_forward.29} parent=15 // pred_region
        %p133 = scmp.lt.s32.totalorder %s16, 1
        %s134 = scalar_select %p133, %s16, 1
        %s135 = smul.addr %s134, 2
        %s136 = smul.addr %s135, 4
        %s137 = scalar_lea.vmem %s1, %s136
      $region24: #{_forward.29} parent=15 // pred_fallthru
        _
    $region16: #{_forward.29} parent=5 // pred_fallthru
      _
    %p138 = scmp.le.s32.totalorder 1, %s8
    %p139 = scmp.lt.s32.totalorder %s8, 5
    %p140 = pnand %p138, %p139
    %p141 = pneg %p140
    // Predicated region
    $region25: #{_forward.29} parent=5 // pred_check
      _
    $region26: #{_forward.29} parent=5 // pred_check_branch
      %143 = sbr.rel (%p140) target = $region28
    $region27: #{_forward.29} parent=5 // pred_region
      %s144 = ssub.s32 %s8, 1
      %p145 = scmp.lt.s32.totalorder %s17, 1
      %s146 = scalar_select %p145, %s17, 1
      %p147 = scmp.lt.s32.totalorder %s18, 1
      %s148 = scalar_select %p147, %s18, 1
      %s149 = smul.addr %s146, 2
      %s150 = sadd.s32 %s148, %s149
      %s151 = smul.addr %s150, 4
      %s152 = scalar_lea.vmem %s0, %s151
      %p153 = pneg %p48
      %p154 = pneg %p45
      %p155 = scmp.lt.s32.totalorder %s18, 1
      %s156 = scalar_select %p155, %s18, 1
      %s157 = smul.addr %s156, 2
      %s158 = smul.addr %s157, 4
      %s159 = scalar_lea.vmem %s1, %s158
      %p160 = pneg %p74
      %p161 = pneg %p71
      %p162 = pneg %p100
      %p163 = pneg %p97
      %p164 = scmp.lt.s32.totalorder %s17, 1
      %s165 = scalar_select %p164, %s17, 1
      %s166 = smul.addr %s165, 8
      %s167 = scalar_lea.vmem %s2, %s166
      %p168 = scmp.lt.s32.totalorder %s17, 1
      %s169 = scalar_select %p168, %s17, 1
      %p170 = scmp.lt.s32.totalorder %s18, 1
      %s171 = scalar_select %p170, %s18, 1
      %s172 = smul.addr %s169, 2
      %s173 = sadd.s32 %s171, %s172
      %s174 = smul.addr %s173, 4
      %s175 = scalar_lea.vmem %s0, %s174
      %p176 = scmp.lt.s32.totalorder %s18, 1
      %s177 = scalar_select %p176, %s18, 1
      %s178 = smul.addr %s177, 2
      %s179 = smul.addr %s178, 4
      %s180 = scalar_lea.vmem %s1, %s179
      %p181 = scmp.lt.s32.totalorder %s17, 1
      %s182 = scalar_select %p181, %s17, 1
      %s183 = smul.addr %s182, 8
      %s184 = scalar_lea.vmem %s2, %s183
      %p186 = scmp.eq.s32.totalorder %s18, 0
      // Predicated region
      $region29: #{_forward.29} parent=27 // pred_check
        %p187 = pneg %p186
      $region30: #{_forward.29} parent=27 // pred_check_branch
        %189 = sbr.rel (%p187) target = $region32
      $region31: #{_forward.29} parent=27 // pred_region
        %vm190 = vcmask 261120
        %191 = vst.msk [vmem:[%s184] sm:$0xff] %vm190, 0.0
      $region32: #{_forward.29} parent=27 // pred_fallthru
        _
      %v192 = vld [vmem:[%s184] sm:$0xff]
      %v193 = vld [vmem:[%s175] sm:$0xf]
      %v194 = vld [vmem:[%s180] sm:$0xf]
      %v195 = vld [vmem:[%s180 + $0x4] sm:$0xf]
      %v198 = vunpack.c.l.b16 %v194
      %v199 = vunpack.c.l.b16 %v195
      %v200 = vpack.c.b16 %v199, %v198
      %vm202 = vcmask 130048
      %v204 = vsel %vm202, %v193, 0
      %206 = vmatpush.bf16.msra.mxu0 0
      %207 = vmatpush.bf16.msra.mxu0 0
      %208 = vmatpush.bf16.msra.mxu0 0
      %209 = vmatpush.bf16.msra.mxu0 0
      %210 = vmatpush.bf16.msra.mxu0 0
      %211 = vmatpush.bf16.msra.mxu0 0
      %212 = vmatpush.bf16.msra.mxu0 0
      %213 = vmatpush.bf16.msra.mxu0 %v200
      %214 = vmatmul.bf16.gmra.mxu0 %v204
      %v215 = vpop.f32.mrf.mxu0
      %v216 = vadd.f32 0.0, %v215
      %v217 = vpop.f32.mrf.mxu0
      %218 = vdwg.mxu0
      %v219 = vadd.f32 %v192, %v216
      %vm220 = vcmask 261120
      %221 = vst.msk [vmem:[%s184] sm:$0xff] %vm220, %v219
      %p222 = scmp.lt.s32.totalorder %s17, 1
      %s223 = scalar_select %p222, %s17, 1
      %s224 = smul.addr %s223, 8
      %s225 = scalar_lea.vmem %s2, %s224
      // Predicated region
      $region33: #{_forward.29} parent=27 // pred_check
        %p226 = pneg %p97
      $region34: #{_forward.29} parent=27 // pred_check_branch
        %228 = sbr.rel (%p226) target = $region36
      $region35: #{_forward.29} parent=27 // pred_region
        _
      $region36: #{_forward.29} parent=27 // pred_fallthru
        _
    $region28: #{_forward.29} parent=5 // pred_fallthru
      _
    %p229 = scmp.le.s32.totalorder 2, %s8
    // Predicated region
    $region37: #{_forward.29} parent=5 // pred_check
      %p230 = pneg %p229
    $region38: #{_forward.29} parent=5 // pred_check_branch
      %232 = sbr.rel (%p230) target = $region40
    $region39: #{_forward.29} parent=5 // pred_region
      %s233 = ssub.s32 %s8, 2
      // Predicated region
      $region41: #{_forward.29} parent=39 // pred_check
        %p234 = pneg %p103
      $region42: #{_forward.29} parent=39 // pred_check_branch
        %236 = sbr.rel (%p234) target = $region44
      $region43: #{_forward.29} parent=39 // pred_region
        %p237 = scmp.lt.s32.totalorder %s19, 1
        %s238 = scalar_select %p237, %s19, 1
        %s239 = smul.addr %s238, 8
        %s240 = scalar_lea.vmem %s2, %s239
      $region44: #{_forward.29} parent=39 // pred_fallthru
        _
    $region40: #{_forward.29} parent=5 // pred_fallthru
      _
  $region6: #{_forward.29} parent=0 // loop_footer
    %s12 = sadd.s32 1, %s8
  $region7: #{_forward.29} parent=0 // loop_footer_branch
    %7 = sbr.rel target = $region3
  $region8: #{_forward.29} parent=0 // loop_exit
    _

// kernel: _forward.27
$region0: #{_forward.27}
  #allocation0 [shape = 'u32[]', space=smem, size = 0x4, offset = 0x4, fixed_abs, tag = 'smem constant byte address 0x4 - core index']
  #allocation1 [shape = 'u32[72,128]{1,0:T(1,128)}', space=vmem, size = 0x9000, scoped, tag = 'internal scratch']
  %s0 = inlined_call_operand.vmem [shape: bf16[16,32], index: 0, kind: input, shape index: {}]
  %s1 = inlined_call_operand.vmem [shape: bf16[2,32,16], index: 1, kind: input, shape index: {}]
  %s2 = inlined_call_operand.vmem [shape: bf16[2,16,16], index: 2, kind: output, shape index: {}]
  %s3 = sld [smem:[#allocation0]]
  $region41: #{_forward.27} parent=0
    _
  %s5 = ssub.s32 1, %s3
  %s6 = scalar_select 0, %s5, %s3
  loop: start=0, step=1, limit=4
  $region2: #{_forward.27} parent=0 // loop_pre_header
    _
  $region3: #{_forward.27} parent=0 // loop_header
    %s8 = sphi 0, %s12
    %p9 = scmp.ge.s32.totalorder %s8, 4
    %s16 = sphi 0, %s16
    %s18 = sphi 0, %s16
    %s19 = sphi 0, %s18
    %s33 = sphi 0, %s19
    %s39 = sphi 0, %s41
    %s42 = sphi 0, %s39
    %s43 = sphi 0, %s42
    %s59 = sphi 0, %s43
    %s65 = sphi 0, %s67
    %s68 = sphi 0, %s65
    %s69 = sphi 0, %s68
    %s85 = sphi 0, %s69
  $region4: #{_forward.27} parent=0 // loop_header_branch
    %11 = sbr.rel (%p9) target = $region8
  $region5: #{_forward.27} parent=0 // loop_body
    %s13 = ssub.s32 %s8, 1
    %s14 = ssub.s32 %s8, 2
    %s15 = sadd.s32 %s8, 1
    %s17 = sadd.s32 %s16, 1
    %p20 = scmp.eq.s32.totalorder %s8, 1
    %p21 = scmp.ne.s32.totalorder %s16, %s18
    %p22 = scmp.eq.s32.totalorder %s8, 0
    %p23 = por %p21, %p22
    %p24 = scmp.ne.s32.totalorder %s16, %s18
    %p25 = scmp.eq.s32.totalorder %s13, 1
    %p26 = por %p24, %p25
    %p27 = scmp.ne.s32.totalorder %s18, %s19
    %p28 = scmp.eq.s32.totalorder %s13, 0
    %p29 = por %p27, %p28
    %p30 = scmp.ne.s32.totalorder %s18, %s19
    %p31 = scmp.eq.s32.totalorder %s14, 1
    %p32 = por %p30, %p31
    %p34 = scmp.ne.s32.totalorder %s19, %s33
    %p35 = scmp.eq.s32.totalorder %s14, 0
    %p36 = por %p34, %p35
    %s37 = ssub.s32 %s8, %s15
    %p38 = scmp.eq.s32.totalorder %s37, 0
    %s40 = sadd.s32 %s39, 1
    %s41 = scalar_select %p38, %s39, %s40
    %p44 = pneg %p38
    %p45 = scmp.eq.s32.totalorder %s8, 1
    %p46 = por %p44, %p45
    %p47 = scmp.ne.s32.totalorder %s39, %s42
    %p48 = scmp.eq.s32.totalorder %s8, 0
    %p49 = por %p47, %p48
    %p50 = scmp.ne.s32.totalorder %s39, %s42
    %p51 = scmp.eq.s32.totalorder %s13, 1
    %p52 = por %p50, %p51
    %p53 = scmp.ne.s32.totalorder %s42, %s43
    %p54 = scmp.eq.s32.totalorder %s13, 0
    %p55 = por %p53, %p54
    %p56 = scmp.ne.s32.totalorder %s42, %s43
    %p57 = scmp.eq.s32.totalorder %s14, 1
    %p58 = por %p56, %p57
    %p60 = scmp.ne.s32.totalorder %s43, %s59
    %p61 = scmp.eq.s32.totalorder %s14, 0
    %p62 = por %p60, %p61
    %s63 = ssub.s32 %s8, %s15
    %p64 = scmp.eq.s32.totalorder %s63, 0
    %s66 = sadd.s32 %s65, 1
    %s67 = scalar_select %p64, %s65, %s66
    %p70 = pneg %p64
    %p71 = scmp.eq.s32.totalorder %s8, 1
    %p72 = por %p70, %p71
    %p73 = scmp.ne.s32.totalorder %s65, %s68
    %p74 = scmp.eq.s32.totalorder %s8, 0
    %p75 = por %p73, %p74
    %p76 = scmp.ne.s32.totalorder %s65, %s68
    %p77 = scmp.eq.s32.totalorder %s13, 1
    %p78 = por %p76, %p77
    %p79 = scmp.ne.s32.totalorder %s68, %s69
    %p80 = scmp.eq.s32.totalorder %s13, 0
    %p81 = por %p79, %p80
    %p82 = scmp.ne.s32.totalorder %s68, %s69
    %p83 = scmp.eq.s32.totalorder %s14, 1
    %p84 = por %p82, %p83
    %p86 = scmp.ne.s32.totalorder %s69, %s85
    %p87 = scmp.eq.s32.totalorder %s14, 0
    %p88 = por %p86, %p87
    %p89 = scmp.le.s32.totalorder 1, %s8
    %p90 = scmp.lt.s32.totalorder %s8, 3
    %p91 = pnand %p89, %p90
    %p92 = pneg %p91
    // Predicated region
    $region9: #{_forward.27} parent=5 // pred_check
      _
    $region10: #{_forward.27} parent=5 // pred_check_branch
      %94 = sbr.rel (%p91) target = $region12
    $region11: #{_forward.27} parent=5 // pred_region
      %s95 = ssub.s32 %s8, 1
      // Predicated region
      $region13: #{_forward.27} parent=11 // pred_check
        %p96 = pneg %p29
      $region14: #{_forward.27} parent=11 // pred_check_branch
        %98 = sbr.rel (%p96) target = $region16
      $region15: #{_forward.27} parent=11 // pred_region
        _
      $region16: #{_forward.27} parent=11 // pred_fallthru
        _
    $region12: #{_forward.27} parent=5 // pred_fallthru
      _
    %p99 = scmp.lt.s32.totalorder %s8, 2
    // Predicated region
    $region17: #{_forward.27} parent=5 // pred_check
      %p100 = pneg %p99
    $region18: #{_forward.27} parent=5 // pred_check_branch
      %102 = sbr.rel (%p100) target = $region20
    $region19: #{_forward.27} parent=5 // pred_region
      // Predicated region
      $region21: #{_forward.27} parent=19 // pred_check
        %p103 = pneg %p49
      $region22: #{_forward.27} parent=19 // pred_check_branch
        %105 = sbr.rel (%p103) target = $region24
      $region23: #{_forward.27} parent=19 // pred_region
        %p106 = scmp.lt.s32.totalorder %s8, 1
        %s107 = scalar_select %p106, %s8, 1
        %s108 = smul.addr %s107, 4
        %s109 = smul.addr %s108, 4
        %s110 = scalar_lea.vmem %s1, %s109
      $region24: #{_forward.27} parent=19 // pred_fallthru
        _
    $region20: #{_forward.27} parent=5 // pred_fallthru
      _
    %p111 = scmp.le.s32.totalorder 1, %s8
    %p112 = scmp.lt.s32.totalorder %s8, 3
    %p113 = pnand %p111, %p112
    %p114 = pneg %p113
    // Predicated region
    $region25: #{_forward.27} parent=5 // pred_check
      _
    $region26: #{_forward.27} parent=5 // pred_check_branch
      %116 = sbr.rel (%p113) target = $region28
    $region27: #{_forward.27} parent=5 // pred_region
      %s117 = ssub.s32 %s8, 1
      %p118 = pneg %p29
      %p119 = pneg %p26
      %p120 = scmp.lt.s32.totalorder %s13, 1
      %s121 = scalar_select %p120, %s13, 1
      %s122 = smul.addr %s121, 4
      %s123 = smul.addr %s122, 4
      %s124 = scalar_lea.vmem %s1, %s123
      %p125 = pneg %p55
      %p126 = pneg %p52
      %p127 = pneg %p81
      %p128 = pneg %p78
      %p129 = scmp.lt.s32.totalorder %s13, 1
      %s130 = scalar_select %p129, %s13, 1
      %s131 = smul.addr %s130, 2
      %s132 = smul.addr %s131, 4
      %s133 = scalar_lea.vmem %s2, %s132
      %p134 = scmp.lt.s32.totalorder %s13, 1
      %s135 = scalar_select %p134, %s13, 1
      %s136 = smul.addr %s135, 4
      %s137 = smul.addr %s136, 4
      %s138 = scalar_lea.vmem %s1, %s137
      %p139 = scmp.lt.s32.totalorder %s13, 1
      %s140 = scalar_select %p139, %s13, 1
      %s141 = smul.addr %s140, 2
      %s142 = smul.addr %s141, 4
      %s143 = scalar_lea.vmem %s2, %s142
      %v145 = vld [vmem:[%s0] sm:$0xf]
      %v146 = vld [vmem:[%s0 + $0x4] sm:$0xf]
      %v147 = vld [vmem:[%s138] sm:$0xf]
      %v148 = vld [vmem:[%s138 + $0x4] sm:$0xf]
      %v149 = vld [vmem:[%s138 + $0x8] sm:$0xf]
      %v150 = vld [vmem:[%s138 + $0xc] sm:$0xf]
      %v153 = vunpack.c.l.b16 %v145
      %v154 = vunpack.c.l.b16 %v146
      %v155 = vpack.c.b16 %v154, %v153
      %v160 = vunpack.c.l.b16 %v147
      %v161 = vunpack.c.l.b16 %v148
      %v162 = vunpack.c.l.b16 %v149
      %v163 = vunpack.c.l.b16 %v150
      %v164 = vpack.c.b16 %v161, %v160
      %v165 = vpack.c.b16 %v163, %v162
      %vm168 = vcmask 261120
      %v170 = vsel %vm168, %v155, 0
      %172 = vmatpush.bf16.msra.mxu0 0
      %173 = vmatpush.bf16.msra.mxu0 0
      %174 = vmatpush.bf16.msra.mxu0 0
      %175 = vmatpush.bf16.msra.mxu0 0
      %176 = vmatpush.bf16.msra.mxu0 0
      %177 = vmatpush.bf16.msra.mxu0 0
      %178 = vmatpush.bf16.msra.mxu0 %v165
      %179 = vmatpush.bf16.msra.mxu0 %v164
      %180 = vmatmul.bf16.gmra.mxu0 %v170
      %v181 = vpop.f32.mrf.mxu0
      %v182 = vadd.f32 0.0, %v181
      %v183 = vpop.f32.mrf.mxu0
      %v184 = vadd.f32 0.0, %v183
      %185 = vdwg.mxu0
      %v186 = vpack.c.bf16 %v182, %v182
      %v187 = vpack.c.bf16 %v184, %v184
      %vm188 = vcmask 125952
      %189 = vst.msk [vmem:[%s143] sm:$0xf] %vm188, %v186
      %190 = vst.msk [vmem:[%s143 + $0x4] sm:$0xf] %vm188, %v187
      %p191 = scmp.lt.s32.totalorder %s13, 1
      %s192 = scalar_select %p191, %s13, 1
      %s193 = smul.addr %s192, 2
      %s194 = smul.addr %s193, 4
      %s195 = scalar_lea.vmem %s2, %s194
      // Predicated region
      $region29: #{_forward.27} parent=27 // pred_check
        %p196 = pneg %p78
      $region30: #{_forward.27} parent=27 // pred_check_branch
        %198 = sbr.rel (%p196) target = $region32
      $region31: #{_forward.27} parent=27 // pred_region
        _
      $region32: #{_forward.27} parent=27 // pred_fallthru
        _
    $region28: #{_forward.27} parent=5 // pred_fallthru
      _
    %p199 = scmp.le.s32.totalorder 2, %s8
    // Predicated region
    $region33: #{_forward.27} parent=5 // pred_check
      %p200 = pneg %p199
    $region34: #{_forward.27} parent=5 // pred_check_branch
      %202 = sbr.rel (%p200) target = $region36
    $region35: #{_forward.27} parent=5 // pred_region
      %s203 = ssub.s32 %s8, 2
      // Predicated region
      $region37: #{_forward.27} parent=35 // pred_check
        %p204 = pneg %p84
      $region38: #{_forward.27} parent=35 // pred_check_branch
        %206 = sbr.rel (%p204) target = $region40
      $region39: #{_forward.27} parent=35 // pred_region
        %p207 = scmp.lt.s32.totalorder %s14, 1
        %s208 = scalar_select %p207, %s14, 1
        %s209 = smul.addr %s208, 2
        %s210 = smul.addr %s209, 4
        %s211 = scalar_lea.vmem %s2, %s210
      $region40: #{_forward.27} parent=35 // pred_fallthru
        _
    $region36: #{_forward.27} parent=5 // pred_fallthru
      _
  $region6: #{_forward.27} parent=0 // loop_footer
    %s12 = sadd.s32 1, %s8
  $region7: #{_forward.27} parent=0 // loop_footer_branch
    %7 = sbr.rel target = $region3
  $region8: #{_forward.27} parent=0 // loop_exit
    _

// kernel: _forward.26
$region0: #{_forward.26}
  #allocation0 [shape = 'u32[]', space=smem, size = 0x4, offset = 0x4, fixed_abs, tag = 'smem constant byte address 0x4 - core index']
  #allocation1 [shape = 'u32[72,128]{1,0:T(1,128)}', space=vmem, size = 0x9000, scoped, tag = 'internal scratch']
  %s0 = inlined_call_operand.vmem [shape: bf16[2,16,32], index: 0, kind: input, shape index: {}]
  %s1 = inlined_call_operand.vmem [shape: bf16[3,2,32,16], index: 1, kind: input, shape index: {}]
  %s2 = inlined_call_operand.vmem [shape: bf16[3,2,2,16,16], index: 2, kind: output, shape index: {}]
  %s3 = sld [smem:[#allocation0]]
  $region41: #{_forward.26} parent=0
    _
  %s5 = ssub.s32 1, %s3
  %s6 = scalar_select 0, %s5, %s3
  loop: start=0, step=1, limit=14
  $region2: #{_forward.26} parent=0 // loop_pre_header
    _
  $region3: #{_forward.26} parent=0 // loop_header
    %s8 = sphi 0, %s12
    %p9 = scmp.ge.s32.totalorder %s8, 14
    %s15 = sphi 0, %s34
    %s16 = sphi 0, %s30
    %s17 = sphi 0, %s26
    %s18 = sphi 0, %s15
    %s19 = sphi 0, %s16
    %s20 = sphi 0, %s17
    %s21 = sphi 0, %s18
    %s22 = sphi 0, %s19
    %s23 = sphi 0, %s20
    %s37 = sphi 0, %s39
    %s40 = sphi 0, %s37
    %s41 = sphi 0, %s40
    %s57 = sphi 0, %s41
    %s65 = sphi 0, %s67
    %s68 = sphi 0, %s65
    %s69 = sphi 0, %s68
    %s85 = sphi 0, %s69
    %s95 = sphi 0, %s97
    %s98 = sphi 0, %s95
    %s99 = sphi 0, %s98
    %s115 = sphi 0, %s99
  $region4: #{_forward.26} parent=0 // loop_header_branch
    %11 = sbr.rel (%p9) target = $region8
  $region5: #{_forward.26} parent=0 // loop_body
    %s13 = ssub.s32 %s8, 1
    %s14 = ssub.s32 %s8, 2
    %s24 = sadd.s32 1, %s17
    %p25 = scmp.ge.s32.totalorder %s24, 2
    %s26 = scalar_select %p25, 0, %s24
    %s27 = sadd.s32 1, %s16
    %s28 = scalar_select %p25, %s27, %s16
    %p29 = scmp.ge.s32.totalorder %s28, 3
    %s30 = scalar_select %p29, 0, %s28
    %s31 = sadd.s32 1, %s15
    %s32 = scalar_select %p29, %s31, %s15
    %p33 = scmp.ge.s32.totalorder %s32, 2
    %s34 = scalar_select %p33, 0, %s32
    %s35 = ssub.s32 %s15, %s34
    %p36 = scmp.eq.s32.totalorder %s35, 0
    %s38 = sadd.s32 %s37, 1
    %s39 = scalar_select %p36, %s37, %s38
    %p42 = pneg %p36
    %p43 = scmp.eq.s32.totalorder %s8, 11
    %p44 = por %p42, %p43
    %p45 = scmp.ne.s32.totalorder %s37, %s40
    %p46 = scmp.eq.s32.totalorder %s8, 0
    %p47 = por %p45, %p46
    %p48 = scmp.ne.s32.totalorder %s37, %s40
    %p49 = scmp.eq.s32.totalorder %s13, 11
    %p50 = por %p48, %p49
    %p51 = scmp.ne.s32.totalorder %s40, %s41
    %p52 = scmp.eq.s32.totalorder %s13, 0
    %p53 = por %p51, %p52
    %p54 = scmp.ne.s32.totalorder %s40, %s41
    %p55 = scmp.eq.s32.totalorder %s14, 11
    %p56 = por %p54, %p55
    %p58 = scmp.ne.s32.totalorder %s41, %s57
    %p59 = scmp.eq.s32.totalorder %s14, 0
    %p60 = por %p58, %p59
    %s61 = ssub.s32 %s16, %s30
    %s62 = ssub.s32 %s17, %s26
    %s63 = sor.u32 %s61, %s62
    %p64 = scmp.eq.s32.totalorder %s63, 0
    %s66 = sadd.s32 %s65, 1
    %s67 = scalar_select %p64, %s65, %s66
    %p70 = pneg %p64
    %p71 = scmp.eq.s32.totalorder %s8, 11
    %p72 = por %p70, %p71
    %p73 = scmp.ne.s32.totalorder %s65, %s68
    %p74 = scmp.eq.s32.totalorder %s8, 0
    %p75 = por %p73, %p74
    %p76 = scmp.ne.s32.totalorder %s65, %s68
    %p77 = scmp.eq.s32.totalorder %s13, 11
    %p78 = por %p76, %p77
    %p79 = scmp.ne.s32.totalorder %s68, %s69
    %p80 = scmp.eq.s32.totalorder %s13, 0
    %p81 = por %p79, %p80
    %p82 = scmp.ne.s32.totalorder %s68, %s69
    %p83 = scmp.eq.s32.totalorder %s14, 11
    %p84 = por %p82, %p83
    %p86 = scmp.ne.s32.totalorder %s69, %s85
    %p87 = scmp.eq.s32.totalorder %s14, 0
    %p88 = por %p86, %p87
    %s89 = ssub.s32 %s16, %s30
    %s90 = ssub.s32 %s17, %s26
    %s91 = sor.u32 %s89, %s90
    %s92 = ssub.s32 %s15, %s34
    %s93 = sor.u32 %s91, %s92
    %p94 = scmp.eq.s32.totalorder %s93, 0
    %s96 = sadd.s32 %s95, 1
    %s97 = scalar_select %p94, %s95, %s96
    %p100 = pneg %p94
    %p101 = scmp.eq.s32.totalorder %s8, 11
    %p102 = por %p100, %p101
    %p103 = scmp.ne.s32.totalorder %s95, %s98
    %p104 = scmp.eq.s32.totalorder %s8, 0
    %p105 = por %p103, %p104
    %p106 = scmp.ne.s32.totalorder %s95, %s98
    %p107 = scmp.eq.s32.totalorder %s13, 11
    %p108 = por %p106, %p107
    %p109 = scmp.ne.s32.totalorder %s98, %s99
    %p110 = scmp.eq.s32.totalorder %s13, 0
    %p111 = por %p109, %p110
    %p112 = scmp.ne.s32.totalorder %s98, %s99
    %p113 = scmp.eq.s32.totalorder %s14, 11
    %p114 = por %p112, %p113
    %p116 = scmp.ne.s32.totalorder %s99, %s115
    %p117 = scmp.eq.s32.totalorder %s14, 0
    %p118 = por %p116, %p117
    %p119 = scmp.le.s32.totalorder 1, %s8
    %p120 = scmp.lt.s32.totalorder %s8, 13
    %p121 = pnand %p119, %p120
    %p122 = pneg %p121
    // Predicated region
    $region9: #{_forward.26} parent=5 // pred_check
      _
    $region10: #{_forward.26} parent=5 // pred_check_branch
      %124 = sbr.rel (%p121) target = $region12
    $region11: #{_forward.26} parent=5 // pred_region
      %s125 = ssub.s32 %s8, 1
    $region12: #{_forward.26} parent=5 // pred_fallthru
      _
    %p126 = scmp.lt.s32.totalorder %s8, 12
    // Predicated region
    $region13: #{_forward.26} parent=5 // pred_check
      %p127 = pneg %p126
    $region14: #{_forward.26} parent=5 // pred_check_branch
      %129 = sbr.rel (%p127) target = $region16
    $region15: #{_forward.26} parent=5 // pred_region
      // Predicated region
      $region17: #{_forward.26} parent=15 // pred_check
        %p130 = pneg %p47
      $region18: #{_forward.26} parent=15 // pred_check_branch
        %132 = sbr.rel (%p130) target = $region20
      $region19: #{_forward.26} parent=15 // pred_region
        %p133 = scmp.lt.s32.totalorder %s15, 1
        %s134 = scalar_select %p133, %s15, 1
        %s135 = smul.addr %s134, 2
        %s136 = smul.addr %s135, 4
        %s137 = scalar_lea.vmem %s0, %s136
      $region20: #{_forward.26} parent=15 // pred_fallthru
        _
      // Predicated region
      $region21: #{_forward.26} parent=15 // pred_check
        %p138 = pneg %p75
      $region22: #{_forward.26} parent=15 // pred_check_branch
        %140 = sbr.rel (%p138) target = $region24
      $region23: #{_forward.26} parent=15 // pred_region
        %p141 = scmp.lt.s32.totalorder %s16, 2
        %s142 = scalar_select %p141, %s16, 2
        %p143 = scmp.lt.s32.totalorder %s17, 1
        %s144 = scalar_select %p143, %s17, 1
        %s145 = smul.addr %s144, 4
        %s146 = smul.addr %s142, 8
        %s147 = sadd.s32 %s145, %s146
        %s148 = smul.addr %s147, 4
        %s149 = scalar_lea.vmem %s1, %s148
      $region24: #{_forward.26} parent=15 // pred_fallthru
        _
    $region16: #{_forward.26} parent=5 // pred_fallthru
      _
    %p150 = scmp.le.s32.totalorder 1, %s8
    %p151 = scmp.lt.s32.totalorder %s8, 13
    %p152 = pnand %p150, %p151
    %p153 = pneg %p152
    // Predicated region
    $region25: #{_forward.26} parent=5 // pred_check
      _
    $region26: #{_forward.26} parent=5 // pred_check_branch
      %155 = sbr.rel (%p152) target = $region28
    $region27: #{_forward.26} parent=5 // pred_region
      %s156 = ssub.s32 %s8, 1
      %p157 = scmp.lt.s32.totalorder %s18, 1
      %s158 = scalar_select %p157, %s18, 1
      %s159 = smul.addr %s158, 2
      %s160 = smul.addr %s159, 4
      %s161 = scalar_lea.vmem %s0, %s160
      %p162 = pneg %p53
      %p163 = pneg %p50
      %p164 = scmp.lt.s32.totalorder %s19, 2
      %s165 = scalar_select %p164, %s19, 2
      %p166 = scmp.lt.s32.totalorder %s20, 1
      %s167 = scalar_select %p166, %s20, 1
      %s168 = smul.addr %s167, 4
      %s169 = smul.addr %s165, 8
      %s170 = sadd.s32 %s168, %s169
      %s171 = smul.addr %s170, 4
      %s172 = scalar_lea.vmem %s1, %s171
      %p173 = pneg %p81
      %p174 = pneg %p78
      %p175 = pneg %p111
      %p176 = pneg %p108
      %p177 = scmp.lt.s32.totalorder %s19, 2
      %s178 = scalar_select %p177, %s19, 2
      %p179 = scmp.lt.s32.totalorder %s20, 1
      %s180 = scalar_select %p179, %s20, 1
      %p181 = scmp.lt.s32.totalorder %s18, 1
      %s182 = scalar_select %p181, %s18, 1
      %s183 = smul.addr %s182, 2
      %s184 = smul.addr %s180, 4
      %s185 = sadd.s32 %s183, %s184
      %s186 = smul.addr %s178, 8
      %s187 = sadd.s32 %s185, %s186
      %s188 = smul.addr %s187, 4
      %s189 = scalar_lea.vmem %s2, %s188
      %p190 = scmp.lt.s32.totalorder %s18, 1
      %s191 = scalar_select %p190, %s18, 1
      %s192 = smul.addr %s191, 2
      %s193 = smul.addr %s192, 4
      %s194 = scalar_lea.vmem %s0, %s193
      %p195 = scmp.lt.s32.totalorder %s19, 2
      %s196 = scalar_select %p195, %s19, 2
      %p197 = scmp.lt.s32.totalorder %s20, 1
      %s198 = scalar_select %p197, %s20, 1
      %s199 = smul.addr %s198, 4
      %s200 = smul.addr %s196, 8
      %s201 = sadd.s32 %s199, %s200
      %s202 = smul.addr %s201, 4
      %s203 = scalar_lea.vmem %s1, %s202
      %p204 = scmp.lt.s32.totalorder %s19, 2
      %s205 = scalar_select %p204, %s19, 2
      %p206 = scmp.lt.s32.totalorder %s20, 1
      %s207 = scalar_select %p206, %s20, 1
      %p208 = scmp.lt.s32.totalorder %s18, 1
      %s209 = scalar_select %p208, %s18, 1
      %s210 = smul.addr %s209, 2
      %s211 = smul.addr %s207, 4
      %s212 = sadd.s32 %s210, %s211
      %s213 = smul.addr %s205, 8
      %s214 = sadd.s32 %s212, %s213
      %s215 = smul.addr %s214, 4
      %s216 = scalar_lea.vmem %s2, %s215
      %v218 = vld [vmem:[%s194] sm:$0xf]
      %v219 = vld [vmem:[%s194 + $0x4] sm:$0xf]
      %v220 = vld [vmem:[%s203] sm:$0xf]
      %v221 = vld [vmem:[%s203 + $0x4] sm:$0xf]
      %v222 = vld [vmem:[%s203 + $0x8] sm:$0xf]
      %v223 = vld [vmem:[%s203 + $0xc] sm:$0xf]
      %v226 = vunpack.c.l.b16 %v218
      %v227 = vunpack.c.l.b16 %v219
      %v228 = vpack.c.b16 %v227, %v226
      %v233 = vunpack.c.l.b16 %v220
      %v234 = vunpack.c.l.b16 %v221
      %v235 = vunpack.c.l.b16 %v222
      %v236 = vunpack.c.l.b16 %v223
      %v237 = vpack.c.b16 %v234, %v233
      %v238 = vpack.c.b16 %v236, %v235
      %vm241 = vcmask 261120
      %v243 = vsel %vm241, %v228, 0
      %245 = vmatpush.bf16.msra.mxu0 0
      %246 = vmatpush.bf16.msra.mxu0 0
      %247 = vmatpush.bf16.msra.mxu0 0
      %248 = vmatpush.bf16.msra.mxu0 0
      %249 = vmatpush.bf16.msra.mxu0 0
      %250 = vmatpush.bf16.msra.mxu0 0
      %251 = vmatpush.bf16.msra.mxu0 %v238
      %252 = vmatpush.bf16.msra.mxu0 %v237
      %253 = vmatmul.bf16.gmra.mxu0 %v243
      %v254 = vpop.f32.mrf.mxu0
      %v255 = vadd.f32 0.0, %v254
      %v256 = vpop.f32.mrf.mxu0
      %v257 = vadd.f32 0.0, %v256
      %258 = vdwg.mxu0
      %v259 = vpack.c.bf16 %v255, %v255
      %v260 = vpack.c.bf16 %v257, %v257
      %vm261 = vcmask 125952
      %262 = vst.msk [vmem:[%s216] sm:$0xf] %vm261, %v259
      %263 = vst.msk [vmem:[%s216 + $0x4] sm:$0xf] %vm261, %v260
      %p264 = scmp.lt.s32.totalorder %s19, 2
      %s265 = scalar_select %p264, %s19, 2
      %p266 = scmp.lt.s32.totalorder %s20, 1
      %s267 = scalar_select %p266, %s20, 1
      %p268 = scmp.lt.s32.totalorder %s18, 1
      %s269 = scalar_select %p268, %s18, 1
      %s270 = smul.addr %s269, 2
      %s271 = smul.addr %s267, 4
      %s272 = sadd.s32 %s270, %s271
      %s273 = smul.addr %s265, 8
      %s274 = sadd.s32 %s272, %s273
      %s275 = smul.addr %s274, 4
      %s276 = scalar_lea.vmem %s2, %s275
      // Predicated region
      $region29: #{_forward.26} parent=27 // pred_check
        %p277 = pneg %p108
      $region30: #{_forward.26} parent=27 // pred_check_branch
        %279 = sbr.rel (%p277) target = $region32
      $region31: #{_forward.26} parent=27 // pred_region
        _
      $region32: #{_forward.26} parent=27 // pred_fallthru
        _
    $region28: #{_forward.26} parent=5 // pred_fallthru
      _
    %p280 = scmp.le.s32.totalorder 2, %s8
    // Predicated region
    $region33: #{_forward.26} parent=5 // pred_check
      %p281 = pneg %p280
    $region34: #{_forward.26} parent=5 // pred_check_branch
      %283 = sbr.rel (%p281) target = $region36
    $region35: #{_forward.26} parent=5 // pred_region
      %s284 = ssub.s32 %s8, 2
      // Predicated region
      $region37: #{_forward.26} parent=35 // pred_check
        %p285 = pneg %p114
      $region38: #{_forward.26} parent=35 // pred_check_branch
        %287 = sbr.rel (%p285) target = $region40
      $region39: #{_forward.26} parent=35 // pred_region
        %p288 = scmp.lt.s32.totalorder %s22, 2
        %s289 = scalar_select %p288, %s22, 2
        %p290 = scmp.lt.s32.totalorder %s23, 1
        %s291 = scalar_select %p290, %s23, 1
        %p292 = scmp.lt.s32.totalorder %s21, 1
        %s293 = scalar_select %p292, %s21, 1
        %s294 = smul.addr %s293, 2
        %s295 = smul.addr %s291, 4
        %s296 = sadd.s32 %s294, %s295
        %s297 = smul.addr %s289, 8
        %s298 = sadd.s32 %s296, %s297
        %s299 = smul.addr %s298, 4
        %s300 = scalar_lea.vmem %s2, %s299
      $region40: #{_forward.26} parent=35 // pred_fallthru
        _
    $region36: #{_forward.26} parent=5 // pred_fallthru
      _
  $region6: #{_forward.26} parent=0 // loop_footer
    %s12 = sadd.s32 1, %s8
  $region7: #{_forward.26} parent=0 // loop_footer_branch
    %7 = sbr.rel target = $region3
  $region8: #{_forward.26} parent=0 // loop_exit
    _

// kernel: _forward.28
$region0: #{_forward.28}
  #allocation0 [shape = 'u32[]', space=smem, size = 0x4, offset = 0x4, fixed_abs, tag = 'smem constant byte address 0x4 - core index']
  #allocation1 [shape = 'u32[72,128]{1,0:T(1,128)}', space=vmem, size = 0x9000, scoped, tag = 'internal scratch']
  %s0 = inlined_call_operand.vmem [shape: bf16[3,2,2,16,16], index: 0, kind: input, shape index: {}, may-alias: {0,1,2}]
  %s1 = inlined_call_operand.vmem [shape: bf16[3,2,2,16,16], index: 1, kind: input, shape index: {}, may-alias: {0,1,2}]
  %s2 = inlined_call_operand.vmem [shape: bf16[3,2,2,16,16], index: 2, kind: input, shape index: {}, may-alias: {0,1,2}]
  %s3 = inlined_call_operand.vmem [shape: bf16[2,16,16], index: 3, kind: input, shape index: {}]
  %s4 = inlined_call_operand.vmem [shape: f32[2,1,16], index: 4, kind: input, shape index: {}]
  %s5 = inlined_call_operand.vmem [shape: f32[2,1,16], index: 5, kind: input, shape index: {}]
  %s6 = inlined_call_operand.vmem [shape: bf16[2,2,8,16], index: 6, kind: output, shape index: {}]
  %s7 = sld [smem:[#allocation0]]
  $region57: #{_forward.28} parent=0
    _
  %s9 = ssub.s32 1, %s7
  %s10 = scalar_select 0, %s9, %s7
  loop: start=0, step=1, limit=6
  $region2: #{_forward.28} parent=0 // loop_pre_header
    _
  $region3: #{_forward.28} parent=0 // loop_header
    %s12 = sphi 0, %s16
    %p13 = scmp.ge.s32.totalorder %s12, 6
    %s19 = sphi 0, %s31
    %s20 = sphi 0, %s27
    %s21 = sphi 0, %s19
    %s22 = sphi 0, %s20
    %s23 = sphi 0, %s21
    %s24 = sphi 0, %s22
    %s36 = sphi 0, %s38
    %s39 = sphi 0, %s36
    %s40 = sphi 0, %s39
    %s56 = sphi 0, %s40
    %s64 = sphi 0, %s66
    %s67 = sphi 0, %s64
    %s68 = sphi 0, %s67
    %s84 = sphi 0, %s68
    %s92 = sphi 0, %s94
    %s95 = sphi 0, %s92
    %s96 = sphi 0, %s95
    %s112 = sphi 0, %s96
    %s118 = sphi 0, %s120
    %s121 = sphi 0, %s118
    %s122 = sphi 0, %s121
    %s138 = sphi 0, %s122
    %s144 = sphi 0, %s146
    %s147 = sphi 0, %s144
    %s148 = sphi 0, %s147
    %s164 = sphi 0, %s148
    %s170 = sphi 0, %s172
    %s173 = sphi 0, %s170
    %s174 = sphi 0, %s173
    %s190 = sphi 0, %s174
    %s198 = sphi 0, %s200
    %s201 = sphi 0, %s198
    %s202 = sphi 0, %s201
    %s218 = sphi 0, %s202
  $region4: #{_forward.28} parent=0 // loop_header_branch
    %15 = sbr.rel (%p13) target = $region8
  $region5: #{_forward.28} parent=0 // loop_body
    %s17 = ssub.s32 %s12, 1
    %s18 = ssub.s32 %s12, 2
    %s25 = sadd.s32 1, %s20
    %p26 = scmp.ge.s32.totalorder %s25, 2
    %s27 = scalar_select %p26, 0, %s25
    %s28 = sadd.s32 1, %s19
    %s29 = scalar_select %p26, %s28, %s19
    %p30 = scmp.ge.s32.totalorder %s29, 2
    %s31 = scalar_select %p30, 0, %s29
    %s32 = ssub.s32 %s20, %s27
    %s33 = ssub.s32 %s19, %s31
    %s34 = sor.u32 %s32, %s33
    %p35 = scmp.eq.s32.totalorder %s34, 0
    %s37 = sadd.s32 %s36, 1
    %s38 = scalar_select %p35, %s36, %s37
    %p41 = pneg %p35
    %p42 = scmp.eq.s32.totalorder %s12, 3
    %p43 = por %p41, %p42
    %p44 = scmp.ne.s32.totalorder %s36, %s39
    %p45 = scmp.eq.s32.totalorder %s12, 0
    %p46 = por %p44, %p45
    %p47 = scmp.ne.s32.totalorder %s36, %s39
    %p48 = scmp.eq.s32.totalorder %s17, 3
    %p49 = por %p47, %p48
    %p50 = scmp.ne.s32.totalorder %s39, %s40
    %p51 = scmp.eq.s32.totalorder %s17, 0
    %p52 = por %p50, %p51
    %p53 = scmp.ne.s32.totalorder %s39, %s40
    %p54 = scmp.eq.s32.totalorder %s18, 3
    %p55 = por %p53, %p54
    %p57 = scmp.ne.s32.totalorder %s40, %s56
    %p58 = scmp.eq.s32.totalorder %s18, 0
    %p59 = por %p57, %p58
    %s60 = ssub.s32 %s20, %s27
    %s61 = ssub.s32 %s19, %s31
    %s62 = sor.u32 %s60, %s61
    %p63 = scmp.eq.s32.totalorder %s62, 0
    %s65 = sadd.s32 %s64, 1
    %s66 = scalar_select %p63, %s64, %s65
    %p69 = pneg %p63
    %p70 = scmp.eq.s32.totalorder %s12, 3
    %p71 = por %p69, %p70
    %p72 = scmp.ne.s32.totalorder %s64, %s67
    %p73 = scmp.eq.s32.totalorder %s12, 0
    %p74 = por %p72, %p73
    %p75 = scmp.ne.s32.totalorder %s64, %s67
    %p76 = scmp.eq.s32.totalorder %s17, 3
    %p77 = por %p75, %p76
    %p78 = scmp.ne.s32.totalorder %s67, %s68
    %p79 = scmp.eq.s32.totalorder %s17, 0
    %p80 = por %p78, %p79
    %p81 = scmp.ne.s32.totalorder %s67, %s68
    %p82 = scmp.eq.s32.totalorder %s18, 3
    %p83 = por %p81, %p82
    %p85 = scmp.ne.s32.totalorder %s68, %s84
    %p86 = scmp.eq.s32.totalorder %s18, 0
    %p87 = por %p85, %p86
    %s88 = ssub.s32 %s20, %s27
    %s89 = ssub.s32 %s19, %s31
    %s90 = sor.u32 %s88, %s89
    %p91 = scmp.eq.s32.totalorder %s90, 0
    %s93 = sadd.s32 %s92, 1
    %s94 = scalar_select %p91, %s92, %s93
    %p97 = pneg %p91
    %p98 = scmp.eq.s32.totalorder %s12, 3
    %p99 = por %p97, %p98
    %p100 = scmp.ne.s32.totalorder %s92, %s95
    %p101 = scmp.eq.s32.totalorder %s12, 0
    %p102 = por %p100, %p101
    %p103 = scmp.ne.s32.totalorder %s92, %s95
    %p104 = scmp.eq.s32.totalorder %s17, 3
    %p105 = por %p103, %p104
    %p106 = scmp.ne.s32.totalorder %s95, %s96
    %p107 = scmp.eq.s32.totalorder %s17, 0
    %p108 = por %p106, %p107
    %p109 = scmp.ne.s32.totalorder %s95, %s96
    %p110 = scmp.eq.s32.totalorder %s18, 3
    %p111 = por %p109, %p110
    %p113 = scmp.ne.s32.totalorder %s96, %s112
    %p114 = scmp.eq.s32.totalorder %s18, 0
    %p115 = por %p113, %p114
    %s116 = ssub.s32 %s20, %s27
    %p117 = scmp.eq.s32.totalorder %s116, 0
    %s119 = sadd.s32 %s118, 1
    %s120 = scalar_select %p117, %s118, %s119
    %p123 = pneg %p117
    %p124 = scmp.eq.s32.totalorder %s12, 3
    %p125 = por %p123, %p124
    %p126 = scmp.ne.s32.totalorder %s118, %s121
    %p127 = scmp.eq.s32.totalorder %s12, 0
    %p128 = por %p126, %p127
    %p129 = scmp.ne.s32.totalorder %s118, %s121
    %p130 = scmp.eq.s32.totalorder %s17, 3
    %p131 = por %p129, %p130
    %p132 = scmp.ne.s32.totalorder %s121, %s122
    %p133 = scmp.eq.s32.totalorder %s17, 0
    %p134 = por %p132, %p133
    %p135 = scmp.ne.s32.totalorder %s121, %s122
    %p136 = scmp.eq.s32.totalorder %s18, 3
    %p137 = por %p135, %p136
    %p139 = scmp.ne.s32.totalorder %s122, %s138
    %p140 = scmp.eq.s32.totalorder %s18, 0
    %p141 = por %p139, %p140
    %s142 = ssub.s32 %s20, %s27
    %p143 = scmp.eq.s32.totalorder %s142, 0
    %s145 = sadd.s32 %s144, 1
    %s146 = scalar_select %p143, %s144, %s145
    %p149 = pneg %p143
    %p150 = scmp.eq.s32.totalorder %s12, 3
    %p151 = por %p149, %p150
    %p152 = scmp.ne.s32.totalorder %s144, %s147
    %p153 = scmp.eq.s32.totalorder %s12, 0
    %p154 = por %p152, %p153
    %p155 = scmp.ne.s32.totalorder %s144, %s147
    %p156 = scmp.eq.s32.totalorder %s17, 3
    %p157 = por %p155, %p156
    %p158 = scmp.ne.s32.totalorder %s147, %s148
    %p159 = scmp.eq.s32.totalorder %s17, 0
    %p160 = por %p158, %p159
    %p161 = scmp.ne.s32.totalorder %s147, %s148
    %p162 = scmp.eq.s32.totalorder %s18, 3
    %p163 = por %p161, %p162
    %p165 = scmp.ne.s32.totalorder %s148, %s164
    %p166 = scmp.eq.s32.totalorder %s18, 0
    %p167 = por %p165, %p166
    %s168 = ssub.s32 %s20, %s27
    %p169 = scmp.eq.s32.totalorder %s168, 0
    %s171 = sadd.s32 %s170, 1
    %s172 = scalar_select %p169, %s170, %s171
    %p175 = pneg %p169
    %p176 = scmp.eq.s32.totalorder %s12, 3
    %p177 = por %p175, %p176
    %p178 = scmp.ne.s32.totalorder %s170, %s173
    %p179 = scmp.eq.s32.totalorder %s12, 0
    %p180 = por %p178, %p179
    %p181 = scmp.ne.s32.totalorder %s170, %s173
    %p182 = scmp.eq.s32.totalorder %s17, 3
    %p183 = por %p181, %p182
    %p184 = scmp.ne.s32.totalorder %s173, %s174
    %p185 = scmp.eq.s32.totalorder %s17, 0
    %p186 = por %p184, %p185
    %p187 = scmp.ne.s32.totalorder %s173, %s174
    %p188 = scmp.eq.s32.totalorder %s18, 3
    %p189 = por %p187, %p188
    %p191 = scmp.ne.s32.totalorder %s174, %s190
    %p192 = scmp.eq.s32.totalorder %s18, 0
    %p193 = por %p191, %p192
    %s194 = ssub.s32 %s19, %s31
    %s195 = ssub.s32 %s20, %s27
    %s196 = sor.u32 %s194, %s195
    %p197 = scmp.eq.s32.totalorder %s196, 0
    %s199 = sadd.s32 %s198, 1
    %s200 = scalar_select %p197, %s198, %s199
    %p203 = pneg %p197
    %p204 = scmp.eq.s32.totalorder %s12, 3
    %p205 = por %p203, %p204
    %p206 = scmp.ne.s32.totalorder %s198, %s201
    %p207 = scmp.eq.s32.totalorder %s12, 0
    %p208 = por %p206, %p207
    %p209 = scmp.ne.s32.totalorder %s198, %s201
    %p210 = scmp.eq.s32.totalorder %s17, 3
    %p211 = por %p209, %p210
    %p212 = scmp.ne.s32.totalorder %s201, %s202
    %p213 = scmp.eq.s32.totalorder %s17, 0
    %p214 = por %p212, %p213
    %p215 = scmp.ne.s32.totalorder %s201, %s202
    %p216 = scmp.eq.s32.totalorder %s18, 3
    %p217 = por %p215, %p216
    %p219 = scmp.ne.s32.totalorder %s202, %s218
    %p220 = scmp.eq.s32.totalorder %s18, 0
    %p221 = por %p219, %p220
    %p222 = scmp.le.s32.totalorder 1, %s12
    %p223 = scmp.lt.s32.totalorder %s12, 5
    %p224 = pnand %p222, %p223
    %p225 = pneg %p224
    // Predicated region
    $region9: #{_forward.28} parent=5 // pred_check
      _
    $region10: #{_forward.28} parent=5 // pred_check_branch
      %227 = sbr.rel (%p224) target = $region12
    $region11: #{_forward.28} parent=5 // pred_region
      %s228 = ssub.s32 %s12, 1
    $region12: #{_forward.28} parent=5 // pred_fallthru
      _
    %p229 = scmp.lt.s32.totalorder %s12, 4
    // Predicated region
    $region13: #{_forward.28} parent=5 // pred_check
      %p230 = pneg %p229
    $region14: #{_forward.28} parent=5 // pred_check_branch
      %232 = sbr.rel (%p230) target = $region16
    $region15: #{_forward.28} parent=5 // pred_region
      // Predicated region
      $region17: #{_forward.28} parent=15 // pred_check
        %p233 = pneg %p46
      $region18: #{_forward.28} parent=15 // pred_check_branch
        %235 = sbr.rel (%p233) target = $region20
      $region19: #{_forward.28} parent=15 // pred_region
        %p236 = scmp.lt.s32.totalorder %s20, 1
        %s237 = scalar_select %p236, %s20, 1
        %p238 = scmp.lt.s32.totalorder %s19, 1
        %s239 = scalar_select %p238, %s19, 1
        %s240 = smul.addr %s239, 2
        %s241 = smul.addr %s237, 4
        %s242 = sadd.s32 %s240, %s241
        %s243 = smul.addr %s242, 4
        %s244 = scalar_lea.vmem %s0, %s243
      $region20: #{_forward.28} parent=15 // pred_fallthru
        _
      // Predicated region
      $region21: #{_forward.28} parent=15 // pred_check
        %p245 = pneg %p74
      $region22: #{_forward.28} parent=15 // pred_check_branch
        %247 = sbr.rel (%p245) target = $region24
      $region23: #{_forward.28} parent=15 // pred_region
        %p248 = scmp.lt.s32.totalorder %s20, 1
        %s249 = scalar_select %p248, %s20, 1
        %p250 = scmp.lt.s32.totalorder %s19, 1
        %s251 = scalar_select %p250, %s19, 1
        %s252 = smul.addr %s251, 2
        %s253 = smul.addr %s249, 4
        %s254 = sadd.s32 %s252, %s253
        %s255 = sadd.s32 %s254, 8
        %s256 = smul.addr %s255, 4
        %s257 = scalar_lea.vmem %s1, %s256
      $region24: #{_forward.28} parent=15 // pred_fallthru
        _
      // Predicated region
      $region25: #{_forward.28} parent=15 // pred_check
        %p258 = pneg %p102
      $region26: #{_forward.28} parent=15 // pred_check_branch
        %260 = sbr.rel (%p258) target = $region28
      $region27: #{_forward.28} parent=15 // pred_region
        %p261 = scmp.lt.s32.totalorder %s20, 1
        %s262 = scalar_select %p261, %s20, 1
        %p263 = scmp.lt.s32.totalorder %s19, 1
        %s264 = scalar_select %p263, %s19, 1
        %s265 = smul.addr %s264, 2
        %s266 = smul.addr %s262, 4
        %s267 = sadd.s32 %s265, %s266
        %s268 = sadd.s32 %s267, 16
        %s269 = smul.addr %s268, 4
        %s270 = scalar_lea.vmem %s2, %s269
      $region28: #{_forward.28} parent=15 // pred_fallthru
        _
      // Predicated region
      $region29: #{_forward.28} parent=15 // pred_check
        %p271 = pneg %p128
      $region30: #{_forward.28} parent=15 // pred_check_branch
        %273 = sbr.rel (%p271) target = $region32
      $region31: #{_forward.28} parent=15 // pred_region
        %p274 = scmp.lt.s32.totalorder %s20, 1
        %s275 = scalar_select %p274, %s20, 1
        %s276 = smul.addr %s275, 2
        %s277 = smul.addr %s276, 4
        %s278 = scalar_lea.vmem %s3, %s277
      $region32: #{_forward.28} parent=15 // pred_fallthru
        _
      // Predicated region
      $region33: #{_forward.28} parent=15 // pred_check
        %p279 = pneg %p154
      $region34: #{_forward.28} parent=15 // pred_check_branch
        %281 = sbr.rel (%p279) target = $region36
      $region35: #{_forward.28} parent=15 // pred_region
        %p282 = scmp.lt.s32.totalorder %s20, 1
        %s283 = scalar_select %p282, %s20, 1
        %s284 = scalar_lea.vmem %s4, %s283
      $region36: #{_forward.28} parent=15 // pred_fallthru
        _
      // Predicated region
      $region37: #{_forward.28} parent=15 // pred_check
        %p285 = pneg %p180
      $region38: #{_forward.28} parent=15 // pred_check_branch
        %287 = sbr.rel (%p285) target = $region40
      $region39: #{_forward.28} parent=15 // pred_region
        %p288 = scmp.lt.s32.totalorder %s20, 1
        %s289 = scalar_select %p288, %s20, 1
        %s290 = scalar_lea.vmem %s5, %s289
      $region40: #{_forward.28} parent=15 // pred_fallthru
        _
    $region16: #{_forward.28} parent=5 // pred_fallthru
      _
    %p291 = scmp.le.s32.totalorder 1, %s12
    %p292 = scmp.lt.s32.totalorder %s12, 5
    %p293 = pnand %p291, %p292
    %p294 = pneg %p293
    // Predicated region
    $region41: #{_forward.28} parent=5 // pred_check
      _
    $region42: #{_forward.28} parent=5 // pred_check_branch
      %296 = sbr.rel (%p293) target = $region44
    $region43: #{_forward.28} parent=5 // pred_region
      %s297 = ssub.s32 %s12, 1
      %p298 = scmp.lt.s32.totalorder %s22, 1
      %s299 = scalar_select %p298, %s22, 1
      %p300 = scmp.lt.s32.totalorder %s21, 1
      %s301 = scalar_select %p300, %s21, 1
      %s302 = smul.addr %s301, 2
      %s303 = smul.addr %s299, 4
      %s304 = sadd.s32 %s302, %s303
      %s305 = smul.addr %s304, 4
      %s306 = scalar_lea.vmem %s0, %s305
      %p307 = pneg %p52
      %p308 = pneg %p49
      %p309 = scmp.lt.s32.totalorder %s22, 1
      %s310 = scalar_select %p309, %s22, 1
      %p311 = scmp.lt.s32.totalorder %s21, 1
      %s312 = scalar_select %p311, %s21, 1
      %s313 = smul.addr %s312, 2
      %s314 = smul.addr %s310, 4
      %s315 = sadd.s32 %s313, %s314
      %s316 = sadd.s32 %s315, 8
      %s317 = smul.addr %s316, 4
      %s318 = scalar_lea.vmem %s1, %s317
      %p319 = pneg %p80
      %p320 = pneg %p77
      %p321 = scmp.lt.s32.totalorder %s22, 1
      %s322 = scalar_select %p321, %s22, 1
      %p323 = scmp.lt.s32.totalorder %s21, 1
      %s324 = scalar_select %p323, %s21, 1
      %s325 = smul.addr %s324, 2
      %s326 = smul.addr %s322, 4
      %s327 = sadd.s32 %s325, %s326
      %s328 = sadd.s32 %s327, 16
      %s329 = smul.addr %s328, 4
      %s330 = scalar_lea.vmem %s2, %s329
      %p331 = pneg %p108
      %p332 = pneg %p105
      %p333 = scmp.lt.s32.totalorder %s22, 1
      %s334 = scalar_select %p333, %s22, 1
      %s335 = smul.addr %s334, 2
      %s336 = smul.addr %s335, 4
      %s337 = scalar_lea.vmem %s3, %s336
      %p338 = pneg %p134
      %p339 = pneg %p131
      %p340 = scmp.lt.s32.totalorder %s22, 1
      %s341 = scalar_select %p340, %s22, 1
      %s342 = scalar_lea.vmem %s4, %s341
      %p343 = pneg %p160
      %p344 = pneg %p157
      %p345 = scmp.lt.s32.totalorder %s22, 1
      %s346 = scalar_select %p345, %s22, 1
      %s347 = scalar_lea.vmem %s5, %s346
      %p348 = pneg %p186
      %p349 = pneg %p183
      %p350 = pneg %p214
      %p351 = pneg %p211
      %p352 = scmp.lt.s32.totalorder %s21, 1
      %s353 = scalar_select %p352, %s21, 1
      %p354 = scmp.lt.s32.totalorder %s22, 1
      %s355 = scalar_select %p354, %s22, 1
      %s356 = smul.addr %s353, 2
      %s357 = sadd.s32 %s355, %s356
      %s358 = smul.addr %s357, 4
      %s359 = scalar_lea.vmem %s6, %s358
      %p360 = scmp.lt.s32.totalorder %s22, 1
      %s361 = scalar_select %p360, %s22, 1
      %p362 = scmp.lt.s32.totalorder %s21, 1
      %s363 = scalar_select %p362, %s21, 1
      %s364 = smul.addr %s363, 2
      %s365 = smul.addr %s361, 4
      %s366 = sadd.s32 %s364, %s365
      %s367 = smul.addr %s366, 4
      %s368 = scalar_lea.vmem %s0, %s367
      %p369 = scmp.lt.s32.totalorder %s22, 1
      %s370 = scalar_select %p369, %s22, 1
      %p371 = scmp.lt.s32.totalorder %s21, 1
      %s372 = scalar_select %p371, %s21, 1
      %s373 = smul.addr %s372, 2
      %s374 = smul.addr %s370, 4
      %s375 = sadd.s32 %s373, %s374
      %s376 = sadd.s32 %s375, 8
      %s377 = smul.addr %s376, 4
      %s378 = scalar_lea.vmem %s1, %s377
      %p379 = scmp.lt.s32.totalorder %s22, 1
      %s380 = scalar_select %p379, %s22, 1
      %p381 = scmp.lt.s32.totalorder %s21, 1
      %s382 = scalar_select %p381, %s21, 1
      %s383 = smul.addr %s382, 2
      %s384 = smul.addr %s380, 4
      %s385 = sadd.s32 %s383, %s384
      %s386 = sadd.s32 %s385, 16
      %s387 = smul.addr %s386, 4
      %s388 = scalar_lea.vmem %s2, %s387
      %p389 = scmp.lt.s32.totalorder %s22, 1
      %s390 = scalar_select %p389, %s22, 1
      %s391 = smul.addr %s390, 2
      %s392 = smul.addr %s391, 4
      %s393 = scalar_lea.vmem %s3, %s392
      %p394 = scmp.lt.s32.totalorder %s22, 1
      %s395 = scalar_select %p394, %s22, 1
      %s396 = scalar_lea.vmem %s4, %s395
      %p397 = scmp.lt.s32.totalorder %s22, 1
      %s398 = scalar_select %p397, %s22, 1
      %s399 = scalar_lea.vmem %s5, %s398
      %p400 = scmp.lt.s32.totalorder %s21, 1
      %s401 = scalar_select %p400, %s21, 1
      %p402 = scmp.lt.s32.totalorder %s22, 1
      %s403 = scalar_select %p402, %s22, 1
      %s404 = smul.addr %s401, 2
      %s405 = sadd.s32 %s403, %s404
      %s406 = smul.addr %s405, 4
      %s407 = scalar_lea.vmem %s6, %s406
      %v409 = vld [vmem:[%s368 + $0x4] sm:$0xf]
      %v410 = vunpack.c.l.bf16 %v409
      %v411 = vld [vmem:[%s378] sm:$0xf]
      %v412 = vld [vmem:[%s378 + $0x4] sm:$0xf]
      %v413 = vld [vmem:[%s388] sm:$0xf]
      %v414 = vld [vmem:[%s388 + $0x4] sm:$0xf]
      %v415 = vld [vmem:[%s393] sm:$0xf]
      %v416 = vld [vmem:[%s393 + $0x4] sm:$0xf]
      %v417 = vld [vmem:[%s396] sm:$0x1]
      %v419 = vperm.slane %v417, 0
      %v421 = vadd.f32 %v410, %v419
      %v422 = vpack.c.bf16 %v421, %v421
      %v423 = vld [vmem:[%s399] sm:$0x1]
      %v425 = vperm.slane %v423, 0
      %v427 = vadd.f32 %v410, %v425
      %v428 = vpack.c.bf16 %v427, %v427
      %v431 = vunpack.c.l.b16 %v415
      %v432 = vunpack.c.l.b16 %v416
      %v433 = vpack.c.b16 %v432, %v431
      %vm434 = vcmask 130048
      %v436 = vsel %vm434, %v428, 0
      %v439 = vsel %vm434, %v433, 0
      %441 = vmatpush.bf16.xpose.msra.mxu0 0
      %442 = vmatpush.bf16.xpose.msra.mxu0 0
      %443 = vmatpush.bf16.xpose.msra.mxu0 0
      %444 = vmatpush.bf16.xpose.msra.mxu0 0
      %445 = vmatpush.bf16.xpose.msra.mxu0 0
      %446 = vmatpush.bf16.xpose.msra.mxu0 0
      %447 = vmatpush.bf16.xpose.msra.mxu0 0
      %448 = vmatpush.bf16.xpose.msra.mxu0 %v439
      %449 = vmatmul.bf16.gmra.mxu0 %v436
      %v450 = vpop.f32.mrf.mxu0
      %v451 = vadd.f32 0.0, %v450
      %v452 = vpop.f32.mrf.mxu0
      %453 = vdwg.mxu0
      %455 = vrot.lane.b32.xlu0 %v451, 16
      %v456 = vpop.permute.xlu0 %455
      %v458 = vsel %vm434, %v451, %v456
      %460 = vrot.lane.b32.xlu0 %v458, 1
      %v461 = vpop.permute.xlu0 %460
      %463 = vrot.lane.b32.xlu0 %v458, 2
      %v464 = vpop.permute.xlu0 %463
      %466 = vrot.lane.b32.xlu0 %v458, 3
      %v467 = vpop.permute.xlu0 %466
      %469 = vrot.lane.b32.xlu0 %v458, 4
      %v470 = vpop.permute.xlu0 %469
      %472 = vrot.lane.b32.xlu0 %v458, 5
      %v473 = vpop.permute.xlu0 %472
      %475 = vrot.lane.b32.xlu0 %v458, 6
      %v476 = vpop.permute.xlu0 %475
      %478 = vrot.lane.b32.xlu0 %v458, 7
      %v479 = vpop.permute.xlu0 %478
      %vm481 = vcmask 1040384
      %v482 = vsel %vm481, %v458, %v461
      %vm483 = vcmask 1041408
      %v484 = vsel %vm483, %v482, %v464
      %vm485 = vcmask 1042432
      %v486 = vsel %vm485, %v484, %v467
      %vm487 = vcmask 1043456
      %v488 = vsel %vm487, %v486, %v470
      %vm489 = vcmask 1044480
      %v490 = vsel %vm489, %v488, %v473
      %vm491 = vcmask 1045504
      %v492 = vsel %vm491, %v490, %v476
      %vm493 = vcmask 1046528
      %v494 = vsel %vm493, %v492, %v479
      %v497 = vunpack.c.l.b16 %v411
      %v498 = vunpack.c.l.b16 %v412
      %v499 = vpack.c.b16 %v498, %v497
      %501 = vrot.lane.b32.xlu0 %v494, 121
      %v502 = vpop.permute.xlu0 %501
      %v505 = vsel %vm434, %v422, 0
      %v508 = vsel %vm434, %v499, 0
      %510 = vmatpush.bf16.xpose.msra.mxu0 0
      %511 = vmatpush.bf16.xpose.msra.mxu0 0
      %512 = vmatpush.bf16.xpose.msra.mxu0 0
      %513 = vmatpush.bf16.xpose.msra.mxu0 0
      %514 = vmatpush.bf16.xpose.msra.mxu0 0
      %515 = vmatpush.bf16.xpose.msra.mxu0 0
      %516 = vmatpush.bf16.xpose.msra.mxu0 0
      %517 = vmatpush.bf16.xpose.msra.mxu0 %v508
      %518 = vmatmul.bf16.gmra.mxu0 %v505
      %v519 = vpop.f32.mrf.mxu0
      %v520 = vadd.f32 %v502, %v519
      %v521 = vpop.f32.mrf.mxu0
      %522 = vdwg.mxu0
      %v523 = vmul.f32 %v520, 0.25
      %v524 = vlaneseq
      %v525 = vshrl.u32 %v524, 7
      %v526 = vlaneseq
      %v527 = vand.u32 %v526, 127
      %v528 = vadd.s32 %v525, 8
      %vm529 = vcmp.gt.s32.totalorder %v527, %v528
      %v530 = vsel %vm529, -1e+30, %v523
      %v531 = vsel %vm434, %v530, -inf
      %532 = vmax.xlane.f32.xlu0 %v531
      %v533 = vpop.xlane.xlu0 %532
      %v534 = vsub.f32 %v530, %v533
      %v535 = vmul.f32 %v534, 1.442695
      %v536 = vpow.pop %v535
      %v537 = vsel %vm434, %v536, 0.0
      %538 = vadd.xlane.f32.xlu0 %v537
      %v539 = vpop.xlane.xlu0 %538
      %v540 = vrcp.pop %v539
      %v541 = vmul.f32 %v536, %v540
      %v542 = vpack.c.bf16 %v541, %v541
      %v545 = vunpack.c.l.b16 %v413
      %v546 = vunpack.c.l.b16 %v414
      %v547 = vpack.c.b16 %v546, %v545
      %v550 = vsel %vm434, %v542, 0
      %552 = vmatpush.bf16.msra.mxu0 0
      %553 = vmatpush.bf16.msra.mxu0 0
      %554 = vmatpush.bf16.msra.mxu0 0
      %555 = vmatpush.bf16.msra.mxu0 0
      %556 = vmatpush.bf16.msra.mxu0 0
      %557 = vmatpush.bf16.msra.mxu0 0
      %558 = vmatpush.bf16.msra.mxu0 0
      %559 = vmatpush.bf16.msra.mxu0 %v547
      %560 = vmatmul.bf16.gmra.mxu0 %v550
      %v561 = vpop.f32.mrf.mxu0
      %v562 = vadd.f32 0.0, %v561
      %v563 = vpop.f32.mrf.mxu0
      %564 = vdwg.mxu0
      %v565 = vpack.c.bf16 %v562, %v562
      %vm566 = vcmask 125952
      %567 = vst.msk [vmem:[%s407] sm:$0xf] %vm566, %v565
      %p568 = scmp.lt.s32.totalorder %s21, 1
      %s569 = scalar_select %p568, %s21, 1
      %p570 = scmp.lt.s32.totalorder %s22, 1
      %s571 = scalar_select %p570, %s22, 1
      %s572 = smul.addr %s569, 2
      %s573 = sadd.s32 %s571, %s572
      %s574 = smul.addr %s573, 4
      %s575 = scalar_lea.vmem %s6, %s574
      // Predicated region
      $region45: #{_forward.28} parent=43 // pred_check
        %p576 = pneg %p211
      $region46: #{_forward.28} parent=43 // pred_check_branch
        %578 = sbr.rel (%p576) target = $region48
      $region47: #{_forward.28} parent=43 // pred_region
        _
      $region48: #{_forward.28} parent=43 // pred_fallthru
        _
    $region44: #{_forward.28} parent=5 // pred_fallthru
      _
    %p579 = scmp.le.s32.totalorder 2, %s12
    // Predicated region
    $region49: #{_forward.28} parent=5 // pred_check
      %p580 = pneg %p579
    $region50: #{_forward.28} parent=5 // pred_check_branch
      %582 = sbr.rel (%p580) target = $region52
    $region51: #{_forward.28} parent=5 // pred_region
      %s583 = ssub.s32 %s12, 2
      // Predicated region
      $region53: #{_forward.28} parent=51 // pred_check
        %p584 = pneg %p217
      $region54: #{_forward.28} parent=51 // pred_check_branch
        %586 = sbr.rel (%p584) target = $region56
      $region55: #{_forward.28} parent=51 // pred_region
        %p587 = scmp.lt.s32.totalorder %s23, 1
        %s588 = scalar_select %p587, %s23, 1
        %p589 = scmp.lt.s32.totalorder %s24, 1
        %s590 = scalar_select %p589, %s24, 1
        %s591 = smul.addr %s588, 2
        %s592 = sadd.s32 %s590, %s591
        %s593 = smul.addr %s592, 4
        %s594 = scalar_lea.vmem %s6, %s593
      $region56: #{_forward.28} parent=51 // pred_fallthru
        _
    $region52: #{_forward.28} parent=5 // pred_fallthru
      _
  $region6: #{_forward.28} parent=0 // loop_footer
    %s16 = sadd.s32 1, %s12
  $region7: #{_forward.28} parent=0 // loop_footer_branch
    %11 = sbr.rel target = $region3
  $region8: #{_forward.28} parent=0 // loop_exit
    _

// kernel: _forward.30
$region0: #{_forward.30}
  #allocation0 [shape = 'u32[]', space=smem, size = 0x4, offset = 0x4, fixed_abs, tag = 'smem constant byte address 0x4 - core index']
  #allocation1 [shape = 'u32[72,128]{1,0:T(1,128)}', space=vmem, size = 0x9000, scoped, tag = 'internal scratch']
  %s0 = inlined_call_operand.vmem [shape: f32[16,32], index: 0, kind: input, shape index: {}]
  %s1 = inlined_call_operand.vmem [shape: f32[16,32], index: 1, kind: input, shape index: {}]
  %s2 = inlined_call_operand.vmem [shape: f32[1,32], index: 2, kind: input, shape index: {}]
  %s3 = inlined_call_operand.vmem [shape: f32[1,32], index: 3, kind: input, shape index: {}]
  %s4 = inlined_call_operand.vmem [shape: f32[16,32], index: 4, kind: output, shape index: {}]
  %s5 = sld [smem:[#allocation0]]
  $region26: #{_forward.30} parent=0
    _
  %s7 = ssub.s32 1, %s5
  %s8 = scalar_select 0, %s7, %s5
  // Predicated region
  $region2: #{_forward.30} parent=0 // pred_check
    _
  $region3: #{_forward.30} parent=0 // pred_check_branch
    %10 = sbr.rel (0) target = $region5
  $region4: #{_forward.30} parent=0 // pred_region
    _
  $region5: #{_forward.30} parent=0 // pred_fallthru
    _
  // Predicated region
  $region6: #{_forward.30} parent=0 // pred_check
    _
  $region7: #{_forward.30} parent=0 // pred_check_branch
    %12 = sbr.rel (0) target = $region9
  $region8: #{_forward.30} parent=0 // pred_region
    _
  $region9: #{_forward.30} parent=0 // pred_fallthru
    _
  // Predicated region
  $region10: #{_forward.30} parent=0 // pred_check
    _
  $region11: #{_forward.30} parent=0 // pred_check_branch
    %14 = sbr.rel (0) target = $region13
  $region12: #{_forward.30} parent=0 // pred_region
    _
  $region13: #{_forward.30} parent=0 // pred_fallthru
    _
  // Predicated region
  $region14: #{_forward.30} parent=0 // pred_check
    _
  $region15: #{_forward.30} parent=0 // pred_check_branch
    %16 = sbr.rel (0) target = $region17
  $region16: #{_forward.30} parent=0 // pred_region
    _
  $region17: #{_forward.30} parent=0 // pred_fallthru
    _
  %v17 = vld [vmem:[%s0] sm:$0xff]
  %v18 = vld [vmem:[%s0 + $0x8] sm:$0xff]
  %v19 = vld [vmem:[%s1] sm:$0xff]
  %v20 = vld [vmem:[%s1 + $0x8] sm:$0xff]
  %v21 = vadd.f32 %v17, %v19
  %v22 = vadd.f32 %v18, %v20
  %vm23 = vcmask 261120
  %v24 = vsel %vm23, %v21, 0.0
  %25 = vadd.xlane.f32.xlu0 %v24
  %v26 = vpop.xlane.xlu0 %25
  %v27 = vsel %vm23, %v22, 0.0
  %28 = vadd.xlane.f32.xlu0 %v27
  %v29 = vpop.xlane.xlu0 %28
  %v30 = vrcp.pop 32.0
  %v31 = vmul.f32 32.0, %v30
  %v32 = vsub.f32 1.0, %v31
  %v33 = vmul.f32 %v30, %v32
  %v34 = vadd.f32 %v30, %v33
  %vm35 = vweird.f32 %v30
  %v36 = vsel %vm35, %v30, %v34
  %v37 = vmul.f32 %v26, %v36
  %v38 = vmul.f32 %v29, %v36
  %v39 = vsub.f32 %v21, %v37
  %v40 = vsub.f32 %v22, %v38
  %v41 = vmul.f32 %v39, %v39
  %v42 = vmul.f32 %v40, %v40
  %v43 = vsel %vm23, %v41, 0.0
  %44 = vadd.xlane.f32.xlu0 %v43
  %v45 = vpop.xlane.xlu0 %44
  %v46 = vsel %vm23, %v42, 0.0
  %47 = vadd.xlane.f32.xlu0 %v46
  %v48 = vpop.xlane.xlu0 %47
  %v49 = vmul.f32 %v45, %v36
  %v50 = vmul.f32 %v48, %v36
  %v51 = vadd.f32 %v49, 1e-05
  %v52 = vadd.f32 %v50, 1e-05
  %v53 = vrsqrt.pop %v51
  %v54 = vmul.f32 %v53, %v51
  %v55 = vmul.f32 %v54, %v53
  %v56 = vmul.f32 0.5, %v55
  %v57 = vsub.f32 1.5, %v56
  %v58 = vmul.f32 %v53, %v57
  %vm59 = vweird.f32 %v51
  %vm60 = vweird.f32 %v53
  %vm61 = vmor %vm59, %vm60
  %v62 = vsel %vm61, %v53, %v58
  %v63 = vrsqrt.pop %v52
  %v64 = vmul.f32 %v63, %v52
  %v65 = vmul.f32 %v64, %v63
  %v66 = vmul.f32 0.5, %v65
  %v67 = vsub.f32 1.5, %v66
  %v68 = vmul.f32 %v63, %v67
  %vm69 = vweird.f32 %v52
  %vm70 = vweird.f32 %v63
  %vm71 = vmor %vm69, %vm70
  %v72 = vsel %vm71, %v63, %v68
  %v73 = vmul.f32 %v39, %v62
  %v74 = vmul.f32 %v40, %v72
  %v75 = vld [vmem:[%s2] sm:$0x1]
  %v77 = vperm.slane %v75, 0
  %v79 = vmul.f32 %v73, %v77
  %v80 = vmul.f32 %v74, %v77
  %v81 = vld [vmem:[%s3] sm:$0x1]
  %v83 = vperm.slane %v81, 0
  %v85 = vadd.f32 %v79, %v83
  %v86 = vadd.f32 %v80, %v83
  %87 = vst.msk [vmem:[%s4] sm:$0xff] %vm23, %v85
  %88 = vst.msk [vmem:[%s4 + $0x8] sm:$0xff] %vm23, %v86
  // Predicated region
  $region18: #{_forward.30} parent=0 // pred_check
    _
  $region19: #{_forward.30} parent=0 // pred_check_branch
    %90 = sbr.rel (0) target = $region21
  $region20: #{_forward.30} parent=0 // pred_region
    _
  $region21: #{_forward.30} parent=0 // pred_fallthru
    _
  // Predicated region
  $region22: #{_forward.30} parent=0 // pred_check
    _
  $region23: #{_forward.30} parent=0 // pred_check_branch
    %92 = sbr.rel (0) target = $region25
  $region24: #{_forward.30} parent=0 // pred_region
    _
  $region25: #{_forward.30} parent=0 // pred_fallthru
    _

// kernel: _forward.32
$region0: #{_forward.32}
  #allocation0 [shape = 'u32[]', space=smem, size = 0x4, offset = 0x4, fixed_abs, tag = 'smem constant byte address 0x4 - core index']
  #allocation1 [shape = 'u32[72,128]{1,0:T(1,128)}', space=vmem, size = 0x9000, scoped, tag = 'internal scratch']
  #allocation2 [shape = 'f32[16,32]{1,0:T(8,128)}', space=vmem, size = 0x2000, scoped, tag = 'scratch operand']
  %s0 = inlined_call_operand.vmem [shape: bf16[16,64], index: 0, kind: input, shape index: {}]
  %s1 = inlined_call_operand.vmem [shape: bf16[64,32], index: 1, kind: input, shape index: {}]
  %s2 = inlined_call_operand.vmem [shape: f32[1,32], index: 2, kind: input, shape index: {}]
  %s3 = inlined_call_operand.vmem [shape: f32[16,32], index: 3, kind: output, shape index: {}]
  %s4 = sld [smem:[#allocation0]]
  $region30: #{_forward.32} parent=0
    _
  %s6 = ssub.s32 1, %s4
  %s7 = scalar_select 0, %s6, %s4
  // Predicated region
  $region2: #{_forward.32} parent=0 // pred_check
    _
  $region3: #{_forward.32} parent=0 // pred_check_branch
    %9 = sbr.rel (0) target = $region5
  $region4: #{_forward.32} parent=0 // pred_region
    _
  $region5: #{_forward.32} parent=0 // pred_fallthru
    _
  // Predicated region
  $region6: #{_forward.32} parent=0 // pred_check
    _
  $region7: #{_forward.32} parent=0 // pred_check_branch
    %11 = sbr.rel (0) target = $region9
  $region8: #{_forward.32} parent=0 // pred_region
    _
  $region9: #{_forward.32} parent=0 // pred_fallthru
    _
  // Predicated region
  $region10: #{_forward.32} parent=0 // pred_check
    _
  $region11: #{_forward.32} parent=0 // pred_check_branch
    %13 = sbr.rel (0) target = $region13
  $region12: #{_forward.32} parent=0 // pred_region
    _
  $region13: #{_forward.32} parent=0 // pred_fallthru
    _
  %p15 = scmp.eq.s32.totalorder 0, 0
  // Predicated region
  $region14: #{_forward.32} parent=0 // pred_check
    %p16 = pneg %p15
  $region15: #{_forward.32} parent=0 // pred_check_branch
    %18 = sbr.rel (%p16) target = $region17
  $region16: #{_forward.32} parent=0 // pred_region
    %vm19 = vcmask 261120
    %20 = vst.msk [vmem:[#allocation2] sm:$0xff] %vm19, 0.0
    %21 = vst.msk [vmem:[#allocation2 + $0x8] sm:$0xff] %vm19, 0.0
  $region17: #{_forward.32} parent=0 // pred_fallthru
    _
  %v22 = vld [vmem:[#allocation2] sm:$0xff]
  %v23 = vld [vmem:[#allocation2 + $0x8] sm:$0xff]
  %v24 = vld [vmem:[%s0] sm:$0xf]
  %v25 = vld [vmem:[%s0 + $0x4] sm:$0xf]
  %v26 = vld [vmem:[%s1] sm:$0xf]
  %v27 = vld [vmem:[%s1 + $0x4] sm:$0xf]
  %v28 = vld [vmem:[%s1 + $0x8] sm:$0xf]
  %v29 = vld [vmem:[%s1 + $0xc] sm:$0xf]
  %v30 = vld [vmem:[%s1 + $0x10] sm:$0xf]
  %v31 = vld [vmem:[%s1 + $0x14] sm:$0xf]
  %v32 = vld [vmem:[%s1 + $0x18] sm:$0xf]
  %v33 = vld [vmem:[%s1 + $0x1c] sm:$0xf]
  %v36 = vunpack.c.l.b16 %v24
  %v37 = vunpack.c.l.b16 %v25
  %v38 = vpack.c.b16 %v37, %v36
  %v47 = vunpack.c.l.b16 %v26
  %v48 = vunpack.c.l.b16 %v27
  %v49 = vunpack.c.l.b16 %v28
  %v50 = vunpack.c.l.b16 %v29
  %v51 = vunpack.c.l.b16 %v30
  %v52 = vunpack.c.l.b16 %v31
  %v53 = vunpack.c.l.b16 %v32
  %v54 = vunpack.c.l.b16 %v33
  %v55 = vpack.c.b16 %v48, %v47
  %v56 = vpack.c.b16 %v50, %v49
  %v57 = vpack.c.b16 %v52, %v51
  %v58 = vpack.c.b16 %v54, %v53
  %vm63 = vcmask 523264
  %v65 = vsel %vm63, %v38, 0
  %67 = vmatpush.bf16.msra.mxu0 0
  %68 = vmatpush.bf16.msra.mxu0 0
  %69 = vmatpush.bf16.msra.mxu0 0
  %70 = vmatpush.bf16.msra.mxu0 0
  %71 = vmatpush.bf16.msra.mxu0 %v58
  %72 = vmatpush.bf16.msra.mxu0 %v57
  %73 = vmatpush.bf16.msra.mxu0 %v56
  %74 = vmatpush.bf16.msra.mxu0 %v55
  %75 = vmatmul.bf16.gmra.mxu0 %v65
  %v76 = vpop.f32.mrf.mxu0
  %v77 = vadd.f32 0.0, %v76
  %v78 = vpop.f32.mrf.mxu0
  %v79 = vadd.f32 0.0, %v78
  %80 = vdwg.mxu0
  %v81 = vadd.f32 %v22, %v77
  %v82 = vadd.f32 %v23, %v79
  %vm83 = vcmask 261120
  %84 = vst.msk [vmem:[#allocation2] sm:$0xff] %vm83, %v81
  %85 = vst.msk [vmem:[#allocation2 + $0x8] sm:$0xff] %vm83, %v82
  // Predicated region
  $region18: #{_forward.32} parent=0 // pred_check
    %p86 = pneg %p15
  $region19: #{_forward.32} parent=0 // pred_check_branch
    %88 = sbr.rel (%p86) target = $region21
  $region20: #{_forward.32} parent=0 // pred_region
    %v89 = vld [vmem:[#allocation2] sm:$0xff]
    %v90 = vld [vmem:[#allocation2 + $0x8] sm:$0xff]
    %v91 = vld [vmem:[%s2] sm:$0x1]
    %v93 = vperm.slane %v91, 0
    %v95 = vadd.f32 %v89, %v93
    %v96 = vadd.f32 %v90, %v93
    %97 = vst.msk [vmem:[%s3] sm:$0xff] %vm83, %v95
    %98 = vst.msk [vmem:[%s3 + $0x8] sm:$0xff] %vm83, %v96
  $region21: #{_forward.32} parent=0 // pred_fallthru
    _
  // Predicated region
  $region22: #{_forward.32} parent=0 // pred_check
    _
  $region23: #{_forward.32} parent=0 // pred_check_branch
    %100 = sbr.rel (0) target = $region25
  $region24: #{_forward.32} parent=0 // pred_region
    _
  $region25: #{_forward.32} parent=0 // pred_fallthru
    _
  // Predicated region
  $region26: #{_forward.32} parent=0 // pred_check
    _
  $region27: #{_forward.32} parent=0 // pred_check_branch
    %102 = sbr.rel (0) target = $region29
  $region28: #{_forward.32} parent=0 // pred_region
    _
  $region29: #{_forward.32} parent=0 // pred_fallthru
    _

// kernel: _forward.31
$region0: #{_forward.31}
  #allocation0 [shape = 'u32[]', space=smem, size = 0x4, offset = 0x4, fixed_abs, tag = 'smem constant byte address 0x4 - core index']
  #allocation1 [shape = 'u32[72,128]{1,0:T(1,128)}', space=vmem, size = 0x9000, scoped, tag = 'internal scratch']
  #allocation2 [shape = 'f32[16,64]{1,0:T(8,128)}', space=vmem, size = 0x2000, scoped, tag = 'scratch operand']
  %s0 = inlined_call_operand.vmem [shape: bf16[16,32], index: 0, kind: input, shape index: {}]
  %s1 = inlined_call_operand.vmem [shape: bf16[32,64], index: 1, kind: input, shape index: {}]
  %s2 = inlined_call_operand.vmem [shape: f32[1,64], index: 2, kind: input, shape index: {}]
  %s3 = inlined_call_operand.vmem [shape: bf16[16,64], index: 3, kind: output, shape index: {}]
  %s4 = sld [smem:[#allocation0]]
  $region30: #{_forward.31} parent=0
    _
  %s6 = ssub.s32 1, %s4
  %s7 = scalar_select 0, %s6, %s4
  // Predicated region
  $region2: #{_forward.31} parent=0 // pred_check
    _
  $region3: #{_forward.31} parent=0 // pred_check_branch
    %9 = sbr.rel (0) target = $region5
  $region4: #{_forward.31} parent=0 // pred_region
    _
  $region5: #{_forward.31} parent=0 // pred_fallthru
    _
  // Predicated region
  $region6: #{_forward.31} parent=0 // pred_check
    _
  $region7: #{_forward.31} parent=0 // pred_check_branch
    %11 = sbr.rel (0) target = $region9
  $region8: #{_forward.31} parent=0 // pred_region
    _
  $region9: #{_forward.31} parent=0 // pred_fallthru
    _
  // Predicated region
  $region10: #{_forward.31} parent=0 // pred_check
    _
  $region11: #{_forward.31} parent=0 // pred_check_branch
    %13 = sbr.rel (0) target = $region13
  $region12: #{_forward.31} parent=0 // pred_region
    _
  $region13: #{_forward.31} parent=0 // pred_fallthru
    _
  %p15 = scmp.eq.s32.totalorder 0, 0
  // Predicated region
  $region14: #{_forward.31} parent=0 // pred_check
    %p16 = pneg %p15
  $region15: #{_forward.31} parent=0 // pred_check_branch
    %18 = sbr.rel (%p16) target = $region17
  $region16: #{_forward.31} parent=0 // pred_region
    %vm19 = vcmask 523264
    %20 = vst.msk [vmem:[#allocation2] sm:$0xff] %vm19, 0.0
    %21 = vst.msk [vmem:[#allocation2 + $0x8] sm:$0xff] %vm19, 0.0
  $region17: #{_forward.31} parent=0 // pred_fallthru
    _
  %v22 = vld [vmem:[#allocation2] sm:$0xff]
  %v23 = vld [vmem:[#allocation2 + $0x8] sm:$0xff]
  %v24 = vld [vmem:[%s0] sm:$0xf]
  %v25 = vld [vmem:[%s0 + $0x4] sm:$0xf]
  %v26 = vld [vmem:[%s1] sm:$0xf]
  %v27 = vld [vmem:[%s1 + $0x4] sm:$0xf]
  %v28 = vld [vmem:[%s1 + $0x8] sm:$0xf]
  %v29 = vld [vmem:[%s1 + $0xc] sm:$0xf]
  %v32 = vunpack.c.l.b16 %v24
  %v33 = vunpack.c.l.b16 %v25
  %v34 = vpack.c.b16 %v33, %v32
  %v39 = vunpack.c.l.b16 %v26
  %v40 = vunpack.c.l.b16 %v27
  %v41 = vunpack.c.l.b16 %v28
  %v42 = vunpack.c.l.b16 %v29
  %v43 = vpack.c.b16 %v40, %v39
  %v44 = vpack.c.b16 %v42, %v41
  %vm47 = vcmask 261120
  %v49 = vsel %vm47, %v34, 0
  %51 = vmatpush.bf16.msra.mxu0 0
  %52 = vmatpush.bf16.msra.mxu0 0
  %53 = vmatpush.bf16.msra.mxu0 0
  %54 = vmatpush.bf16.msra.mxu0 0
  %55 = vmatpush.bf16.msra.mxu0 0
  %56 = vmatpush.bf16.msra.mxu0 0
  %57 = vmatpush.bf16.msra.mxu0 %v44
  %58 = vmatpush.bf16.msra.mxu0 %v43
  %59 = vmatmul.bf16.gmra.mxu0 %v49
  %v60 = vpop.f32.mrf.mxu0
  %v61 = vadd.f32 0.0, %v60
  %v62 = vpop.f32.mrf.mxu0
  %v63 = vadd.f32 0.0, %v62
  %64 = vdwg.mxu0
  %v65 = vadd.f32 %v22, %v61
  %v66 = vadd.f32 %v23, %v63
  %vm67 = vcmask 523264
  %68 = vst.msk [vmem:[#allocation2] sm:$0xff] %vm67, %v65
  %69 = vst.msk [vmem:[#allocation2 + $0x8] sm:$0xff] %vm67, %v66
  // Predicated region
  $region18: #{_forward.31} parent=0 // pred_check
    %p70 = pneg %p15
  $region19: #{_forward.31} parent=0 // pred_check_branch
    %72 = sbr.rel (%p70) target = $region21
  $region20: #{_forward.31} parent=0 // pred_region
    %v73 = vld [vmem:[#allocation2] sm:$0xff]
    %v74 = vld [vmem:[#allocation2 + $0x8] sm:$0xff]
    %v75 = vld [vmem:[%s2] sm:$0x1]
    %v77 = vperm.slane %v75, 0
    %v79 = vadd.f32 %v73, %v77
    %v80 = vadd.f32 %v74, %v77
    %v81 = vmax.f32 %v79, 0.0
    %v82 = vmax.f32 %v80, 0.0
    %v83 = vpack.c.bf16 %v81, %v81
    %v84 = vpack.c.bf16 %v82, %v82
    %vm85 = vcmask 519168
    %86 = vst.msk [vmem:[%s3] sm:$0xf] %vm85, %v83
    %87 = vst.msk [vmem:[%s3 + $0x4] sm:$0xf] %vm85, %v84
  $region21: #{_forward.31} parent=0 // pred_fallthru
    _
  // Predicated region
  $region22: #{_forward.31} parent=0 // pred_check
    _
  $region23: #{_forward.31} parent=0 // pred_check_branch
    %89 = sbr.rel (0) target = $region25
  $region24: #{_forward.31} parent=0 // pred_region
    _
  $region25: #{_forward.31} parent=0 // pred_fallthru
    _
  // Predicated region
  $region26: #{_forward.31} parent=0 // pred_check
    _
  $region27: #{_forward.31} parent=0 // pred_check_branch
    %91 = sbr.rel (0) target = $region29
  $region28: #{_forward.31} parent=0 // pred_region
    _
  $region29: #{_forward.31} parent=0 // pred_fallthru
    _

// kernel: _forward.50
$region0: #{_forward.50}
  #allocation0 [shape = 'u32[]', space=smem, size = 0x4, offset = 0x4, fixed_abs, tag = 'smem constant byte address 0x4 - core index']
  #allocation1 [shape = 'u32[72,128]{1,0:T(1,128)}', space=vmem, size = 0x9000, scoped, tag = 'internal scratch']
  %s0 = inlined_call_operand.vmem [shape: f32[16,32], index: 0, kind: input, shape index: {}]
  %s1 = inlined_call_operand.vmem [shape: f32[16,32], index: 1, kind: input, shape index: {}]
  %s2 = inlined_call_operand.vmem [shape: f32[1,32], index: 2, kind: input, shape index: {}]
  %s3 = inlined_call_operand.vmem [shape: f32[1,32], index: 3, kind: input, shape index: {}]
  %s4 = inlined_call_operand.hbm [shape: f32[16,32], index: 4, kind: output, shape index: {}]
  %s5 = sld [smem:[#allocation0]]
  $region26: #{_forward.50} parent=0
    _
  %s7 = ssub.s32 1, %s5
  %s8 = scalar_select 0, %s7, %s5
  $region1: #{_forward.50} parent=0
    #allocation2 [shape = 'u8[8192]{0}', space=vmem, size = 0x2000, scoped, tag = 'output window, operand 0, single buffered']
    #allocation3 [shape = 's32[1]{0}', space=sflag, size = 0x4, scoped, tag = 'scoped memory for _forward.50']
    %9 = vsyncpa [#allocation3], 0
    // Predicated region
    $region2: #{_forward.50} parent=1 // pred_check
      _
    $region3: #{_forward.50} parent=1 // pred_check_branch
      %11 = sbr.rel (0) target = $region5
    $region4: #{_forward.50} parent=1 // pred_region
      _
    $region5: #{_forward.50} parent=1 // pred_fallthru
      _
    // Predicated region
    $region6: #{_forward.50} parent=1 // pred_check
      _
    $region7: #{_forward.50} parent=1 // pred_check_branch
      %13 = sbr.rel (0) target = $region9
    $region8: #{_forward.50} parent=1 // pred_region
      _
    $region9: #{_forward.50} parent=1 // pred_fallthru
      _
    // Predicated region
    $region10: #{_forward.50} parent=1 // pred_check
      _
    $region11: #{_forward.50} parent=1 // pred_check_branch
      %15 = sbr.rel (0) target = $region13
    $region12: #{_forward.50} parent=1 // pred_region
      _
    $region13: #{_forward.50} parent=1 // pred_fallthru
      _
    // Predicated region
    $region14: #{_forward.50} parent=1 // pred_check
      _
    $region15: #{_forward.50} parent=1 // pred_check_branch
      %17 = sbr.rel (0) target = $region17
    $region16: #{_forward.50} parent=1 // pred_region
      _
    $region17: #{_forward.50} parent=1 // pred_fallthru
      _
    %v18 = vld [vmem:[%s0] sm:$0xff]
    %v19 = vld [vmem:[%s0 + $0x8] sm:$0xff]
    %v20 = vld [vmem:[%s1] sm:$0xff]
    %v21 = vld [vmem:[%s1 + $0x8] sm:$0xff]
    %v22 = vadd.f32 %v18, %v20
    %v23 = vadd.f32 %v19, %v21
    %vm24 = vcmask 261120
    %v25 = vsel %vm24, %v22, 0.0
    %26 = vadd.xlane.f32.xlu0 %v25
    %v27 = vpop.xlane.xlu0 %26
    %v28 = vsel %vm24, %v23, 0.0
    %29 = vadd.xlane.f32.xlu0 %v28
    %v30 = vpop.xlane.xlu0 %29
    %v31 = vrcp.pop 32.0
    %v32 = vmul.f32 32.0, %v31
    %v33 = vsub.f32 1.0, %v32
    %v34 = vmul.f32 %v31, %v33
    %v35 = vadd.f32 %v31, %v34
    %vm36 = vweird.f32 %v31
    %v37 = vsel %vm36, %v31, %v35
    %v38 = vmul.f32 %v27, %v37
    %v39 = vmul.f32 %v30, %v37
    %v40 = vsub.f32 %v22, %v38
    %v41 = vsub.f32 %v23, %v39
    %v42 = vmul.f32 %v40, %v40
    %v43 = vmul.f32 %v41, %v41
    %v44 = vsel %vm24, %v42, 0.0
    %45 = vadd.xlane.f32.xlu0 %v44
    %v46 = vpop.xlane.xlu0 %45
    %v47 = vsel %vm24, %v43, 0.0
    %48 = vadd.xlane.f32.xlu0 %v47
    %v49 = vpop.xlane.xlu0 %48
    %v50 = vmul.f32 %v46, %v37
    %v51 = vmul.f32 %v49, %v37
    %v52 = vadd.f32 %v50, 1e-05
    %v53 = vadd.f32 %v51, 1e-05
    %v54 = vrsqrt.pop %v52
    %v55 = vmul.f32 %v54, %v52
    %v56 = vmul.f32 %v55, %v54
    %v57 = vmul.f32 0.5, %v56
    %v58 = vsub.f32 1.5, %v57
    %v59 = vmul.f32 %v54, %v58
    %vm60 = vweird.f32 %v52
    %vm61 = vweird.f32 %v54
    %vm62 = vmor %vm60, %vm61
    %v63 = vsel %vm62, %v54, %v59
    %v64 = vrsqrt.pop %v53
    %v65 = vmul.f32 %v64, %v53
    %v66 = vmul.f32 %v65, %v64
    %v67 = vmul.f32 0.5, %v66
    %v68 = vsub.f32 1.5, %v67
    %v69 = vmul.f32 %v64, %v68
    %vm70 = vweird.f32 %v53
    %vm71 = vweird.f32 %v64
    %vm72 = vmor %vm70, %vm71
    %v73 = vsel %vm72, %v64, %v69
    %v74 = vmul.f32 %v40, %v63
    %v75 = vmul.f32 %v41, %v73
    %v76 = vld [vmem:[%s2] sm:$0x1]
    %v78 = vperm.slane %v76, 0
    %v80 = vmul.f32 %v74, %v78
    %v81 = vmul.f32 %v75, %v78
    %v82 = vld [vmem:[%s3] sm:$0x1]
    %v84 = vperm.slane %v82, 0
    %v86 = vadd.f32 %v80, %v84
    %v87 = vadd.f32 %v81, %v84
    %88 = vst.msk [vmem:[#allocation2] sm:$0xff] %vm24, %v86
    %89 = vst.msk [vmem:[#allocation2 + $0x8] sm:$0xff] %vm24, %v87
    // Predicated region
    $region18: #{_forward.50} parent=1 // pred_check
      _
    $region19: #{_forward.50} parent=1 // pred_check_branch
      %91 = sbr.rel (0) target = $region21
    $region20: #{_forward.50} parent=1 // pred_region
      %93 = vsyncadd [#allocation3], 0
      %s94 = sshll.u32 [#allocation2], 4
      %s95 = int_to_ptr.vmem [resolvable:$true] %s94
      %s96 = sshll.u32 %s4, 4
      %s97 = int_to_ptr.hbm [resolvable:$true] %s96
      %102 = dma.vmem_to_hbm [thread:$0]  %s95, 256, %s97, [#allocation3], 128, 128, 8
    $region21: #{_forward.50} parent=1 // pred_fallthru
      _
    // Predicated region
    $region22: #{_forward.50} parent=1 // pred_check
      _
    $region23: #{_forward.50} parent=1 // pred_check_branch
      %104 = sbr.rel (0) target = $region25
    $region24: #{_forward.50} parent=1 // pred_region
      %106 = dma.done [#allocation3], 256
    $region25: #{_forward.50} parent=1 // pred_fallthru
      _
    %107 = vsyncpa [#allocation3], 1

// kernel: _forward.41
$region0: #{_forward.41}
  #allocation0 [shape = 'u32[]', space=smem, size = 0x4, offset = 0x4, fixed_abs, tag = 'smem constant byte address 0x4 - core index']
  #allocation1 [shape = 'u32[72,128]{1,0:T(1,128)}', space=vmem, size = 0x9000, scoped, tag = 'internal scratch']
  %s0 = inlined_call_operand.vmem [shape: bf16[2,16,32], index: 0, kind: input, shape index: {}]
  %s1 = inlined_call_operand.vmem [shape: bf16[32,64], index: 1, kind: input, shape index: {}]
  %s2 = inlined_call_operand.vmem [shape: bf16[8,32], index: 2, kind: input, shape index: {}]
  %s3 = inlined_call_operand.vmem [shape: bf16[2,8,32], index: 3, kind: output, shape index: {}]
  %s4 = sld [smem:[#allocation0]]
  $region45: #{_forward.41} parent=0
    _
  %s6 = ssub.s32 1, %s4
  %s7 = scalar_select 0, %s6, %s4
  loop: start=0, step=1, limit=4
  $region2: #{_forward.41} parent=0 // loop_pre_header
    _
  $region3: #{_forward.41} parent=0 // loop_header
    %s9 = sphi 0, %s13
    %p10 = scmp.ge.s32.totalorder %s9, 4
    %s19 = sphi 0, %s21
    %s22 = sphi 0, %s19
    %s23 = sphi 0, %s22
    %s39 = sphi 0, %s23
    %s43 = sphi 0, %s43
    %s45 = sphi 0, %s43
    %s46 = sphi 0, %s45
    %s60 = sphi 0, %s46
    %s64 = sphi 0, %s64
    %s66 = sphi 0, %s64
    %s67 = sphi 0, %s66
    %s81 = sphi 0, %s67
    %s87 = sphi 0, %s89
    %s90 = sphi 0, %s87
    %s91 = sphi 0, %s90
    %s107 = sphi 0, %s91
  $region4: #{_forward.41} parent=0 // loop_header_branch
    %12 = sbr.rel (%p10) target = $region8
  $region5: #{_forward.41} parent=0 // loop_body
    %s14 = ssub.s32 %s9, 1
    %s15 = ssub.s32 %s9, 2
    %s16 = sadd.s32 %s9, 1
    %s17 = ssub.s32 %s9, %s16
    %p18 = scmp.eq.s32.totalorder %s17, 0
    %s20 = sadd.s32 %s19, 1
    %s21 = scalar_select %p18, %s19, %s20
    %p24 = pneg %p18
    %p25 = scmp.eq.s32.totalorder %s9, 1
    %p26 = por %p24, %p25
    %p27 = scmp.ne.s32.totalorder %s19, %s22
    %p28 = scmp.eq.s32.totalorder %s9, 0
    %p29 = por %p27, %p28
    %p30 = scmp.ne.s32.totalorder %s19, %s22
    %p31 = scmp.eq.s32.totalorder %s14, 1
    %p32 = por %p30, %p31
    %p33 = scmp.ne.s32.totalorder %s22, %s23
    %p34 = scmp.eq.s32.totalorder %s14, 0
    %p35 = por %p33, %p34
    %p36 = scmp.ne.s32.totalorder %s22, %s23
    %p37 = scmp.eq.s32.totalorder %s15, 1
    %p38 = por %p36, %p37
    %p40 = scmp.ne.s32.totalorder %s23, %s39
    %p41 = scmp.eq.s32.totalorder %s15, 0
    %p42 = por %p40, %p41
    %s44 = sadd.s32 %s43, 1
    %p47 = scmp.eq.s32.totalorder %s9, 1
    %p48 = scmp.ne.s32.totalorder %s43, %s45
    %p49 = scmp.eq.s32.totalorder %s9, 0
    %p50 = por %p48, %p49
    %p51 = scmp.ne.s32.totalorder %s43, %s45
    %p52 = scmp.eq.s32.totalorder %s14, 1
    %p53 = por %p51, %p52
    %p54 = scmp.ne.s32.totalorder %s45, %s46
    %p55 = scmp.eq.s32.totalorder %s14, 0
    %p56 = por %p54, %p55
    %p57 = scmp.ne.s32.totalorder %s45, %s46
    %p58 = scmp.eq.s32.totalorder %s15, 1
    %p59 = por %p57, %p58
    %p61 = scmp.ne.s32.totalorder %s46, %s60
    %p62 = scmp.eq.s32.totalorder %s15, 0
    %p63 = por %p61, %p62
    %s65 = sadd.s32 %s64, 1
    %p68 = scmp.eq.s32.totalorder %s9, 1
    %p69 = scmp.ne.s32.totalorder %s64, %s66
    %p70 = scmp.eq.s32.totalorder %s9, 0
    %p71 = por %p69, %p70
    %p72 = scmp.ne.s32.totalorder %s64, %s66
    %p73 = scmp.eq.s32.totalorder %s14, 1
    %p74 = por %p72, %p73
    %p75 = scmp.ne.s32.totalorder %s66, %s67
    %p76 = scmp.eq.s32.totalorder %s14, 0
    %p77 = por %p75, %p76
    %p78 = scmp.ne.s32.totalorder %s66, %s67
    %p79 = scmp.eq.s32.totalorder %s15, 1
    %p80 = por %p78, %p79
    %p82 = scmp.ne.s32.totalorder %s67, %s81
    %p83 = scmp.eq.s32.totalorder %s15, 0
    %p84 = por %p82, %p83
    %s85 = ssub.s32 %s9, %s16
    %p86 = scmp.eq.s32.totalorder %s85, 0
    %s88 = sadd.s32 %s87, 1
    %s89 = scalar_select %p86, %s87, %s88
    %p92 = pneg %p86
    %p93 = scmp.eq.s32.totalorder %s9, 1
    %p94 = por %p92, %p93
    %p95 = scmp.ne.s32.totalorder %s87, %s90
    %p96 = scmp.eq.s32.totalorder %s9, 0
    %p97 = por %p95, %p96
    %p98 = scmp.ne.s32.totalorder %s87, %s90
    %p99 = scmp.eq.s32.totalorder %s14, 1
    %p100 = por %p98, %p99
    %p101 = scmp.ne.s32.totalorder %s90, %s91
    %p102 = scmp.eq.s32.totalorder %s14, 0
    %p103 = por %p101, %p102
    %p104 = scmp.ne.s32.totalorder %s90, %s91
    %p105 = scmp.eq.s32.totalorder %s15, 1
    %p106 = por %p104, %p105
    %p108 = scmp.ne.s32.totalorder %s91, %s107
    %p109 = scmp.eq.s32.totalorder %s15, 0
    %p110 = por %p108, %p109
    %p111 = scmp.le.s32.totalorder 1, %s9
    %p112 = scmp.lt.s32.totalorder %s9, 3
    %p113 = pnand %p111, %p112
    %p114 = pneg %p113
    // Predicated region
    $region9: #{_forward.41} parent=5 // pred_check
      _
    $region10: #{_forward.41} parent=5 // pred_check_branch
      %116 = sbr.rel (%p113) target = $region12
    $region11: #{_forward.41} parent=5 // pred_region
      %s117 = ssub.s32 %s9, 1
      // Predicated region
      $region13: #{_forward.41} parent=11 // pred_check
        %p118 = pneg %p56
      $region14: #{_forward.41} parent=11 // pred_check_branch
        %120 = sbr.rel (%p118) target = $region16
      $region15: #{_forward.41} parent=11 // pred_region
        _
      $region16: #{_forward.41} parent=11 // pred_fallthru
        _
      // Predicated region
      $region17: #{_forward.41} parent=11 // pred_check
        %p121 = pneg %p77
      $region18: #{_forward.41} parent=11 // pred_check_branch
        %123 = sbr.rel (%p121) target = $region20
      $region19: #{_forward.41} parent=11 // pred_region
        _
      $region20: #{_forward.41} parent=11 // pred_fallthru
        _
    $region12: #{_forward.41} parent=5 // pred_fallthru
      _
    %p124 = scmp.lt.s32.totalorder %s9, 2
    // Predicated region
    $region21: #{_forward.41} parent=5 // pred_check
      %p125 = pneg %p124
    $region22: #{_forward.41} parent=5 // pred_check_branch
      %127 = sbr.rel (%p125) target = $region24
    $region23: #{_forward.41} parent=5 // pred_region
      // Predicated region
      $region25: #{_forward.41} parent=23 // pred_check
        %p128 = pneg %p29
      $region26: #{_forward.41} parent=23 // pred_check_branch
        %130 = sbr.rel (%p128) target = $region28
      $region27: #{_forward.41} parent=23 // pred_region
        %p131 = scmp.lt.s32.totalorder %s9, 1
        %s132 = scalar_select %p131, %s9, 1
        %s133 = smul.addr %s132, 2
        %s134 = smul.addr %s133, 4
        %s135 = scalar_lea.vmem %s0, %s134
      $region28: #{_forward.41} parent=23 // pred_fallthru
        _
    $region24: #{_forward.41} parent=5 // pred_fallthru
      _
    %p136 = scmp.le.s32.totalorder 1, %s9
    %p137 = scmp.lt.s32.totalorder %s9, 3
    %p138 = pnand %p136, %p137
    %p139 = pneg %p138
    // Predicated region
    $region29: #{_forward.41} parent=5 // pred_check
      _
    $region30: #{_forward.41} parent=5 // pred_check_branch
      %141 = sbr.rel (%p138) target = $region32
    $region31: #{_forward.41} parent=5 // pred_region
      %s142 = ssub.s32 %s9, 1
      %p143 = scmp.lt.s32.totalorder %s14, 1
      %s144 = scalar_select %p143, %s14, 1
      %s145 = smul.addr %s144, 2
      %s146 = smul.addr %s145, 4
      %s147 = scalar_lea.vmem %s0, %s146
      %p148 = pneg %p35
      %p149 = pneg %p32
      %p150 = pneg %p56
      %p151 = pneg %p53
      %p152 = pneg %p77
      %p153 = pneg %p74
      %p154 = pneg %p103
      %p155 = pneg %p100
      %p156 = scmp.lt.s32.totalorder %s14, 1
      %s157 = scalar_select %p156, %s14, 1
      %s158 = smul.addr %s157, 4
      %s159 = scalar_lea.vmem %s3, %s158
      %p160 = scmp.lt.s32.totalorder %s14, 1
      %s161 = scalar_select %p160, %s14, 1
      %s162 = smul.addr %s161, 2
      %s163 = smul.addr %s162, 4
      %s164 = scalar_lea.vmem %s0, %s163
      %p165 = scmp.lt.s32.totalorder %s14, 1
      %s166 = scalar_select %p165, %s14, 1
      %s167 = smul.addr %s166, 4
      %s168 = scalar_lea.vmem %s3, %s167
      %v170 = vld [vmem:[%s164] sm:$0xf]
      %v171 = vld [vmem:[%s164 + $0x4] sm:$0xf]
      %v172 = vld [vmem:[%s1] sm:$0xf]
      %v173 = vld [vmem:[%s1 + $0x4] sm:$0xf]
      %v174 = vld [vmem:[%s1 + $0x8] sm:$0xf]
      %v175 = vld [vmem:[%s1 + $0xc] sm:$0xf]
      %v178 = vunpack.c.l.b16 %v170
      %v179 = vunpack.c.l.b16 %v171
      %v180 = vpack.c.b16 %v179, %v178
      %v185 = vunpack.c.l.b16 %v172
      %v186 = vunpack.c.l.b16 %v173
      %v187 = vunpack.c.l.b16 %v174
      %v188 = vunpack.c.l.b16 %v175
      %v189 = vpack.c.b16 %v186, %v185
      %v190 = vpack.c.b16 %v188, %v187
      %vm193 = vcmask 261120
      %v195 = vsel %vm193, %v180, 0
      %197 = vmatpush.bf16.msra.mxu0 0
      %198 = vmatpush.bf16.msra.mxu0 0
      %199 = vmatpush.bf16.msra.mxu0 0
      %200 = vmatpush.bf16.msra.mxu0 0
      %201 = vmatpush.bf16.msra.mxu0 0
      %202 = vmatpush.bf16.msra.mxu0 0
      %203 = vmatpush.bf16.msra.mxu0 %v190
      %204 = vmatpush.bf16.msra.mxu0 %v189
      %205 = vmatmul.bf16.gmra.mxu0 %v195
      %v206 = vpop.f32.mrf.mxu0
      %v207 = vadd.f32 0.0, %v206
      %v208 = vpop.f32.mrf.mxu0
      %v209 = vadd.f32 0.0, %v208
      %210 = vdwg.mxu0
      %213 = vrot.lane.b32.xlu0 %v207, 96
      %v214 = vpop.permute.xlu0 %213
      %215 = vrot.lane.b32.xlu0 %v209, 96
      %v216 = vpop.permute.xlu0 %215
      %v219 = vpack.c.bf16 %v209, %v207
      %v220 = vpack.c.bf16 %v216, %v214
      %v221 = vld [vmem:[%s2] sm:$0xf]
      %v223 = vsel %vm193, %v221, 0
      %225 = vmatpush.bf16.msra.mxu0 0
      %226 = vmatpush.bf16.msra.mxu0 0
      %227 = vmatpush.bf16.msra.mxu0 0
      %228 = vmatpush.bf16.msra.mxu0 0
      %229 = vmatpush.bf16.msra.mxu0 0
      %230 = vmatpush.bf16.msra.mxu0 0
      %231 = vmatpush.bf16.msra.mxu0 %v220
      %232 = vmatpush.bf16.msra.mxu0 %v219
      %233 = vmatmul.bf16.gmra.mxu0 %v223
      %v234 = vpop.f32.mrf.mxu0
      %v235 = vadd.f32 0.0, %v234
      %v236 = vpop.f32.mrf.mxu0
      %237 = vdwg.mxu0
      %v238 = vpack.c.bf16 %v235, %v235
      %vm239 = vcmask 257024
      %240 = vst.msk [vmem:[%s168] sm:$0xf] %vm239, %v238
      %p241 = scmp.lt.s32.totalorder %s14, 1
      %s242 = scalar_select %p241, %s14, 1
      %s243 = smul.addr %s242, 4
      %s244 = scalar_lea.vmem %s3, %s243
      // Predicated region
      $region33: #{_forward.41} parent=31 // pred_check
        %p245 = pneg %p100
      $region34: #{_forward.41} parent=31 // pred_check_branch
        %247 = sbr.rel (%p245) target = $region36
      $region35: #{_forward.41} parent=31 // pred_region
        _
      $region36: #{_forward.41} parent=31 // pred_fallthru
        _
    $region32: #{_forward.41} parent=5 // pred_fallthru
      _
    %p248 = scmp.le.s32.totalorder 2, %s9
    // Predicated region
    $region37: #{_forward.41} parent=5 // pred_check
      %p249 = pneg %p248
    $region38: #{_forward.41} parent=5 // pred_check_branch
      %251 = sbr.rel (%p249) target = $region40
    $region39: #{_forward.41} parent=5 // pred_region
      %s252 = ssub.s32 %s9, 2
      // Predicated region
      $region41: #{_forward.41} parent=39 // pred_check
        %p253 = pneg %p106
      $region42: #{_forward.41} parent=39 // pred_check_branch
        %255 = sbr.rel (%p253) target = $region44
      $region43: #{_forward.41} parent=39 // pred_region
        %p256 = scmp.lt.s32.totalorder %s15, 1
        %s257 = scalar_select %p256, %s15, 1
        %s258 = smul.addr %s257, 4
        %s259 = scalar_lea.vmem %s3, %s258
      $region44: #{_forward.41} parent=39 // pred_fallthru
        _
    $region40: #{_forward.41} parent=5 // pred_fallthru
      _
  $region6: #{_forward.41} parent=0 // loop_footer
    %s13 = sadd.s32 1, %s9
  $region7: #{_forward.41} parent=0 // loop_footer_branch
    %8 = sbr.rel target = $region3
  $region8: #{_forward.41} parent=0 // loop_exit
    _

// kernel: _forward.42
$region0: #{_forward.42}
  #allocation0 [shape = 'u32[]', space=smem, size = 0x4, offset = 0x4, fixed_abs, tag = 'smem constant byte address 0x4 - core index']
  #allocation1 [shape = 'u32[72,128]{1,0:T(1,128)}', space=vmem, size = 0x9000, scoped, tag = 'internal scratch']
  %s0 = inlined_call_operand.vmem [shape: bf16[16,32], index: 0, kind: input, shape index: {}]
  %s1 = inlined_call_operand.vmem [shape: f32[16,32], index: 1, kind: input, shape index: {}]
  %s2 = inlined_call_operand.vmem [shape: f32[1,32], index: 2, kind: input, shape index: {}]
  %s3 = inlined_call_operand.vmem [shape: f32[1,32], index: 3, kind: input, shape index: {}]
  %s4 = inlined_call_operand.vmem [shape: f32[16,32], index: 4, kind: output, shape index: {}]
  %s5 = sld [smem:[#allocation0]]
  $region26: #{_forward.42} parent=0
    _
  %s7 = ssub.s32 1, %s5
  %s8 = scalar_select 0, %s7, %s5
  // Predicated region
  $region2: #{_forward.42} parent=0 // pred_check
    _
  $region3: #{_forward.42} parent=0 // pred_check_branch
    %10 = sbr.rel (0) target = $region5
  $region4: #{_forward.42} parent=0 // pred_region
    _
  $region5: #{_forward.42} parent=0 // pred_fallthru
    _
  // Predicated region
  $region6: #{_forward.42} parent=0 // pred_check
    _
  $region7: #{_forward.42} parent=0 // pred_check_branch
    %12 = sbr.rel (0) target = $region9
  $region8: #{_forward.42} parent=0 // pred_region
    _
  $region9: #{_forward.42} parent=0 // pred_fallthru
    _
  // Predicated region
  $region10: #{_forward.42} parent=0 // pred_check
    _
  $region11: #{_forward.42} parent=0 // pred_check_branch
    %14 = sbr.rel (0) target = $region13
  $region12: #{_forward.42} parent=0 // pred_region
    _
  $region13: #{_forward.42} parent=0 // pred_fallthru
    _
  // Predicated region
  $region14: #{_forward.42} parent=0 // pred_check
    _
  $region15: #{_forward.42} parent=0 // pred_check_branch
    %16 = sbr.rel (0) target = $region17
  $region16: #{_forward.42} parent=0 // pred_region
    _
  $region17: #{_forward.42} parent=0 // pred_fallthru
    _
  %v17 = vld [vmem:[%s0] sm:$0xf]
  %v18 = vld [vmem:[%s0 + $0x4] sm:$0xf]
  %v19 = vunpack.c.l.bf16 %v17
  %v20 = vunpack.c.l.bf16 %v18
  %v21 = vld [vmem:[%s1] sm:$0xff]
  %v22 = vld [vmem:[%s1 + $0x8] sm:$0xff]
  %v23 = vadd.f32 %v19, %v21
  %v24 = vadd.f32 %v20, %v22
  %vm25 = vcmask 261120
  %v26 = vsel %vm25, %v23, 0.0
  %27 = vadd.xlane.f32.xlu0 %v26
  %v28 = vpop.xlane.xlu0 %27
  %v29 = vsel %vm25, %v24, 0.0
  %30 = vadd.xlane.f32.xlu0 %v29
  %v31 = vpop.xlane.xlu0 %30
  %v32 = vrcp.pop 32.0
  %v33 = vmul.f32 32.0, %v32
  %v34 = vsub.f32 1.0, %v33
  %v35 = vmul.f32 %v32, %v34
  %v36 = vadd.f32 %v32, %v35
  %vm37 = vweird.f32 %v32
  %v38 = vsel %vm37, %v32, %v36
  %v39 = vmul.f32 %v28, %v38
  %v40 = vmul.f32 %v31, %v38
  %v41 = vsub.f32 %v23, %v39
  %v42 = vsub.f32 %v24, %v40
  %v43 = vmul.f32 %v41, %v41
  %v44 = vmul.f32 %v42, %v42
  %v45 = vsel %vm25, %v43, 0.0
  %46 = vadd.xlane.f32.xlu0 %v45
  %v47 = vpop.xlane.xlu0 %46
  %v48 = vsel %vm25, %v44, 0.0
  %49 = vadd.xlane.f32.xlu0 %v48
  %v50 = vpop.xlane.xlu0 %49
  %v51 = vmul.f32 %v47, %v38
  %v52 = vmul.f32 %v50, %v38
  %v53 = vadd.f32 %v51, 1e-05
  %v54 = vadd.f32 %v52, 1e-05
  %v55 = vrsqrt.pop %v53
  %v56 = vmul.f32 %v55, %v53
  %v57 = vmul.f32 %v56, %v55
  %v58 = vmul.f32 0.5, %v57
  %v59 = vsub.f32 1.5, %v58
  %v60 = vmul.f32 %v55, %v59
  %vm61 = vweird.f32 %v53
  %vm62 = vweird.f32 %v55
  %vm63 = vmor %vm61, %vm62
  %v64 = vsel %vm63, %v55, %v60
  %v65 = vrsqrt.pop %v54
  %v66 = vmul.f32 %v65, %v54
  %v67 = vmul.f32 %v66, %v65
  %v68 = vmul.f32 0.5, %v67
  %v69 = vsub.f32 1.5, %v68
  %v70 = vmul.f32 %v65, %v69
  %vm71 = vweird.f32 %v54
  %vm72 = vweird.f32 %v65
  %vm73 = vmor %vm71, %vm72
  %v74 = vsel %vm73, %v65, %v70
  %v75 = vmul.f32 %v41, %v64
  %v76 = vmul.f32 %v42, %v74
  %v77 = vld [vmem:[%s2] sm:$0x1]
  %v79 = vperm.slane %v77, 0
  %v81 = vmul.f32 %v75, %v79
  %v82 = vmul.f32 %v76, %v79
  %v83 = vld [vmem:[%s3] sm:$0x1]
  %v85 = vperm.slane %v83, 0
  %v87 = vadd.f32 %v81, %v85
  %v88 = vadd.f32 %v82, %v85
  %89 = vst.msk [vmem:[%s4] sm:$0xff] %vm25, %v87
  %90 = vst.msk [vmem:[%s4 + $0x8] sm:$0xff] %vm25, %v88
  // Predicated region
  $region18: #{_forward.42} parent=0 // pred_check
    _
  $region19: #{_forward.42} parent=0 // pred_check_branch
    %92 = sbr.rel (0) target = $region21
  $region20: #{_forward.42} parent=0 // pred_region
    _
  $region21: #{_forward.42} parent=0 // pred_fallthru
    _
  // Predicated region
  $region22: #{_forward.42} parent=0 // pred_check
    _
  $region23: #{_forward.42} parent=0 // pred_check_branch
    %94 = sbr.rel (0) target = $region25
  $region24: #{_forward.42} parent=0 // pred_region
    _
  $region25: #{_forward.42} parent=0 // pred_fallthru
    _

</llo_original>
